<compile_context>
chip_gen: v7x
topology: tpu7x:2x2x1
jax: 0.10.0
libtpu: 0.0.40
codegen_flags: <defaults>
</compile_context>

<pallas_src>
import functools

import jax
import jax.numpy as jnp
from jax.experimental import pallas as pl
from jax.experimental.pallas import tpu as pltpu

SCALE = 0.7071067811865476   # sqrt(0.5), matches torch.sqrt(torch.FloatTensor([0.5]))
SQRT2 = 1.4142135623730951   # 2 * sqrt(0.5)


def _softmax_last(x, *, approx):
    m = jnp.max(x, axis=-1, keepdims=True)
    e = jnp.exp(x - m)
    s = jnp.sum(e, axis=-1, keepdims=True)
    return e * pl.reciprocal(s, approx=approx)


def attention_feedback_kernel(
    emb_ref,        # (1, tq, E)  f32
    conv_ref,       # (1, H, tq)  f32   (native [B, H, Td] layout, tiled on Td)
    enc_conv_ref,   # (1, Te, E)  compute dtype
    enc_comb_ref,   # (1, Te, E)  compute dtype
    pred_conv_ref,  # (1, Td, E)  compute dtype
    pred_comb_ref,  # (1, Td, E)  compute dtype
    w1_ref, b1_ref,           # hid2emb: (H, E) cdt, (1, E) f32
    w2_ref, w3_ref, b23_ref,  # emb2hid / p_emb2hid: (E, H) cdt each, (1, H) f32 = b2 + b3
    p_attn_ref,     # out: (1, tq, Td) f32
    out_ref,        # out: (1, H, tq)  f32   (module's [B, H, Td] layout, no wrapper transpose)
    *, td_total, tq, approx_recip, mask_tail,
):
    cdt = w1_ref.dtype                  # matmul operand dtype (f32 or bf16)

    embedded = emb_ref[0]               # [tq, E] f32
    conved_ht = conv_ref[0]             # [H, tq] f32

    # conved_emb = hid2emb(conved^T): contract over H (trans-LHS matmul, no explicit transpose).
    conved_emb = jnp.einsum('ht,he->te', conved_ht.astype(cdt), w1_ref[...],
                            preferred_element_type=jnp.float32) + b1_ref[...]
    combined = (embedded + conved_emb) * SCALE          # [tq, E] f32
    combined_c = combined.astype(cdt)

    # Two lane-aligned energy matmuls (no key-axis concat, no misaligned slice).
    energy = jnp.einsum('te,se->ts', combined_c, enc_conv_ref[0],
                        preferred_element_type=jnp.float32)    # [tq, Te]
    p_energy = jnp.einsum('te,se->ts', combined_c, pred_conv_ref[0],
                          preferred_element_type=jnp.float32)  # [tq, Td]

    if mask_tail:
        # Keep padded tail rows of a partial q-tile finite (their outputs are discarded).
        row = tq * pl.program_id(1) + jax.lax.broadcasted_iota(jnp.int32, (tq, 1), 0)
        valid = row < td_total
        energy = jnp.where(valid, energy, 0.0)
        p_energy = jnp.where(valid, p_energy, 0.0)

    attn = _softmax_last(energy, approx=approx_recip)          # [tq, Te] f32
    p_attn = _softmax_last(p_energy, approx=approx_recip)      # [tq, Td] f32

    ctx_enc = jnp.einsum('ts,se->te', attn.astype(cdt), enc_comb_ref[0],
                         preferred_element_type=jnp.float32)   # [tq, E]
    ctx_pred = jnp.einsum('ts,se->te', p_attn.astype(cdt), pred_comb_ref[0],
                          preferred_element_type=jnp.float32)  # [tq, E]

    # Two projections accumulated in f32 (no lane-axis concat); biases pre-summed into b23.
    hid_sum = (jnp.dot(ctx_enc.astype(cdt), w2_ref[...], preferred_element_type=jnp.float32)
               + jnp.dot(ctx_pred.astype(cdt), w3_ref[...], preferred_element_type=jnp.float32)
               + b23_ref[...])                                 # [tq, H] f32

    p_attn_ref[0] = p_attn
    # (conved + att_hid^T)*s + (conved + p_att_hid^T)*s == conved*sqrt(2) + hid_sum^T*s
    out_ref[0] = conved_ht * SQRT2 + jnp.transpose(hid_sum) * SCALE


def attention_feedback(embedded, conved, encoder_conved, encoder_combined,
                       pred_conved, pred_combined,
                       w_hid2emb, b_hid2emb, w_emb2hid, b_emb2hid,
                       w_p_emb2hid, b_p_emb2hid,
                       *, compute_dtype=jnp.float32, tq=None):
    """Matches AttentionFeedback.forward. Returns
    (p_attention [B, Td, Td], attented_combined + p_attented_combined [B, H, Td])."""
    B, Td, E = embedded.shape
    H = conved.shape[1]
    Te = encoder_conved.shape[1]

    # Cast-only prep: no wrapper-side transpose / concat (no extra HBM passes).
    enc_conv = encoder_conved.astype(compute_dtype)
    enc_comb = encoder_combined.astype(compute_dtype)
    pred_conv = pred_conved.astype(compute_dtype)
    pred_comb = pred_combined.astype(compute_dtype)
    w1 = w_hid2emb.astype(compute_dtype)                       # [H, E]
    w2 = w_emb2hid.astype(compute_dtype)                       # [E, H]
    w3 = w_p_emb2hid.astype(compute_dtype)                     # [E, H]
    b1 = b_hid2emb.reshape(1, E).astype(jnp.float32)
    b23 = (b_emb2hid + b_p_emb2hid).reshape(1, H).astype(jnp.float32)

    # VMEM budget: ~75% of per-core capacity -> 48 MiB on v7x (64 MiB physical),
    # 96 MiB on v5e/v6e (128 MiB physical). Conservative fallback if query fails.
    try:
        vmem_cap = int(pltpu.get_tpu_info().vmem_capacity_bytes)
    except Exception:
        vmem_cap = 64 * 1024 * 1024
    budget = min((vmem_cap * 3) // 4, 96 * 1024 * 1024)

    csize = jnp.dtype(compute_dtype).itemsize

    def _vmem_estimate(tq_):
        f32 = 4
        q_blocks = 2 * (tq_ * E + 2 * H * tq_ + tq_ * Td) * f32   # double-buffered q tiles
        resident = (2 * Te * E + 2 * Td * E) * csize              # single-buffered K/V blocks
        weights = (H * E + 2 * E * H) * csize + (E + H) * f32
        interm = tq_ * (Te + Td + 3 * E + 4 * H) * f32            # in-kernel temporaries
        return q_blocks + resident + weights + interm

    if tq is None:
        if Td <= 512:
            tq = Td
        else:
            tq = 512
            while tq > 128 and _vmem_estimate(tq) > budget:
                tq //= 2
    grid_q = pl.cdiv(Td, tq)
    # TODO(synk): if _vmem_estimate(tq) still exceeds the budget (very long Te/Td on v7x's
    # 64 MiB VMEM), tile the key axis with an online (flash-style) softmax instead of
    # keeping full-sequence keys/values resident.
    # TODO(synk): for tiny E/H (<< 128) the MXU runs well below capacity; zero-padding
    # E/H to 128-multiples in the wrapper would recover it but is not done here.

    kernel = functools.partial(
        attention_feedback_kernel,
        td_total=Td, tq=tq,
        approx_recip=(jnp.dtype(compute_dtype) == jnp.dtype(jnp.bfloat16)),
        mask_tail=(Td % tq != 0),
    )

    def _run(single_buffer_resident):
        mode = ({'pipeline_mode': pl.Buffered(1)} if single_buffer_resident else {})
        qspec = lambda shape: pl.BlockSpec((1,) + shape, lambda b, q: (b, q, 0))
        bspec = lambda shape: pl.BlockSpec((1,) + shape, lambda b, q: (b, 0, 0), **mode)
        wspec = lambda shape: pl.BlockSpec(shape, lambda b, q: (0,) * len(shape), **mode)

        grid_spec = pltpu.PrefetchScalarGridSpec(
            num_scalar_prefetch=0,
            grid=(B, grid_q),
            in_specs=[
                qspec((tq, E)),                                   # embedded
                pl.BlockSpec((1, H, tq), lambda b, q: (b, 0, q)),  # conved, native [B,H,Td]
                bspec((Te, E)),                                   # encoder_conved
                bspec((Te, E)),                                   # encoder_combined
                bspec((Td, E)),                                   # pred_conved
                bspec((Td, E)),                                   # pred_combined
                wspec((H, E)), wspec((1, E)),                     # hid2emb
                wspec((E, H)), wspec((E, H)), wspec((1, H)),      # emb2hid / p_emb2hid / b2+b3
            ],
            out_specs=[
                qspec((tq, Td)),                                   # p_attention
                pl.BlockSpec((1, H, tq), lambda b, q: (b, 0, q)),  # output in [B, H, Td]
            ],
        )

        return pl.pallas_call(
            kernel,
            out_shape=(
                jax.ShapeDtypeStruct((B, Td, Td), jnp.float32),
                jax.ShapeDtypeStruct((B, H, Td), jnp.float32),
            ),
            grid_spec=grid_spec,
            compiler_params=pltpu.CompilerParams(
                dimension_semantics=("parallel", "parallel"),
                vmem_limit_bytes=int(budget)),
        )(embedded, conved, enc_conv, enc_comb, pred_conv, pred_comb,
          w1, b1, w2, w3, b23)

    try:
        # Preferred: single-buffer the per-batch resident K/V blocks and the weights
        # (block index constant across the inner q axis), halving their VMEM footprint.
        p_attn, out = _run(True)
    except Exception:
        # Fallback for environments that reject pipeline_mode=pl.Buffered(1) here.
        p_attn, out = _run(False)

    return p_attn, out


def _reference(embedded, conved, encoder_conved, encoder_combined,
               pred_conved, pred_combined, w1, b1, w2, b2, w3, b3):
    conved_emb = jnp.einsum('bht,he->bte', conved, w1) + b1
    combined = (embedded + conved_emb) * SCALE
    energy = jnp.einsum('bte,bse->bts', combined, encoder_conved)
    attention = jax.nn.softmax(energy, axis=-1)
    att_enc = jnp.einsum('bts,bse->bte', attention, encoder_combined)
    att_hid = jnp.einsum('bte,eh->bth', att_enc, w2) + b2
    attented_combined = (conved + jnp.swapaxes(att_hid, 1, 2)) * SCALE
    p_energy = jnp.einsum('bte,bse->bts', combined, pred_conved)
    p_attention = jax.nn.softmax(p_energy, axis=-1)
    p_att_enc = jnp.einsum('bts,bse->bte', p_attention, pred_combined)
    p_att_hid = jnp.einsum('bte,eh->bth', p_att_enc, w3) + b3
    p_att_combined = (conved + jnp.swapaxes(p_att_hid, 1, 2)) * SCALE
    return p_attention, attented_combined + p_att_combined


if __name__ == "__main__":
    B, Td, Te, H, E = 2, 8, 16, 16, 32

    key = jax.random.PRNGKey(0)
    keys = jax.random.split(key, 12)
    embedded = jax.random.normal(keys[0], (B, Td, E), jnp.float32)
    conved = jax.random.normal(keys[1], (B, H, Td), jnp.float32)
    encoder_conved = jax.random.normal(keys[2], (B, Te, E), jnp.float32)
    encoder_combined = jax.random.normal(keys[3], (B, Te, E), jnp.float32)
    pred_conved = jax.random.normal(keys[4], (B, Td, E), jnp.float32)
    pred_combined = jax.random.normal(keys[5], (B, Td, E), jnp.float32)

    # Deterministic parameter init (stored as [in_dim, out_dim]).
    w_hid2emb = jax.random.normal(keys[6], (H, E), jnp.float32) * 0.1
    b_hid2emb = jax.random.normal(keys[7], (E,), jnp.float32) * 0.1
    w_emb2hid = jax.random.normal(keys[8], (E, H), jnp.float32) * 0.1
    b_emb2hid = jax.random.normal(keys[9], (H,), jnp.float32) * 0.1
    w_p_emb2hid = jax.random.normal(keys[10], (E, H), jnp.float32) * 0.1
    b_p_emb2hid = jax.random.normal(keys[11], (H,), jnp.float32) * 0.1

    args = (embedded, conved, encoder_conved, encoder_combined,
            pred_conved, pred_combined,
            w_hid2emb, b_hid2emb, w_emb2hid, b_emb2hid,
            w_p_emb2hid, b_p_emb2hid)

    ref_p_attn, ref_out = _reference(*args)

    # Exact path (f32 matmul operands, exact reciprocal) — must match tightly.
    p_attn, out = attention_feedback(*args, compute_dtype=jnp.float32)
    jax.block_until_ready((p_attn, out))
    assert jnp.allclose(p_attn, ref_p_attn, atol=1e-5, rtol=1e-5)
    assert jnp.allclose(out, ref_out, atol=1e-5, rtol=1e-5)

    # Optimized path (bf16 matmul operands, f32 accumulation, approx reciprocal).
    p_attn_bf, out_bf = attention_feedback(*args, compute_dtype=jnp.bfloat16)
    jax.block_until_ready((p_attn_bf, out_bf))
    assert jnp.allclose(p_attn_bf, ref_p_attn, atol=0.15, rtol=0.15)
    assert jnp.allclose(out_bf, ref_out, atol=0.15, rtol=0.15)

    print("KERNEL_OK")
</pallas_src>

<mosaic_0001>
module attributes {stable_mosaic.version = 11 : i64} {
  func.func @attention_feedback_kernel(%arg0: i32, %arg1: i32, %arg2: memref<1x8x32xf32, #tpu.memory_space<vmem>>, %arg3: memref<1x16x8xf32, #tpu.memory_space<vmem>>, %arg4: memref<1x16x32xf32, #tpu.memory_space<vmem>>, %arg5: memref<1x16x32xf32, #tpu.memory_space<vmem>>, %arg6: memref<1x8x32xf32, #tpu.memory_space<vmem>>, %arg7: memref<1x8x32xf32, #tpu.memory_space<vmem>>, %arg8: memref<16x32xf32, #tpu.memory_space<vmem>>, %arg9: memref<1x32xf32, #tpu.memory_space<vmem>>, %arg10: memref<32x16xf32, #tpu.memory_space<vmem>>, %arg11: memref<32x16xf32, #tpu.memory_space<vmem>>, %arg12: memref<1x16xf32, #tpu.memory_space<vmem>>, %arg13: memref<1x8x8xf32, #tpu.memory_space<vmem>>, %arg14: memref<1x16x8xf32, #tpu.memory_space<vmem>>) attributes {dimension_semantics = [#tpu.dimension_semantics<parallel>, #tpu.dimension_semantics<parallel>], iteration_bounds = array<i64: 2, 1>, scalar_prefetch = 0 : i64, scratch_operands = 0 : i64, tpu.core_type = #tpu.core_type<tc>, window_params = [{transform_indices = @transform_0, window_bounds = array<i64: 1, 8, 32>}, {transform_indices = @transform_1, window_bounds = array<i64: 1, 16, 8>}, {pipeline_mode = #tpu.pipeline_mode<synchronous>, transform_indices = @transform_2, window_bounds = array<i64: 1, 16, 32>}, {pipeline_mode = #tpu.pipeline_mode<synchronous>, transform_indices = @transform_3, window_bounds = array<i64: 1, 16, 32>}, {pipeline_mode = #tpu.pipeline_mode<synchronous>, transform_indices = @transform_4, window_bounds = array<i64: 1, 8, 32>}, {pipeline_mode = #tpu.pipeline_mode<synchronous>, transform_indices = @transform_5, window_bounds = array<i64: 1, 8, 32>}, {pipeline_mode = #tpu.pipeline_mode<synchronous>, transform_indices = @transform_6, window_bounds = array<i64: 16, 32>}, {pipeline_mode = #tpu.pipeline_mode<synchronous>, transform_indices = @transform_7, window_bounds = array<i64: 1, 32>}, {pipeline_mode = #tpu.pipeline_mode<synchronous>, transform_indices = @transform_8, window_bounds = array<i64: 32, 16>}, {pipeline_mode = #tpu.pipeline_mode<synchronous>, transform_indices = @transform_9, window_bounds = array<i64: 32, 16>}, {pipeline_mode = #tpu.pipeline_mode<synchronous>, transform_indices = @transform_10, window_bounds = array<i64: 1, 16>}, {transform_indices = @transform_11, window_bounds = array<i64: 1, 8, 8>}, {transform_indices = @transform_12, window_bounds = array<i64: 1, 16, 8>}]} {
    %c0 = arith.constant 0 : index
    %c0_0 = arith.constant 0 : index
    %c0_1 = arith.constant 0 : index
    %0 = vector.load %arg2[%c0, %c0_0, %c0_1] : memref<1x8x32xf32, #tpu.memory_space<vmem>>, vector<1x8x32xf32>
    %1 = vector.shape_cast %0 : vector<1x8x32xf32> to vector<8x32xf32>
    %c0_2 = arith.constant 0 : index
    %c0_3 = arith.constant 0 : index
    %c0_4 = arith.constant 0 : index
    %2 = vector.load %arg3[%c0_2, %c0_3, %c0_4] : memref<1x16x8xf32, #tpu.memory_space<vmem>>, vector<1x16x8xf32>
    %3 = vector.shape_cast %2 : vector<1x16x8xf32> to vector<16x8xf32>
    %c0_5 = arith.constant 0 : index
    %c0_6 = arith.constant 0 : index
    %4 = vector.load %arg8[%c0_5, %c0_6] : memref<16x32xf32, #tpu.memory_space<vmem>>, vector<16x32xf32>
    "tpu.trace_start"() <{level = 10 : i32, message = "ht,he->te"}> : () -> ()
    %cst = arith.constant dense<0.000000e+00> : vector<8x32xf32>
    %5 = tpu.matmul %3, %4, %cst {dimension_numbers = #tpu.dot_dimension_numbers<[0], [0], [1], [1], [0, 1, 1, 1], [], []>} : vector<16x8xf32>, vector<16x32xf32>, vector<8x32xf32> -> vector<8x32xf32>
    "tpu.trace_stop"() : () -> ()
    %c0_7 = arith.constant 0 : index
    %c0_8 = arith.constant 0 : index
    %6 = vector.load %arg9[%c0_7, %c0_8] : memref<1x32xf32, #tpu.memory_space<vmem>>, vector<1x32xf32>
    %7 = vector.broadcast %6 : vector<1x32xf32> to vector<8x32xf32>
    %8 = arith.addf %5, %7 : vector<8x32xf32>
    %9 = arith.addf %1, %8 : vector<8x32xf32>
    %cst_9 = arith.constant 0.707106769 : f32
    %10 = vector.broadcast %cst_9 : f32 to vector<8x32xf32>
    %11 = arith.mulf %9, %10 : vector<8x32xf32>
    %c0_10 = arith.constant 0 : index
    %c0_11 = arith.constant 0 : index
    %c0_12 = arith.constant 0 : index
    %12 = vector.load %arg4[%c0_10, %c0_11, %c0_12] : memref<1x16x32xf32, #tpu.memory_space<vmem>>, vector<1x16x32xf32>
    %13 = vector.shape_cast %12 : vector<1x16x32xf32> to vector<16x32xf32>
    "tpu.trace_start"() <{level = 10 : i32, message = "te,se->ts"}> : () -> ()
    %cst_13 = arith.constant dense<0.000000e+00> : vector<8x16xf32>
    %14 = tpu.matmul %11, %13, %cst_13 {dimension_numbers = #tpu.dot_dimension_numbers<[1], [1], [0], [0], [0, 0, 1, 0], [], []>} : vector<8x32xf32>, vector<16x32xf32>, vector<8x16xf32> -> vector<8x16xf32>
    "tpu.trace_stop"() : () -> ()
    %c0_14 = arith.constant 0 : index
    %c0_15 = arith.constant 0 : index
    %c0_16 = arith.constant 0 : index
    %15 = vector.load %arg6[%c0_14, %c0_15, %c0_16] : memref<1x8x32xf32, #tpu.memory_space<vmem>>, vector<1x8x32xf32>
    %16 = vector.shape_cast %15 : vector<1x8x32xf32> to vector<8x32xf32>
    "tpu.trace_start"() <{level = 10 : i32, message = "te,se->ts"}> : () -> ()
    %cst_17 = arith.constant dense<0.000000e+00> : vector<8x8xf32>
    %17 = tpu.matmul %11, %16, %cst_17 {dimension_numbers = #tpu.dot_dimension_numbers<[1], [1], [0], [0], [0, 0, 1, 0], [], []>} : vector<8x32xf32>, vector<8x32xf32>, vector<8x8xf32> -> vector<8x8xf32>
    "tpu.trace_stop"() : () -> ()
    %cst_18 = arith.constant dense<0xFF800000> : vector<8xf32>
    %18 = vector.multi_reduction <maximumf>, %14, %cst_18 [1] : vector<8x16xf32> to vector<8xf32>
    %19 = vector.shape_cast %18 : vector<8xf32> to vector<8x1xf32>
    %20 = vector.broadcast %19 : vector<8x1xf32> to vector<8x16xf32>
    %21 = arith.subf %14, %20 : vector<8x16xf32>
    %22 = math.exp %21 : vector<8x16xf32>
    %cst_19 = arith.constant dense<0.000000e+00> : vector<8xf32>
    %23 = vector.multi_reduction <add>, %22, %cst_19 [1] : vector<8x16xf32> to vector<8xf32>
    %24 = vector.shape_cast %23 : vector<8xf32> to vector<8x1xf32>
    %25 = tpu.reciprocal %24 : vector<8x1xf32> -> vector<8x1xf32>
    %26 = vector.broadcast %25 : vector<8x1xf32> to vector<8x16xf32>
    %27 = arith.mulf %22, %26 : vector<8x16xf32>
    %cst_20 = arith.constant dense<0xFF800000> : vector<8xf32>
    %28 = vector.multi_reduction <maximumf>, %17, %cst_20 [1] : vector<8x8xf32> to vector<8xf32>
    %29 = vector.shape_cast %28 : vector<8xf32> to vector<8x1xf32>
    %30 = vector.broadcast %29 : vector<8x1xf32> to vector<8x8xf32>
    %31 = arith.subf %17, %30 : vector<8x8xf32>
    %32 = math.exp %31 : vector<8x8xf32>
    %cst_21 = arith.constant dense<0.000000e+00> : vector<8xf32>
    %33 = vector.multi_reduction <add>, %32, %cst_21 [1] : vector<8x8xf32> to vector<8xf32>
    %34 = vector.shape_cast %33 : vector<8xf32> to vector<8x1xf32>
    %35 = tpu.reciprocal %34 : vector<8x1xf32> -> vector<8x1xf32>
    %36 = vector.broadcast %35 : vector<8x1xf32> to vector<8x8xf32>
    %37 = arith.mulf %32, %36 : vector<8x8xf32>
    %c0_22 = arith.constant 0 : index
    %c0_23 = arith.constant 0 : index
    %c0_24 = arith.constant 0 : index
    %38 = vector.load %arg5[%c0_22, %c0_23, %c0_24] : memref<1x16x32xf32, #tpu.memory_space<vmem>>, vector<1x16x32xf32>
    %39 = vector.shape_cast %38 : vector<1x16x32xf32> to vector<16x32xf32>
    "tpu.trace_start"() <{level = 10 : i32, message = "ts,se->te"}> : () -> ()
    %cst_25 = arith.constant dense<0.000000e+00> : vector<8x32xf32>
    %40 = tpu.matmul %27, %39, %cst_25 {dimension_numbers = #tpu.dot_dimension_numbers<[1], [0], [0], [1], [0, 0, 1, 1], [], []>} : vector<8x16xf32>, vector<16x32xf32>, vector<8x32xf32> -> vector<8x32xf32>
    "tpu.trace_stop"() : () -> ()
    %c0_26 = arith.constant 0 : index
    %c0_27 = arith.constant 0 : index
    %c0_28 = arith.constant 0 : index
    %41 = vector.load %arg7[%c0_26, %c0_27, %c0_28] : memref<1x8x32xf32, #tpu.memory_space<vmem>>, vector<1x8x32xf32>
    %42 = vector.shape_cast %41 : vector<1x8x32xf32> to vector<8x32xf32>
    "tpu.trace_start"() <{level = 10 : i32, message = "ts,se->te"}> : () -> ()
    %cst_29 = arith.constant dense<0.000000e+00> : vector<8x32xf32>
    %43 = tpu.matmul %37, %42, %cst_29 {dimension_numbers = #tpu.dot_dimension_numbers<[1], [0], [0], [1], [0, 0, 1, 1], [], []>} : vector<8x8xf32>, vector<8x32xf32>, vector<8x32xf32> -> vector<8x32xf32>
    "tpu.trace_stop"() : () -> ()
    %c0_30 = arith.constant 0 : index
    %c0_31 = arith.constant 0 : index
    %44 = vector.load %arg10[%c0_30, %c0_31] : memref<32x16xf32, #tpu.memory_space<vmem>>, vector<32x16xf32>
    %cst_32 = arith.constant dense<0.000000e+00> : vector<8x16xf32>
    %45 = tpu.matmul %40, %44, %cst_32 {dimension_numbers = #tpu.dot_dimension_numbers<[1], [0], [0], [1], [0, 0, 1, 1], [], []>} : vector<8x32xf32>, vector<32x16xf32>, vector<8x16xf32> -> vector<8x16xf32>
    %c0_33 = arith.constant 0 : index
    %c0_34 = arith.constant 0 : index
    %46 = vector.load %arg11[%c0_33, %c0_34] : memref<32x16xf32, #tpu.memory_space<vmem>>, vector<32x16xf32>
    %cst_35 = arith.constant dense<0.000000e+00> : vector<8x16xf32>
    %47 = tpu.matmul %43, %46, %cst_35 {dimension_numbers = #tpu.dot_dimension_numbers<[1], [0], [0], [1], [0, 0, 1, 1], [], []>} : vector<8x32xf32>, vector<32x16xf32>, vector<8x16xf32> -> vector<8x16xf32>
    %48 = arith.addf %45, %47 : vector<8x16xf32>
    %c0_36 = arith.constant 0 : index
    %c0_37 = arith.constant 0 : index
    %49 = vector.load %arg12[%c0_36, %c0_37] : memref<1x16xf32, #tpu.memory_space<vmem>>, vector<1x16xf32>
    %50 = vector.broadcast %49 : vector<1x16xf32> to vector<8x16xf32>
    %51 = arith.addf %48, %50 : vector<8x16xf32>
    %c0_38 = arith.constant 0 : index
    %c0_39 = arith.constant 0 : index
    %c0_40 = arith.constant 0 : index
    %52 = vector.load %arg13[%c0_38, %c0_39, %c0_40] : memref<1x8x8xf32, #tpu.memory_space<vmem>>, vector<1x8x8xf32>
    %53 = vector.shape_cast %52 : vector<1x8x8xf32> to vector<8x8xf32>
    %54 = vector.shape_cast %37 : vector<8x8xf32> to vector<1x8x8xf32>
    tpu.vector_store %arg13[%c0_38, %c0_39, %c0_40], %54 {strides = array<i32>} : memref<1x8x8xf32, #tpu.memory_space<vmem>>, vector<1x8x8xf32>,
    %cst_41 = arith.constant 1.41421354 : f32
    %55 = vector.broadcast %cst_41 : f32 to vector<16x8xf32>
    %56 = arith.mulf %3, %55 : vector<16x8xf32>
    %57 = tpu.transpose %51, [1, 0] : vector<8x16xf32> -> vector<16x8xf32>
    %cst_42 = arith.constant 0.707106769 : f32
    %58 = vector.broadcast %cst_42 : f32 to vector<16x8xf32>
    %59 = arith.mulf %57, %58 : vector<16x8xf32>
    %60 = arith.addf %56, %59 : vector<16x8xf32>
    %c0_43 = arith.constant 0 : index
    %c0_44 = arith.constant 0 : index
    %c0_45 = arith.constant 0 : index
    %61 = vector.load %arg14[%c0_43, %c0_44, %c0_45] : memref<1x16x8xf32, #tpu.memory_space<vmem>>, vector<1x16x8xf32>
    %62 = vector.shape_cast %61 : vector<1x16x8xf32> to vector<16x8xf32>
    %63 = vector.shape_cast %60 : vector<16x8xf32> to vector<1x16x8xf32>
    tpu.vector_store %arg14[%c0_43, %c0_44, %c0_45], %63 {strides = array<i32>} : memref<1x16x8xf32, #tpu.memory_space<vmem>>, vector<1x16x8xf32>,
    return
  }
  func.func @transform_0(%arg0: i32, %arg1: i32) -> (i32, i32, i32) {
    %c0_i32 = arith.constant 0 : i32
    %c0_i32_0 = arith.constant 0 : i32
    return %arg0, %arg1, %c0_i32 : i32, i32, i32
  }
  func.func @transform_1(%arg0: i32, %arg1: i32) -> (i32, i32, i32) {
    %c0_i32 = arith.constant 0 : i32
    %c0_i32_0 = arith.constant 0 : i32
    return %arg0, %c0_i32, %arg1 : i32, i32, i32
  }
  func.func @transform_2(%arg0: i32, %arg1: i32) -> (i32, i32, i32) {
    %c0_i32 = arith.constant 0 : i32
    %c0_i32_0 = arith.constant 0 : i32
    %c0_i32_1 = arith.constant 0 : i32
    return %arg0, %c0_i32, %c0_i32_0 : i32, i32, i32
  }
  func.func @transform_3(%arg0: i32, %arg1: i32) -> (i32, i32, i32) {
    %c0_i32 = arith.constant 0 : i32
    %c0_i32_0 = arith.constant 0 : i32
    %c0_i32_1 = arith.constant 0 : i32
    return %arg0, %c0_i32, %c0_i32_0 : i32, i32, i32
  }
  func.func @transform_4(%arg0: i32, %arg1: i32) -> (i32, i32, i32) {
    %c0_i32 = arith.constant 0 : i32
    %c0_i32_0 = arith.constant 0 : i32
    %c0_i32_1 = arith.constant 0 : i32
    return %arg0, %c0_i32, %c0_i32_0 : i32, i32, i32
  }
  func.func @transform_5(%arg0: i32, %arg1: i32) -> (i32, i32, i32) {
    %c0_i32 = arith.constant 0 : i32
    %c0_i32_0 = arith.constant 0 : i32
    %c0_i32_1 = arith.constant 0 : i32
    return %arg0, %c0_i32, %c0_i32_0 : i32, i32, i32
  }
  func.func @transform_6(%arg0: i32, %arg1: i32) -> (i32, i32) {
    %c0_i32 = arith.constant 0 : i32
    %c0_i32_0 = arith.constant 0 : i32
    %c0_i32_1 = arith.constant 0 : i32
    return %c0_i32, %c0_i32_0 : i32, i32
  }
  func.func @transform_7(%arg0: i32, %arg1: i32) -> (i32, i32) {
    %c0_i32 = arith.constant 0 : i32
    %c0_i32_0 = arith.constant 0 : i32
    %c0_i32_1 = arith.constant 0 : i32
    return %c0_i32, %c0_i32_0 : i32, i32
  }
  func.func @transform_8(%arg0: i32, %arg1: i32) -> (i32, i32) {
    %c0_i32 = arith.constant 0 : i32
    %c0_i32_0 = arith.constant 0 : i32
    %c0_i32_1 = arith.constant 0 : i32
    return %c0_i32, %c0_i32_0 : i32, i32
  }
  func.func @transform_9(%arg0: i32, %arg1: i32) -> (i32, i32) {
    %c0_i32 = arith.constant 0 : i32
    %c0_i32_0 = arith.constant 0 : i32
    %c0_i32_1 = arith.constant 0 : i32
    return %c0_i32, %c0_i32_0 : i32, i32
  }
  func.func @transform_10(%arg0: i32, %arg1: i32) -> (i32, i32) {
    %c0_i32 = arith.constant 0 : i32
    %c0_i32_0 = arith.constant 0 : i32
    %c0_i32_1 = arith.constant 0 : i32
    return %c0_i32, %c0_i32_0 : i32, i32
  }
  func.func @transform_11(%arg0: i32, %arg1: i32) -> (i32, i32, i32) {
    %c0_i32 = arith.constant 0 : i32
    %c0_i32_0 = arith.constant 0 : i32
    return %arg0, %arg1, %c0_i32 : i32, i32, i32
  }
  func.func @transform_12(%arg0: i32, %arg1: i32) -> (i32, i32, i32) {
    %c0_i32 = arith.constant 0 : i32
    %c0_i32_0 = arith.constant 0 : i32
    return %arg0, %c0_i32, %arg1 : i32, i32, i32
  }
}

module attributes {stable_mosaic.version = 11 : i64} {
  func.func @attention_feedback_kernel(%arg0: i32, %arg1: i32, %arg2: memref<1x8x32xf32, #tpu.memory_space<vmem>>, %arg3: memref<1x16x8xf32, #tpu.memory_space<vmem>>, %arg4: memref<1x16x32xf32, #tpu.memory_space<vmem>>, %arg5: memref<1x16x32xf32, #tpu.memory_space<vmem>>, %arg6: memref<1x8x32xf32, #tpu.memory_space<vmem>>, %arg7: memref<1x8x32xf32, #tpu.memory_space<vmem>>, %arg8: memref<16x32xf32, #tpu.memory_space<vmem>>, %arg9: memref<1x32xf32, #tpu.memory_space<vmem>>, %arg10: memref<32x16xf32, #tpu.memory_space<vmem>>, %arg11: memref<32x16xf32, #tpu.memory_space<vmem>>, %arg12: memref<1x16xf32, #tpu.memory_space<vmem>>, %arg13: memref<1x8x8xf32, #tpu.memory_space<vmem>>, %arg14: memref<1x16x8xf32, #tpu.memory_space<vmem>>) attributes {dimension_semantics = [#tpu.dimension_semantics<parallel>, #tpu.dimension_semantics<parallel>], iteration_bounds = array<i64: 2, 1>, scalar_prefetch = 0 : i64, scratch_operands = 0 : i64, tpu.core_type = #tpu.core_type<tc>, window_params = [{transform_indices = @transform_0, window_bounds = array<i64: 1, 8, 32>}, {transform_indices = @transform_1, window_bounds = array<i64: 1, 16, 8>}, {transform_indices = @transform_2, window_bounds = array<i64: 1, 16, 32>}, {transform_indices = @transform_3, window_bounds = array<i64: 1, 16, 32>}, {transform_indices = @transform_4, window_bounds = array<i64: 1, 8, 32>}, {transform_indices = @transform_5, window_bounds = array<i64: 1, 8, 32>}, {pipeline_mode = #tpu.pipeline_mode<synchronous>, transform_indices = @transform_6, window_bounds = array<i64: 16, 32>}, {pipeline_mode = #tpu.pipeline_mode<synchronous>, transform_indices = @transform_7, window_bounds = array<i64: 1, 32>}, {pipeline_mode = #tpu.pipeline_mode<synchronous>, transform_indices = @transform_8, window_bounds = array<i64: 32, 16>}, {pipeline_mode = #tpu.pipeline_mode<synchronous>, transform_indices = @transform_9, window_bounds = array<i64: 32, 16>}, {pipeline_mode = #tpu.pipeline_mode<synchronous>, transform_indices = @transform_10, window_bounds = array<i64: 1, 16>}, {transform_indices = @transform_11, window_bounds = array<i64: 1, 8, 8>}, {transform_indices = @transform_12, window_bounds = array<i64: 1, 16, 8>}]} {
    %c0 = arith.constant 0 : index
    %c0_0 = arith.constant 0 : index
    %c0_1 = arith.constant 0 : index
    %0 = vector.load %arg2[%c0, %c0_0, %c0_1] : memref<1x8x32xf32, #tpu.memory_space<vmem>>, vector<1x8x32xf32>
    %1 = vector.shape_cast %0 : vector<1x8x32xf32> to vector<8x32xf32>
    %c0_2 = arith.constant 0 : index
    %c0_3 = arith.constant 0 : index
    %c0_4 = arith.constant 0 : index
    %2 = vector.load %arg3[%c0_2, %c0_3, %c0_4] : memref<1x16x8xf32, #tpu.memory_space<vmem>>, vector<1x16x8xf32>
    %3 = vector.shape_cast %2 : vector<1x16x8xf32> to vector<16x8xf32>
    %c0_5 = arith.constant 0 : index
    %c0_6 = arith.constant 0 : index
    %4 = vector.load %arg8[%c0_5, %c0_6] : memref<16x32xf32, #tpu.memory_space<vmem>>, vector<16x32xf32>
    "tpu.trace_start"() <{level = 10 : i32, message = "ht,he->te"}> : () -> ()
    %cst = arith.constant dense<0.000000e+00> : vector<8x32xf32>
    %5 = tpu.matmul %3, %4, %cst {dimension_numbers = #tpu.dot_dimension_numbers<[0], [0], [1], [1], [0, 1, 1, 1], [], []>} : vector<16x8xf32>, vector<16x32xf32>, vector<8x32xf32> -> vector<8x32xf32>
    "tpu.trace_stop"() : () -> ()
    %c0_7 = arith.constant 0 : index
    %c0_8 = arith.constant 0 : index
    %6 = vector.load %arg9[%c0_7, %c0_8] : memref<1x32xf32, #tpu.memory_space<vmem>>, vector<1x32xf32>
    %7 = vector.broadcast %6 : vector<1x32xf32> to vector<8x32xf32>
    %8 = arith.addf %5, %7 : vector<8x32xf32>
    %9 = arith.addf %1, %8 : vector<8x32xf32>
    %cst_9 = arith.constant 0.707106769 : f32
    %10 = vector.broadcast %cst_9 : f32 to vector<8x32xf32>
    %11 = arith.mulf %9, %10 : vector<8x32xf32>
    %c0_10 = arith.constant 0 : index
    %c0_11 = arith.constant 0 : index
    %c0_12 = arith.constant 0 : index
    %12 = vector.load %arg4[%c0_10, %c0_11, %c0_12] : memref<1x16x32xf32, #tpu.memory_space<vmem>>, vector<1x16x32xf32>
    %13 = vector.shape_cast %12 : vector<1x16x32xf32> to vector<16x32xf32>
    "tpu.trace_start"() <{level = 10 : i32, message = "te,se->ts"}> : () -> ()
    %cst_13 = arith.constant dense<0.000000e+00> : vector<8x16xf32>
    %14 = tpu.matmul %11, %13, %cst_13 {dimension_numbers = #tpu.dot_dimension_numbers<[1], [1], [0], [0], [0, 0, 1, 0], [], []>} : vector<8x32xf32>, vector<16x32xf32>, vector<8x16xf32> -> vector<8x16xf32>
    "tpu.trace_stop"() : () -> ()
    %c0_14 = arith.constant 0 : index
    %c0_15 = arith.constant 0 : index
    %c0_16 = arith.constant 0 : index
    %15 = vector.load %arg6[%c0_14, %c0_15, %c0_16] : memref<1x8x32xf32, #tpu.memory_space<vmem>>, vector<1x8x32xf32>
    %16 = vector.shape_cast %15 : vector<1x8x32xf32> to vector<8x32xf32>
    "tpu.trace_start"() <{level = 10 : i32, message = "te,se->ts"}> : () -> ()
    %cst_17 = arith.constant dense<0.000000e+00> : vector<8x8xf32>
    %17 = tpu.matmul %11, %16, %cst_17 {dimension_numbers = #tpu.dot_dimension_numbers<[1], [1], [0], [0], [0, 0, 1, 0], [], []>} : vector<8x32xf32>, vector<8x32xf32>, vector<8x8xf32> -> vector<8x8xf32>
    "tpu.trace_stop"() : () -> ()
    %cst_18 = arith.constant dense<0xFF800000> : vector<8xf32>
    %18 = vector.multi_reduction <maximumf>, %14, %cst_18 [1] : vector<8x16xf32> to vector<8xf32>
    %19 = vector.shape_cast %18 : vector<8xf32> to vector<8x1xf32>
    %20 = vector.broadcast %19 : vector<8x1xf32> to vector<8x16xf32>
    %21 = arith.subf %14, %20 : vector<8x16xf32>
    %22 = math.exp %21 : vector<8x16xf32>
    %cst_19 = arith.constant dense<0.000000e+00> : vector<8xf32>
    %23 = vector.multi_reduction <add>, %22, %cst_19 [1] : vector<8x16xf32> to vector<8xf32>
    %24 = vector.shape_cast %23 : vector<8xf32> to vector<8x1xf32>
    %25 = tpu.reciprocal %24 : vector<8x1xf32> -> vector<8x1xf32>
    %26 = vector.broadcast %25 : vector<8x1xf32> to vector<8x16xf32>
    %27 = arith.mulf %22, %26 : vector<8x16xf32>
    %cst_20 = arith.constant dense<0xFF800000> : vector<8xf32>
    %28 = vector.multi_reduction <maximumf>, %17, %cst_20 [1] : vector<8x8xf32> to vector<8xf32>
    %29 = vector.shape_cast %28 : vector<8xf32> to vector<8x1xf32>
    %30 = vector.broadcast %29 : vector<8x1xf32> to vector<8x8xf32>
    %31 = arith.subf %17, %30 : vector<8x8xf32>
    %32 = math.exp %31 : vector<8x8xf32>
    %cst_21 = arith.constant dense<0.000000e+00> : vector<8xf32>
    %33 = vector.multi_reduction <add>, %32, %cst_21 [1] : vector<8x8xf32> to vector<8xf32>
    %34 = vector.shape_cast %33 : vector<8xf32> to vector<8x1xf32>
    %35 = tpu.reciprocal %34 : vector<8x1xf32> -> vector<8x1xf32>
    %36 = vector.broadcast %35 : vector<8x1xf32> to vector<8x8xf32>
    %37 = arith.mulf %32, %36 : vector<8x8xf32>
    %c0_22 = arith.constant 0 : index
    %c0_23 = arith.constant 0 : index
    %c0_24 = arith.constant 0 : index
    %38 = vector.load %arg5[%c0_22, %c0_23, %c0_24] : memref<1x16x32xf32, #tpu.memory_space<vmem>>, vector<1x16x32xf32>
    %39 = vector.shape_cast %38 : vector<1x16x32xf32> to vector<16x32xf32>
    "tpu.trace_start"() <{level = 10 : i32, message = "ts,se->te"}> : () -> ()
    %cst_25 = arith.constant dense<0.000000e+00> : vector<8x32xf32>
    %40 = tpu.matmul %27, %39, %cst_25 {dimension_numbers = #tpu.dot_dimension_numbers<[1], [0], [0], [1], [0, 0, 1, 1], [], []>} : vector<8x16xf32>, vector<16x32xf32>, vector<8x32xf32> -> vector<8x32xf32>
    "tpu.trace_stop"() : () -> ()
    %c0_26 = arith.constant 0 : index
    %c0_27 = arith.constant 0 : index
    %c0_28 = arith.constant 0 : index
    %41 = vector.load %arg7[%c0_26, %c0_27, %c0_28] : memref<1x8x32xf32, #tpu.memory_space<vmem>>, vector<1x8x32xf32>
    %42 = vector.shape_cast %41 : vector<1x8x32xf32> to vector<8x32xf32>
    "tpu.trace_start"() <{level = 10 : i32, message = "ts,se->te"}> : () -> ()
    %cst_29 = arith.constant dense<0.000000e+00> : vector<8x32xf32>
    %43 = tpu.matmul %37, %42, %cst_29 {dimension_numbers = #tpu.dot_dimension_numbers<[1], [0], [0], [1], [0, 0, 1, 1], [], []>} : vector<8x8xf32>, vector<8x32xf32>, vector<8x32xf32> -> vector<8x32xf32>
    "tpu.trace_stop"() : () -> ()
    %c0_30 = arith.constant 0 : index
    %c0_31 = arith.constant 0 : index
    %44 = vector.load %arg10[%c0_30, %c0_31] : memref<32x16xf32, #tpu.memory_space<vmem>>, vector<32x16xf32>
    %cst_32 = arith.constant dense<0.000000e+00> : vector<8x16xf32>
    %45 = tpu.matmul %40, %44, %cst_32 {dimension_numbers = #tpu.dot_dimension_numbers<[1], [0], [0], [1], [0, 0, 1, 1], [], []>} : vector<8x32xf32>, vector<32x16xf32>, vector<8x16xf32> -> vector<8x16xf32>
    %c0_33 = arith.constant 0 : index
    %c0_34 = arith.constant 0 : index
    %46 = vector.load %arg11[%c0_33, %c0_34] : memref<32x16xf32, #tpu.memory_space<vmem>>, vector<32x16xf32>
    %cst_35 = arith.constant dense<0.000000e+00> : vector<8x16xf32>
    %47 = tpu.matmul %43, %46, %cst_35 {dimension_numbers = #tpu.dot_dimension_numbers<[1], [0], [0], [1], [0, 0, 1, 1], [], []>} : vector<8x32xf32>, vector<32x16xf32>, vector<8x16xf32> -> vector<8x16xf32>
    %48 = arith.addf %45, %47 : vector<8x16xf32>
    %c0_36 = arith.constant 0 : index
    %c0_37 = arith.constant 0 : index
    %49 = vector.load %arg12[%c0_36, %c0_37] : memref<1x16xf32, #tpu.memory_space<vmem>>, vector<1x16xf32>
    %50 = vector.broadcast %49 : vector<1x16xf32> to vector<8x16xf32>
    %51 = arith.addf %48, %50 : vector<8x16xf32>
    %c0_38 = arith.constant 0 : index
    %c0_39 = arith.constant 0 : index
    %c0_40 = arith.constant 0 : index
    %52 = vector.load %arg13[%c0_38, %c0_39, %c0_40] : memref<1x8x8xf32, #tpu.memory_space<vmem>>, vector<1x8x8xf32>
    %53 = vector.shape_cast %52 : vector<1x8x8xf32> to vector<8x8xf32>
    %54 = vector.shape_cast %37 : vector<8x8xf32> to vector<1x8x8xf32>
    tpu.vector_store %arg13[%c0_38, %c0_39, %c0_40], %54 {strides = array<i32>} : memref<1x8x8xf32, #tpu.memory_space<vmem>>, vector<1x8x8xf32>,
    %cst_41 = arith.constant 1.41421354 : f32
    %55 = vector.broadcast %cst_41 : f32 to vector<16x8xf32>
    %56 = arith.mulf %3, %55 : vector<16x8xf32>
    %57 = tpu.transpose %51, [1, 0] : vector<8x16xf32> -> vector<16x8xf32>
    %cst_42 = arith.constant 0.707106769 : f32
    %58 = vector.broadcast %cst_42 : f32 to vector<16x8xf32>
    %59 = arith.mulf %57, %58 : vector<16x8xf32>
    %60 = arith.addf %56, %59 : vector<16x8xf32>
    %c0_43 = arith.constant 0 : index
    %c0_44 = arith.constant 0 : index
    %c0_45 = arith.constant 0 : index
    %61 = vector.load %arg14[%c0_43, %c0_44, %c0_45] : memref<1x16x8xf32, #tpu.memory_space<vmem>>, vector<1x16x8xf32>
    %62 = vector.shape_cast %61 : vector<1x16x8xf32> to vector<16x8xf32>
    %63 = vector.shape_cast %60 : vector<16x8xf32> to vector<1x16x8xf32>
    tpu.vector_store %arg14[%c0_43, %c0_44, %c0_45], %63 {strides = array<i32>} : memref<1x16x8xf32, #tpu.memory_space<vmem>>, vector<1x16x8xf32>,
    return
  }
  func.func @transform_0(%arg0: i32, %arg1: i32) -> (i32, i32, i32) {
    %c0_i32 = arith.constant 0 : i32
    %c0_i32_0 = arith.constant 0 : i32
    return %arg0, %arg1, %c0_i32 : i32, i32, i32
  }
  func.func @transform_1(%arg0: i32, %arg1: i32) -> (i32, i32, i32) {
    %c0_i32 = arith.constant 0 : i32
    %c0_i32_0 = arith.constant 0 : i32
    return %arg0, %c0_i32, %arg1 : i32, i32, i32
  }
  func.func @transform_2(%arg0: i32, %arg1: i32) -> (i32, i32, i32) {
    %c0_i32 = arith.constant 0 : i32
    %c0_i32_0 = arith.constant 0 : i32
    %c0_i32_1 = arith.constant 0 : i32
    return %arg0, %c0_i32, %c0_i32_0 : i32, i32, i32
  }
  func.func @transform_3(%arg0: i32, %arg1: i32) -> (i32, i32, i32) {
    %c0_i32 = arith.constant 0 : i32
    %c0_i32_0 = arith.constant 0 : i32
    %c0_i32_1 = arith.constant 0 : i32
    return %arg0, %c0_i32, %c0_i32_0 : i32, i32, i32
  }
  func.func @transform_4(%arg0: i32, %arg1: i32) -> (i32, i32, i32) {
    %c0_i32 = arith.constant 0 : i32
    %c0_i32_0 = arith.constant 0 : i32
    %c0_i32_1 = arith.constant 0 : i32
    return %arg0, %c0_i32, %c0_i32_0 : i32, i32, i32
  }
  func.func @transform_5(%arg0: i32, %arg1: i32) -> (i32, i32, i32) {
    %c0_i32 = arith.constant 0 : i32
    %c0_i32_0 = arith.constant 0 : i32
    %c0_i32_1 = arith.constant 0 : i32
    return %arg0, %c0_i32, %c0_i32_0 : i32, i32, i32
  }
  func.func @transform_6(%arg0: i32, %arg1: i32) -> (i32, i32) {
    %c0_i32 = arith.constant 0 : i32
    %c0_i32_0 = arith.constant 0 : i32
    %c0_i32_1 = arith.constant 0 : i32
    return %c0_i32, %c0_i32_0 : i32, i32
  }
  func.func @transform_7(%arg0: i32, %arg1: i32) -> (i32, i32) {
    %c0_i32 = arith.constant 0 : i32
    %c0_i32_0 = arith.constant 0 : i32
    %c0_i32_1 = arith.constant 0 : i32
    return %c0_i32, %c0_i32_0 : i32, i32
  }
  func.func @transform_8(%arg0: i32, %arg1: i32) -> (i32, i32) {
    %c0_i32 = arith.constant 0 : i32
    %c0_i32_0 = arith.constant 0 : i32
    %c0_i32_1 = arith.constant 0 : i32
    return %c0_i32, %c0_i32_0 : i32, i32
  }
  func.func @transform_9(%arg0: i32, %arg1: i32) -> (i32, i32) {
    %c0_i32 = arith.constant 0 : i32
    %c0_i32_0 = arith.constant 0 : i32
    %c0_i32_1 = arith.constant 0 : i32
    return %c0_i32, %c0_i32_0 : i32, i32
  }
  func.func @transform_10(%arg0: i32, %arg1: i32) -> (i32, i32) {
    %c0_i32 = arith.constant 0 : i32
    %c0_i32_0 = arith.constant 0 : i32
    %c0_i32_1 = arith.constant 0 : i32
    return %c0_i32, %c0_i32_0 : i32, i32
  }
  func.func @transform_11(%arg0: i32, %arg1: i32) -> (i32, i32, i32) {
    %c0_i32 = arith.constant 0 : i32
    %c0_i32_0 = arith.constant 0 : i32
    return %arg0, %arg1, %c0_i32 : i32, i32, i32
  }
  func.func @transform_12(%arg0: i32, %arg1: i32) -> (i32, i32, i32) {
    %c0_i32 = arith.constant 0 : i32
    %c0_i32_0 = arith.constant 0 : i32
    return %arg0, %c0_i32, %arg1 : i32, i32, i32
  }
}

</mosaic_0001>

<llo_original>
// kernel: tpu_custom_call.1
$region0: #{tpu_custom_call.1}
  #allocation0 [shape = 'u32[]', space=smem, size = 0x4, offset = 0x4, fixed_abs, tag = 'smem constant byte address 0x4 - core index']
  #allocation1 [shape = 'u32[144,128]{1,0:T(1,128)}', space=vmem, size = 0x12000, scoped, tag = 'internal scratch']
  %s0 = inlined_call_operand.vmem [shape: f32[2,8,32], index: 0, kind: input, shape index: {}]
  %s1 = inlined_call_operand.vmem [shape: f32[2,16,8], index: 1, kind: input, shape index: {}]
  %s2 = inlined_call_operand.vmem [shape: f32[2,16,32], index: 2, kind: input, shape index: {}]
  %s3 = inlined_call_operand.vmem [shape: f32[2,16,32], index: 3, kind: input, shape index: {}]
  %s4 = inlined_call_operand.vmem [shape: f32[2,8,32], index: 4, kind: input, shape index: {}]
  %s5 = inlined_call_operand.vmem [shape: f32[2,8,32], index: 5, kind: input, shape index: {}]
  %s6 = inlined_call_operand.vmem [shape: f32[16,32], index: 6, kind: input, shape index: {}]
  %s7 = inlined_call_operand.vmem [shape: f32[1,32], index: 7, kind: input, shape index: {}]
  %s8 = inlined_call_operand.vmem [shape: f32[32,16], index: 8, kind: input, shape index: {}]
  %s9 = inlined_call_operand.vmem [shape: f32[32,16], index: 9, kind: input, shape index: {}]
  %s10 = inlined_call_operand.vmem [shape: f32[1,16], index: 10, kind: input, shape index: {}]
  %s11 = inlined_call_operand.hbm [shape: f32[2,8,8], index: 11, kind: output, shape index: {0}]
  %s12 = inlined_call_operand.vmem [shape: f32[2,16,8], index: 12, kind: output, shape index: {1}]
  %13 = xla_tuple %s11, %s12
  %s14 = sld [smem:[#allocation0]]
  $region85: #{tpu_custom_call.1} parent=0
    _
  %s16 = ssub.s32 1, %s14
  %s17 = scalar_select 0, %s16, %s14
  $region1: #{tpu_custom_call.1} parent=0
    #allocation2 [shape = 'u8[8192]{0}', space=vmem, size = 0x2000, scoped, tag = 'output window, operand 0']
    #allocation3 [shape = 's32[2]{0}', space=sflag, size = 0x8, scoped, tag = 'scoped memory for tpu_custom_call.1']
    %18 = vsyncpa [#allocation3], 0
    %s19 = scalar_lea.sflag [#allocation3], 1
    %20 = vsyncpa %s19, 0
    loop: start=0, step=1, limit=4
    $region2: #{tpu_custom_call.1} parent=1 // loop_pre_header
      _
    $region3: #{tpu_custom_call.1} parent=1 // loop_header
      %s22 = sphi 0, %s26
      %p23 = scmp.ge.s32.totalorder %s22, 4
      %s29 = sphi 0, %s41
      %s30 = sphi 0, %s37
      %s31 = sphi 0, %s29
      %s32 = sphi 0, %s30
      %s33 = sphi 0, %s31
      %s34 = sphi 0, %s32
      %s46 = sphi 0, %s48
      %s49 = sphi 0, %s46
      %s50 = sphi 0, %s49
      %s66 = sphi 0, %s50
      %s74 = sphi 0, %s76
      %s77 = sphi 0, %s74
      %s78 = sphi 0, %s77
      %s94 = sphi 0, %s78
      %s100 = sphi 0, %s102
      %s103 = sphi 0, %s100
      %s104 = sphi 0, %s103
      %s120 = sphi 0, %s104
      %s126 = sphi 0, %s128
      %s129 = sphi 0, %s126
      %s130 = sphi 0, %s129
      %s146 = sphi 0, %s130
      %s152 = sphi 0, %s154
      %s155 = sphi 0, %s152
      %s156 = sphi 0, %s155
      %s172 = sphi 0, %s156
      %s178 = sphi 0, %s180
      %s181 = sphi 0, %s178
      %s182 = sphi 0, %s181
      %s198 = sphi 0, %s182
      %s202 = sphi 0, %s202
      %s204 = sphi 0, %s202
      %s205 = sphi 0, %s204
      %s219 = sphi 0, %s205
      %s223 = sphi 0, %s223
      %s225 = sphi 0, %s223
      %s226 = sphi 0, %s225
      %s240 = sphi 0, %s226
      %s244 = sphi 0, %s244
      %s246 = sphi 0, %s244
      %s247 = sphi 0, %s246
      %s261 = sphi 0, %s247
      %s265 = sphi 0, %s265
      %s267 = sphi 0, %s265
      %s268 = sphi 0, %s267
      %s282 = sphi 0, %s268
      %s286 = sphi 0, %s286
      %s288 = sphi 0, %s286
      %s289 = sphi 0, %s288
      %s303 = sphi 0, %s289
      %s311 = sphi 0, %s313
      %s314 = sphi 0, %s311
      %s315 = sphi 0, %s314
      %s331 = sphi 0, %s315
      %s339 = sphi 0, %s341
      %s342 = sphi 0, %s339
      %s343 = sphi 0, %s342
      %s359 = sphi 0, %s343
    $region4: #{tpu_custom_call.1} parent=1 // loop_header_branch
      %25 = sbr.rel (%p23) target = $region8
    $region5: #{tpu_custom_call.1} parent=1 // loop_body
      %s27 = ssub.s32 %s22, 1
      %s28 = ssub.s32 %s22, 2
      %s35 = sadd.s32 1, %s30
      %p36 = scmp.ge.s32.totalorder %s35, 1
      %s37 = scalar_select %p36, 0, %s35
      %s38 = sadd.s32 1, %s29
      %s39 = scalar_select %p36, %s38, %s29
      %p40 = scmp.ge.s32.totalorder %s39, 2
      %s41 = scalar_select %p40, 0, %s39
      %s42 = ssub.s32 %s29, %s41
      %s43 = ssub.s32 %s30, %s37
      %s44 = sor.u32 %s42, %s43
      %p45 = scmp.eq.s32.totalorder %s44, 0
      %s47 = sadd.s32 %s46, 1
      %s48 = scalar_select %p45, %s46, %s47
      %p51 = pneg %p45
      %p52 = scmp.eq.s32.totalorder %s22, 1
      %p53 = por %p51, %p52
      %p54 = scmp.ne.s32.totalorder %s46, %s49
      %p55 = scmp.eq.s32.totalorder %s22, 0
      %p56 = por %p54, %p55
      %p57 = scmp.ne.s32.totalorder %s46, %s49
      %p58 = scmp.eq.s32.totalorder %s27, 1
      %p59 = por %p57, %p58
      %p60 = scmp.ne.s32.totalorder %s49, %s50
      %p61 = scmp.eq.s32.totalorder %s27, 0
      %p62 = por %p60, %p61
      %p63 = scmp.ne.s32.totalorder %s49, %s50
      %p64 = scmp.eq.s32.totalorder %s28, 1
      %p65 = por %p63, %p64
      %p67 = scmp.ne.s32.totalorder %s50, %s66
      %p68 = scmp.eq.s32.totalorder %s28, 0
      %p69 = por %p67, %p68
      %s70 = ssub.s32 %s29, %s41
      %s71 = ssub.s32 %s30, %s37
      %s72 = sor.u32 %s70, %s71
      %p73 = scmp.eq.s32.totalorder %s72, 0
      %s75 = sadd.s32 %s74, 1
      %s76 = scalar_select %p73, %s74, %s75
      %p79 = pneg %p73
      %p80 = scmp.eq.s32.totalorder %s22, 1
      %p81 = por %p79, %p80
      %p82 = scmp.ne.s32.totalorder %s74, %s77
      %p83 = scmp.eq.s32.totalorder %s22, 0
      %p84 = por %p82, %p83
      %p85 = scmp.ne.s32.totalorder %s74, %s77
      %p86 = scmp.eq.s32.totalorder %s27, 1
      %p87 = por %p85, %p86
      %p88 = scmp.ne.s32.totalorder %s77, %s78
      %p89 = scmp.eq.s32.totalorder %s27, 0
      %p90 = por %p88, %p89
      %p91 = scmp.ne.s32.totalorder %s77, %s78
      %p92 = scmp.eq.s32.totalorder %s28, 1
      %p93 = por %p91, %p92
      %p95 = scmp.ne.s32.totalorder %s78, %s94
      %p96 = scmp.eq.s32.totalorder %s28, 0
      %p97 = por %p95, %p96
      %s98 = ssub.s32 %s29, %s41
      %p99 = scmp.eq.s32.totalorder %s98, 0
      %s101 = sadd.s32 %s100, 1
      %s102 = scalar_select %p99, %s100, %s101
      %p105 = pneg %p99
      %p106 = scmp.eq.s32.totalorder %s22, 1
      %p107 = por %p105, %p106
      %p108 = scmp.ne.s32.totalorder %s100, %s103
      %p109 = scmp.eq.s32.totalorder %s22, 0
      %p110 = por %p108, %p109
      %p111 = scmp.ne.s32.totalorder %s100, %s103
      %p112 = scmp.eq.s32.totalorder %s27, 1
      %p113 = por %p111, %p112
      %p114 = scmp.ne.s32.totalorder %s103, %s104
      %p115 = scmp.eq.s32.totalorder %s27, 0
      %p116 = por %p114, %p115
      %p117 = scmp.ne.s32.totalorder %s103, %s104
      %p118 = scmp.eq.s32.totalorder %s28, 1
      %p119 = por %p117, %p118
      %p121 = scmp.ne.s32.totalorder %s104, %s120
      %p122 = scmp.eq.s32.totalorder %s28, 0
      %p123 = por %p121, %p122
      %s124 = ssub.s32 %s29, %s41
      %p125 = scmp.eq.s32.totalorder %s124, 0
      %s127 = sadd.s32 %s126, 1
      %s128 = scalar_select %p125, %s126, %s127
      %p131 = pneg %p125
      %p132 = scmp.eq.s32.totalorder %s22, 1
      %p133 = por %p131, %p132
      %p134 = scmp.ne.s32.totalorder %s126, %s129
      %p135 = scmp.eq.s32.totalorder %s22, 0
      %p136 = por %p134, %p135
      %p137 = scmp.ne.s32.totalorder %s126, %s129
      %p138 = scmp.eq.s32.totalorder %s27, 1
      %p139 = por %p137, %p138
      %p140 = scmp.ne.s32.totalorder %s129, %s130
      %p141 = scmp.eq.s32.totalorder %s27, 0
      %p142 = por %p140, %p141
      %p143 = scmp.ne.s32.totalorder %s129, %s130
      %p144 = scmp.eq.s32.totalorder %s28, 1
      %p145 = por %p143, %p144
      %p147 = scmp.ne.s32.totalorder %s130, %s146
      %p148 = scmp.eq.s32.totalorder %s28, 0
      %p149 = por %p147, %p148
      %s150 = ssub.s32 %s29, %s41
      %p151 = scmp.eq.s32.totalorder %s150, 0
      %s153 = sadd.s32 %s152, 1
      %s154 = scalar_select %p151, %s152, %s153
      %p157 = pneg %p151
      %p158 = scmp.eq.s32.totalorder %s22, 1
      %p159 = por %p157, %p158
      %p160 = scmp.ne.s32.totalorder %s152, %s155
      %p161 = scmp.eq.s32.totalorder %s22, 0
      %p162 = por %p160, %p161
      %p163 = scmp.ne.s32.totalorder %s152, %s155
      %p164 = scmp.eq.s32.totalorder %s27, 1
      %p165 = por %p163, %p164
      %p166 = scmp.ne.s32.totalorder %s155, %s156
      %p167 = scmp.eq.s32.totalorder %s27, 0
      %p168 = por %p166, %p167
      %p169 = scmp.ne.s32.totalorder %s155, %s156
      %p170 = scmp.eq.s32.totalorder %s28, 1
      %p171 = por %p169, %p170
      %p173 = scmp.ne.s32.totalorder %s156, %s172
      %p174 = scmp.eq.s32.totalorder %s28, 0
      %p175 = por %p173, %p174
      %s176 = ssub.s32 %s29, %s41
      %p177 = scmp.eq.s32.totalorder %s176, 0
      %s179 = sadd.s32 %s178, 1
      %s180 = scalar_select %p177, %s178, %s179
      %p183 = pneg %p177
      %p184 = scmp.eq.s32.totalorder %s22, 1
      %p185 = por %p183, %p184
      %p186 = scmp.ne.s32.totalorder %s178, %s181
      %p187 = scmp.eq.s32.totalorder %s22, 0
      %p188 = por %p186, %p187
      %p189 = scmp.ne.s32.totalorder %s178, %s181
      %p190 = scmp.eq.s32.totalorder %s27, 1
      %p191 = por %p189, %p190
      %p192 = scmp.ne.s32.totalorder %s181, %s182
      %p193 = scmp.eq.s32.totalorder %s27, 0
      %p194 = por %p192, %p193
      %p195 = scmp.ne.s32.totalorder %s181, %s182
      %p196 = scmp.eq.s32.totalorder %s28, 1
      %p197 = por %p195, %p196
      %p199 = scmp.ne.s32.totalorder %s182, %s198
      %p200 = scmp.eq.s32.totalorder %s28, 0
      %p201 = por %p199, %p200
      %s203 = sadd.s32 %s202, 1
      %p206 = scmp.eq.s32.totalorder %s22, 1
      %p207 = scmp.ne.s32.totalorder %s202, %s204
      %p208 = scmp.eq.s32.totalorder %s22, 0
      %p209 = por %p207, %p208
      %p210 = scmp.ne.s32.totalorder %s202, %s204
      %p211 = scmp.eq.s32.totalorder %s27, 1
      %p212 = por %p210, %p211
      %p213 = scmp.ne.s32.totalorder %s204, %s205
      %p214 = scmp.eq.s32.totalorder %s27, 0
      %p215 = por %p213, %p214
      %p216 = scmp.ne.s32.totalorder %s204, %s205
      %p217 = scmp.eq.s32.totalorder %s28, 1
      %p218 = por %p216, %p217
      %p220 = scmp.ne.s32.totalorder %s205, %s219
      %p221 = scmp.eq.s32.totalorder %s28, 0
      %p222 = por %p220, %p221
      %s224 = sadd.s32 %s223, 1
      %p227 = scmp.eq.s32.totalorder %s22, 1
      %p228 = scmp.ne.s32.totalorder %s223, %s225
      %p229 = scmp.eq.s32.totalorder %s22, 0
      %p230 = por %p228, %p229
      %p231 = scmp.ne.s32.totalorder %s223, %s225
      %p232 = scmp.eq.s32.totalorder %s27, 1
      %p233 = por %p231, %p232
      %p234 = scmp.ne.s32.totalorder %s225, %s226
      %p235 = scmp.eq.s32.totalorder %s27, 0
      %p236 = por %p234, %p235
      %p237 = scmp.ne.s32.totalorder %s225, %s226
      %p238 = scmp.eq.s32.totalorder %s28, 1
      %p239 = por %p237, %p238
      %p241 = scmp.ne.s32.totalorder %s226, %s240
      %p242 = scmp.eq.s32.totalorder %s28, 0
      %p243 = por %p241, %p242
      %s245 = sadd.s32 %s244, 1
      %p248 = scmp.eq.s32.totalorder %s22, 1
      %p249 = scmp.ne.s32.totalorder %s244, %s246
      %p250 = scmp.eq.s32.totalorder %s22, 0
      %p251 = por %p249, %p250
      %p252 = scmp.ne.s32.totalorder %s244, %s246
      %p253 = scmp.eq.s32.totalorder %s27, 1
      %p254 = por %p252, %p253
      %p255 = scmp.ne.s32.totalorder %s246, %s247
      %p256 = scmp.eq.s32.totalorder %s27, 0
      %p257 = por %p255, %p256
      %p258 = scmp.ne.s32.totalorder %s246, %s247
      %p259 = scmp.eq.s32.totalorder %s28, 1
      %p260 = por %p258, %p259
      %p262 = scmp.ne.s32.totalorder %s247, %s261
      %p263 = scmp.eq.s32.totalorder %s28, 0
      %p264 = por %p262, %p263
      %s266 = sadd.s32 %s265, 1
      %p269 = scmp.eq.s32.totalorder %s22, 1
      %p270 = scmp.ne.s32.totalorder %s265, %s267
      %p271 = scmp.eq.s32.totalorder %s22, 0
      %p272 = por %p270, %p271
      %p273 = scmp.ne.s32.totalorder %s265, %s267
      %p274 = scmp.eq.s32.totalorder %s27, 1
      %p275 = por %p273, %p274
      %p276 = scmp.ne.s32.totalorder %s267, %s268
      %p277 = scmp.eq.s32.totalorder %s27, 0
      %p278 = por %p276, %p277
      %p279 = scmp.ne.s32.totalorder %s267, %s268
      %p280 = scmp.eq.s32.totalorder %s28, 1
      %p281 = por %p279, %p280
      %p283 = scmp.ne.s32.totalorder %s268, %s282
      %p284 = scmp.eq.s32.totalorder %s28, 0
      %p285 = por %p283, %p284
      %s287 = sadd.s32 %s286, 1
      %p290 = scmp.eq.s32.totalorder %s22, 1
      %p291 = scmp.ne.s32.totalorder %s286, %s288
      %p292 = scmp.eq.s32.totalorder %s22, 0
      %p293 = por %p291, %p292
      %p294 = scmp.ne.s32.totalorder %s286, %s288
      %p295 = scmp.eq.s32.totalorder %s27, 1
      %p296 = por %p294, %p295
      %p297 = scmp.ne.s32.totalorder %s288, %s289
      %p298 = scmp.eq.s32.totalorder %s27, 0
      %p299 = por %p297, %p298
      %p300 = scmp.ne.s32.totalorder %s288, %s289
      %p301 = scmp.eq.s32.totalorder %s28, 1
      %p302 = por %p300, %p301
      %p304 = scmp.ne.s32.totalorder %s289, %s303
      %p305 = scmp.eq.s32.totalorder %s28, 0
      %p306 = por %p304, %p305
      %s307 = ssub.s32 %s29, %s41
      %s308 = ssub.s32 %s30, %s37
      %s309 = sor.u32 %s307, %s308
      %p310 = scmp.eq.s32.totalorder %s309, 0
      %s312 = sadd.s32 %s311, 1
      %s313 = scalar_select %p310, %s311, %s312
      %p316 = pneg %p310
      %p317 = scmp.eq.s32.totalorder %s22, 1
      %p318 = por %p316, %p317
      %p319 = scmp.ne.s32.totalorder %s311, %s314
      %p320 = scmp.eq.s32.totalorder %s22, 0
      %p321 = por %p319, %p320
      %p322 = scmp.ne.s32.totalorder %s311, %s314
      %p323 = scmp.eq.s32.totalorder %s27, 1
      %p324 = por %p322, %p323
      %p325 = scmp.ne.s32.totalorder %s314, %s315
      %p326 = scmp.eq.s32.totalorder %s27, 0
      %p327 = por %p325, %p326
      %p328 = scmp.ne.s32.totalorder %s314, %s315
      %p329 = scmp.eq.s32.totalorder %s28, 1
      %p330 = por %p328, %p329
      %p332 = scmp.ne.s32.totalorder %s315, %s331
      %p333 = scmp.eq.s32.totalorder %s28, 0
      %p334 = por %p332, %p333
      %s335 = ssub.s32 %s29, %s41
      %s336 = ssub.s32 %s30, %s37
      %s337 = sor.u32 %s335, %s336
      %p338 = scmp.eq.s32.totalorder %s337, 0
      %s340 = sadd.s32 %s339, 1
      %s341 = scalar_select %p338, %s339, %s340
      %p344 = pneg %p338
      %p345 = scmp.eq.s32.totalorder %s22, 1
      %p346 = por %p344, %p345
      %p347 = scmp.ne.s32.totalorder %s339, %s342
      %p348 = scmp.eq.s32.totalorder %s22, 0
      %p349 = por %p347, %p348
      %p350 = scmp.ne.s32.totalorder %s339, %s342
      %p351 = scmp.eq.s32.totalorder %s27, 1
      %p352 = por %p350, %p351
      %p353 = scmp.ne.s32.totalorder %s342, %s343
      %p354 = scmp.eq.s32.totalorder %s27, 0
      %p355 = por %p353, %p354
      %p356 = scmp.ne.s32.totalorder %s342, %s343
      %p357 = scmp.eq.s32.totalorder %s28, 1
      %p358 = por %p356, %p357
      %p360 = scmp.ne.s32.totalorder %s343, %s359
      %p361 = scmp.eq.s32.totalorder %s28, 0
      %p362 = por %p360, %p361
      %p363 = scmp.le.s32.totalorder 1, %s22
      %p364 = scmp.lt.s32.totalorder %s22, 3
      %p365 = pnand %p363, %p364
      %p366 = pneg %p365
      // Predicated region
      $region9: #{tpu_custom_call.1} parent=5 // pred_check
        _
      $region10: #{tpu_custom_call.1} parent=5 // pred_check_branch
        %368 = sbr.rel (%p365) target = $region12
      $region11: #{tpu_custom_call.1} parent=5 // pred_region
        %s369 = ssub.s32 %s22, 1
        // Predicated region
        $region13: #{tpu_custom_call.1} parent=11 // pred_check
          %p370 = pneg %p116
        $region14: #{tpu_custom_call.1} parent=11 // pred_check_branch
          %372 = sbr.rel (%p370) target = $region16
        $region15: #{tpu_custom_call.1} parent=11 // pred_region
          %p373 = scmp.lt.s32.totalorder %s31, 1
          %s374 = scalar_select %p373, %s31, 1
          %s375 = smul.addr %s374, 2
          %s376 = smul.addr %s375, 8
          %s377 = scalar_lea.vmem %s2, %s376
        $region16: #{tpu_custom_call.1} parent=11 // pred_fallthru
          _
        // Predicated region
        $region17: #{tpu_custom_call.1} parent=11 // pred_check
          %p378 = pneg %p142
        $region18: #{tpu_custom_call.1} parent=11 // pred_check_branch
          %380 = sbr.rel (%p378) target = $region20
        $region19: #{tpu_custom_call.1} parent=11 // pred_region
          %p381 = scmp.lt.s32.totalorder %s31, 1
          %s382 = scalar_select %p381, %s31, 1
          %s383 = smul.addr %s382, 2
          %s384 = smul.addr %s383, 8
          %s385 = scalar_lea.vmem %s3, %s384
        $region20: #{tpu_custom_call.1} parent=11 // pred_fallthru
          _
        // Predicated region
        $region21: #{tpu_custom_call.1} parent=11 // pred_check
          %p386 = pneg %p168
        $region22: #{tpu_custom_call.1} parent=11 // pred_check_branch
          %388 = sbr.rel (%p386) target = $region24
        $region23: #{tpu_custom_call.1} parent=11 // pred_region
          %p389 = scmp.lt.s32.totalorder %s31, 1
          %s390 = scalar_select %p389, %s31, 1
          %s391 = smul.addr %s390, 8
          %s392 = scalar_lea.vmem %s4, %s391
        $region24: #{tpu_custom_call.1} parent=11 // pred_fallthru
          _
        // Predicated region
        $region25: #{tpu_custom_call.1} parent=11 // pred_check
          %p393 = pneg %p194
        $region26: #{tpu_custom_call.1} parent=11 // pred_check_branch
          %395 = sbr.rel (%p393) target = $region28
        $region27: #{tpu_custom_call.1} parent=11 // pred_region
          %p396 = scmp.lt.s32.totalorder %s31, 1
          %s397 = scalar_select %p396, %s31, 1
          %s398 = smul.addr %s397, 8
          %s399 = scalar_lea.vmem %s5, %s398
        $region28: #{tpu_custom_call.1} parent=11 // pred_fallthru
          _
        // Predicated region
        $region29: #{tpu_custom_call.1} parent=11 // pred_check
          %p400 = pneg %p215
        $region30: #{tpu_custom_call.1} parent=11 // pred_check_branch
          %402 = sbr.rel (%p400) target = $region32
        $region31: #{tpu_custom_call.1} parent=11 // pred_region
          _
        $region32: #{tpu_custom_call.1} parent=11 // pred_fallthru
          _
        // Predicated region
        $region33: #{tpu_custom_call.1} parent=11 // pred_check
          %p403 = pneg %p236
        $region34: #{tpu_custom_call.1} parent=11 // pred_check_branch
          %405 = sbr.rel (%p403) target = $region36
        $region35: #{tpu_custom_call.1} parent=11 // pred_region
          _
        $region36: #{tpu_custom_call.1} parent=11 // pred_fallthru
          _
        // Predicated region
        $region37: #{tpu_custom_call.1} parent=11 // pred_check
          %p406 = pneg %p257
        $region38: #{tpu_custom_call.1} parent=11 // pred_check_branch
          %408 = sbr.rel (%p406) target = $region40
        $region39: #{tpu_custom_call.1} parent=11 // pred_region
          _
        $region40: #{tpu_custom_call.1} parent=11 // pred_fallthru
          _
        // Predicated region
        $region41: #{tpu_custom_call.1} parent=11 // pred_check
          %p409 = pneg %p278
        $region42: #{tpu_custom_call.1} parent=11 // pred_check_branch
          %411 = sbr.rel (%p409) target = $region44
        $region43: #{tpu_custom_call.1} parent=11 // pred_region
          _
        $region44: #{tpu_custom_call.1} parent=11 // pred_fallthru
          _
        // Predicated region
        $region45: #{tpu_custom_call.1} parent=11 // pred_check
          %p412 = pneg %p299
        $region46: #{tpu_custom_call.1} parent=11 // pred_check_branch
          %414 = sbr.rel (%p412) target = $region48
        $region47: #{tpu_custom_call.1} parent=11 // pred_region
          _
        $region48: #{tpu_custom_call.1} parent=11 // pred_fallthru
          _
      $region12: #{tpu_custom_call.1} parent=5 // pred_fallthru
        _
      %p415 = scmp.lt.s32.totalorder %s22, 2
      // Predicated region
      $region49: #{tpu_custom_call.1} parent=5 // pred_check
        %p416 = pneg %p415
      $region50: #{tpu_custom_call.1} parent=5 // pred_check_branch
        %418 = sbr.rel (%p416) target = $region52
      $region51: #{tpu_custom_call.1} parent=5 // pred_region
        // Predicated region
        $region53: #{tpu_custom_call.1} parent=51 // pred_check
          %p419 = pneg %p56
        $region54: #{tpu_custom_call.1} parent=51 // pred_check_branch
          %421 = sbr.rel (%p419) target = $region56
        $region55: #{tpu_custom_call.1} parent=51 // pred_region
          %p422 = scmp.lt.s32.totalorder %s29, 1
          %s423 = scalar_select %p422, %s29, 1
          %p424 = scmp.lt.s32.totalorder %s30, 0
          %s425 = scalar_select %p424, %s30, 0
          %s426 = sadd.s32 %s425, %s423
          %s427 = smul.addr %s426, 8
          %s428 = scalar_lea.vmem %s0, %s427
        $region56: #{tpu_custom_call.1} parent=51 // pred_fallthru
          _
        // Predicated region
        $region57: #{tpu_custom_call.1} parent=51 // pred_check
          %p429 = pneg %p84
        $region58: #{tpu_custom_call.1} parent=51 // pred_check_branch
          %431 = sbr.rel (%p429) target = $region60
        $region59: #{tpu_custom_call.1} parent=51 // pred_region
          %p432 = scmp.lt.s32.totalorder %s29, 1
          %s433 = scalar_select %p432, %s29, 1
          %p434 = scmp.lt.s32.totalorder %s30, 0
          %s435 = scalar_select %p434, %s30, 0
          %s436 = smul.addr %s433, 2
          %s437 = sadd.s32 %s435, %s436
          %s438 = smul.addr %s437, 8
          %s439 = scalar_lea.vmem %s1, %s438
        $region60: #{tpu_custom_call.1} parent=51 // pred_fallthru
          _
      $region52: #{tpu_custom_call.1} parent=5 // pred_fallthru
        _
      %p440 = scmp.le.s32.totalorder 1, %s22
      %p441 = scmp.lt.s32.totalorder %s22, 3
      %p442 = pnand %p440, %p441
      %p443 = pneg %p442
      // Predicated region
      $region61: #{tpu_custom_call.1} parent=5 // pred_check
        _
      $region62: #{tpu_custom_call.1} parent=5 // pred_check_branch
        %445 = sbr.rel (%p442) target = $region64
      $region63: #{tpu_custom_call.1} parent=5 // pred_region
        %s446 = ssub.s32 %s22, 1
        %p447 = scmp.lt.s32.totalorder %s31, 1
        %s448 = scalar_select %p447, %s31, 1
        %p449 = scmp.lt.s32.totalorder %s32, 0
        %s450 = scalar_select %p449, %s32, 0
        %s451 = sadd.s32 %s450, %s448
        %s452 = smul.addr %s451, 8
        %s453 = scalar_lea.vmem %s0, %s452
        %p454 = pneg %p62
        %p455 = pneg %p59
        %p456 = scmp.lt.s32.totalorder %s31, 1
        %s457 = scalar_select %p456, %s31, 1
        %p458 = scmp.lt.s32.totalorder %s32, 0
        %s459 = scalar_select %p458, %s32, 0
        %s460 = smul.addr %s457, 2
        %s461 = sadd.s32 %s459, %s460
        %s462 = smul.addr %s461, 8
        %s463 = scalar_lea.vmem %s1, %s462
        %p464 = pneg %p90
        %p465 = pneg %p87
        %p466 = scmp.lt.s32.totalorder %s31, 1
        %s467 = scalar_select %p466, %s31, 1
        %s468 = smul.addr %s467, 2
        %s469 = smul.addr %s468, 8
        %s470 = scalar_lea.vmem %s2, %s469
        %p471 = pneg %p116
        %p472 = pneg %p113
        %p473 = scmp.lt.s32.totalorder %s31, 1
        %s474 = scalar_select %p473, %s31, 1
        %s475 = smul.addr %s474, 2
        %s476 = smul.addr %s475, 8
        %s477 = scalar_lea.vmem %s3, %s476
        %p478 = pneg %p142
        %p479 = pneg %p139
        %p480 = scmp.lt.s32.totalorder %s31, 1
        %s481 = scalar_select %p480, %s31, 1
        %s482 = smul.addr %s481, 8
        %s483 = scalar_lea.vmem %s4, %s482
        %p484 = pneg %p168
        %p485 = pneg %p165
        %p486 = scmp.lt.s32.totalorder %s31, 1
        %s487 = scalar_select %p486, %s31, 1
        %s488 = smul.addr %s487, 8
        %s489 = scalar_lea.vmem %s5, %s488
        %p490 = pneg %p194
        %p491 = pneg %p191
        %p492 = pneg %p215
        %p493 = pneg %p212
        %p494 = pneg %p236
        %p495 = pneg %p233
        %p496 = pneg %p257
        %p497 = pneg %p254
        %p498 = pneg %p278
        %p499 = pneg %p275
        %p500 = pneg %p299
        %p501 = pneg %p296
        %p502 = pneg %p327
        %p503 = pneg %p324
        %s504 = sand.u32 %s314, 1
        %s505 = scalar_lea.sflag [#allocation3], %s504
        %s506 = sand.u32 %s314, 1
        %s507 = smul.addr %s506, 8
        %s508 = scalar_lea.vmem [#allocation2], %s507
        %p509 = pneg %p355
        %p510 = pneg %p352
        %p511 = scmp.lt.s32.totalorder %s31, 1
        %s512 = scalar_select %p511, %s31, 1
        %p513 = scmp.lt.s32.totalorder %s32, 0
        %s514 = scalar_select %p513, %s32, 0
        %s515 = smul.addr %s512, 2
        %s516 = sadd.s32 %s514, %s515
        %s517 = smul.addr %s516, 8
        %s518 = scalar_lea.vmem %s12, %s517
        %p519 = scmp.lt.s32.totalorder %s31, 1
        %s520 = scalar_select %p519, %s31, 1
        %p521 = scmp.lt.s32.totalorder %s32, 0
        %s522 = scalar_select %p521, %s32, 0
        %s523 = sadd.s32 %s522, %s520
        %s524 = smul.addr %s523, 8
        %s525 = scalar_lea.vmem %s0, %s524
        %p526 = scmp.lt.s32.totalorder %s31, 1
        %s527 = scalar_select %p526, %s31, 1
        %p528 = scmp.lt.s32.totalorder %s32, 0
        %s529 = scalar_select %p528, %s32, 0
        %s530 = smul.addr %s527, 2
        %s531 = sadd.s32 %s529, %s530
        %s532 = smul.addr %s531, 8
        %s533 = scalar_lea.vmem %s1, %s532
        %p534 = scmp.lt.s32.totalorder %s31, 1
        %s535 = scalar_select %p534, %s31, 1
        %s536 = smul.addr %s535, 2
        %s537 = smul.addr %s536, 8
        %s538 = scalar_lea.vmem %s2, %s537
        %p539 = scmp.lt.s32.totalorder %s31, 1
        %s540 = scalar_select %p539, %s31, 1
        %s541 = smul.addr %s540, 2
        %s542 = smul.addr %s541, 8
        %s543 = scalar_lea.vmem %s3, %s542
        %p544 = scmp.lt.s32.totalorder %s31, 1
        %s545 = scalar_select %p544, %s31, 1
        %s546 = smul.addr %s545, 8
        %s547 = scalar_lea.vmem %s4, %s546
        %p548 = scmp.lt.s32.totalorder %s31, 1
        %s549 = scalar_select %p548, %s31, 1
        %s550 = smul.addr %s549, 8
        %s551 = scalar_lea.vmem %s5, %s550
        %p552 = scmp.lt.s32.totalorder %s31, 1
        %s553 = scalar_select %p552, %s31, 1
        %p554 = scmp.lt.s32.totalorder %s32, 0
        %s555 = scalar_select %p554, %s32, 0
        %s556 = smul.addr %s553, 2
        %s557 = sadd.s32 %s555, %s556
        %s558 = smul.addr %s557, 8
        %s559 = scalar_lea.vmem %s12, %s558
        %v560 = vld [vmem:[%s525] sm:$0xff]
        %v561 = vld [vmem:[%s533] sm:$0xff]
        %v562 = vld [vmem:[%s533 + $0x8] sm:$0xff]
        %v563 = vld [vmem:[%s6] sm:$0xff]
        %v564 = vld [vmem:[%s6 + $0x8] sm:$0xff]
        %v565 = vld [vmem:[%s7] sm:$0x1]
        %v567 = vlaneseq
        %v568 = vshrl.u32 %v567, 7
        %v569 = vsub.s32 0, %v568
        %v570 = vrot.slane %v565, %v569
        %572 = vxpose.xlu0.b32.start [1/16] %v561, 128
        %573 = vxpose.xlu0.b32.cont [2/16] %v562, 128
        %574 = vxpose.xlu0.b32.cont [3/16] 0.0, 128
        %575 = vxpose.xlu0.b32.cont [4/16] 0.0, 128
        %576 = vxpose.xlu0.b32.cont [5/16] 0.0, 128
        %577 = vxpose.xlu0.b32.cont [6/16] 0.0, 128
        %578 = vxpose.xlu0.b32.cont [7/16] 0.0, 128
        %579 = vxpose.xlu0.b32.cont [8/16] 0.0, 128
        %580 = vxpose.xlu0.b32.cont [9/16] 0.0, 128
        %581 = vxpose.xlu0.b32.cont [10/16] 0.0, 128
        %582 = vxpose.xlu0.b32.cont [11/16] 0.0, 128
        %583 = vxpose.xlu0.b32.cont [12/16] 0.0, 128
        %584 = vxpose.xlu0.b32.cont [13/16] 0.0, 128
        %585 = vxpose.xlu0.b32.cont [14/16] 0.0, 128
        %586 = vxpose.xlu0.b32.cont [15/16] 0.0, 128
        %587 = vxpose.xlu0.b32.end [16/16] 0.0, 128
        %v588 = vpop.trf.xlu0
        %v589 = vpop.trf.xlu0
        %v590 = vpop.trf.xlu0
        %v591 = vpop.trf.xlu0
        %v592 = vpop.trf.xlu0
        %v593 = vpop.trf.xlu0
        %v594 = vpop.trf.xlu0
        %v595 = vpop.trf.xlu0
        %v596 = vpop.trf.xlu0
        %v597 = vpop.trf.xlu0
        %v598 = vpop.trf.xlu0
        %v599 = vpop.trf.xlu0
        %v600 = vpop.trf.xlu0
        %v601 = vpop.trf.xlu0
        %v602 = vpop.trf.xlu0
        %v603 = vpop.trf.xlu0
        %vm604 = vcmask 130048
        %v606 = vsel %vm604, %v588, 0
        %608 = vmatprep.subr.mxu0 0.0
        %609 = vmatpush1.msra.mxu0 %v563
        %610 = vmatprep.subr.mxu0 0.0
        %611 = vmatpush1.msra.mxu0 %v564
        %612 = vmatprep.subr.mxu0 0.0
        %613 = vmatpush1.msra.mxu0 0.0
        %614 = vmatprep.subr.mxu0 0.0
        %615 = vmatpush1.msra.mxu0 0.0
        %616 = vmatprep.subr.mxu0 0.0
        %617 = vmatpush1.msra.mxu0 0.0
        %618 = vmatprep.subr.mxu0 0.0
        %619 = vmatpush1.msra.mxu0 0.0
        %620 = vmatprep.subr.mxu0 0.0
        %621 = vmatpush1.msra.mxu0 0.0
        %622 = vmatprep.subr.mxu0 0.0
        %623 = vmatpush1.msra.mxu0 0.0
        %624 = vmatprep.subr.mxu0 0.0
        %625 = vmatpush1.msra.mxu0 0.0
        %626 = vmatprep.subr.mxu0 0.0
        %627 = vmatpush1.msra.mxu0 0.0
        %628 = vmatprep.subr.mxu0 0.0
        %629 = vmatpush1.msra.mxu0 0.0
        %630 = vmatprep.subr.mxu0 0.0
        %631 = vmatpush1.msra.mxu0 0.0
        %632 = vmatprep.subr.mxu0 0.0
        %633 = vmatpush1.msra.mxu0 0.0
        %634 = vmatprep.subr.mxu0 0.0
        %635 = vmatpush1.msra.mxu0 0.0
        %636 = vmatprep.subr.mxu0 0.0
        %637 = vmatpush1.msra.mxu0 0.0
        %638 = vmatprep.subr.mxu0 0.0
        %639 = vmatpush1.msra.mxu0 0.0
        %640 = vmatprep.subr.mxu0 0.0
        %641 = vmatpush1.msra.mxu0 0.0
        %642 = vmatprep.subr.mxu0 0.0
        %643 = vmatpush1.msra.mxu0 0.0
        %644 = vmatprep.subr.mxu0 0.0
        %645 = vmatpush1.msra.mxu0 0.0
        %646 = vmatprep.subr.mxu0 0.0
        %647 = vmatpush1.msra.mxu0 0.0
        %648 = vmatprep.subr.mxu0 0.0
        %649 = vmatpush1.msra.mxu0 0.0
        %650 = vmatprep.subr.mxu0 0.0
        %651 = vmatpush1.msra.mxu0 0.0
        %652 = vmatprep.subr.mxu0 0.0
        %653 = vmatpush1.msra.mxu0 0.0
        %654 = vmatprep.subr.mxu0 0.0
        %655 = vmatpush1.msra.mxu0 0.0
        %656 = vmatprep.subr.mxu0 0.0
        %657 = vmatpush1.msra.mxu0 0.0
        %658 = vmatprep.subr.mxu0 0.0
        %659 = vmatpush1.msra.mxu0 0.0
        %660 = vmatprep.subr.mxu0 0.0
        %661 = vmatpush1.msra.mxu0 0.0
        %662 = vmatprep.subr.mxu0 0.0
        %663 = vmatpush1.msra.mxu0 0.0
        %664 = vmatprep.subr.mxu0 0.0
        %665 = vmatpush1.msra.mxu0 0.0
        %666 = vmatprep.subr.mxu0 0.0
        %667 = vmatpush1.msra.mxu0 0.0
        %668 = vmatprep.subr.mxu0 0.0
        %669 = vmatpush1.msra.mxu0 0.0
        %670 = vmatprep.subr.mxu0 0.0
        %671 = vmatpush1.msra.mxu0 0.0
        %672 = vmatprep.mubr.f32.mxu0 0.0
        %673 = vmatmul.mubr.f32.gmra.mrb[0].mxu0 %v606
        %v674 = vpop.f32.mrb[0].mxu0
        %v675 = vadd.f32 %v570, %v674
        %v676 = vpop.f32.mrb[0].mxu0
        %677 = vdwg.mxu0
        %v678 = vadd.f32 %v560, %v675
        %v679 = vmul.f32 %v678, 0.70710677
        %v680 = vld [vmem:[%s538] sm:$0xff]
        %v681 = vld [vmem:[%s538 + $0x8] sm:$0xff]
        %vm682 = vcmask 261120
        %v684 = vsel %vm682, %v679, 0
        %v687 = vsel %vm682, %v680, 0
        %v690 = vsel %vm682, %v681, 0
        %692 = vmatprep.subr.mxu0 0.0
        %693 = vmatpush1.xpose.msra.mxu0 %v687
        %694 = vmatprep.subr.mxu0 0.0
        %695 = vmatpush1.xpose.msra.mxu0 %v690
        %696 = vmatprep.subr.mxu0 0.0
        %697 = vmatpush1.xpose.msra.mxu0 0.0
        %698 = vmatprep.subr.mxu0 0.0
        %699 = vmatpush1.xpose.msra.mxu0 0.0
        %700 = vmatprep.subr.mxu0 0.0
        %701 = vmatpush1.xpose.msra.mxu0 0.0
        %702 = vmatprep.subr.mxu0 0.0
        %703 = vmatpush1.xpose.msra.mxu0 0.0
        %704 = vmatprep.subr.mxu0 0.0
        %705 = vmatpush1.xpose.msra.mxu0 0.0
        %706 = vmatprep.subr.mxu0 0.0
        %707 = vmatpush1.xpose.msra.mxu0 0.0
        %708 = vmatprep.subr.mxu0 0.0
        %709 = vmatpush1.xpose.msra.mxu0 0.0
        %710 = vmatprep.subr.mxu0 0.0
        %711 = vmatpush1.xpose.msra.mxu0 0.0
        %712 = vmatprep.subr.mxu0 0.0
        %713 = vmatpush1.xpose.msra.mxu0 0.0
        %714 = vmatprep.subr.mxu0 0.0
        %715 = vmatpush1.xpose.msra.mxu0 0.0
        %716 = vmatprep.subr.mxu0 0.0
        %717 = vmatpush1.xpose.msra.mxu0 0.0
        %718 = vmatprep.subr.mxu0 0.0
        %719 = vmatpush1.xpose.msra.mxu0 0.0
        %720 = vmatprep.subr.mxu0 0.0
        %721 = vmatpush1.xpose.msra.mxu0 0.0
        %722 = vmatprep.subr.mxu0 0.0
        %723 = vmatpush1.xpose.msra.mxu0 0.0
        %724 = vmatprep.subr.mxu0 0.0
        %725 = vmatpush1.xpose.msra.mxu0 0.0
        %726 = vmatprep.subr.mxu0 0.0
        %727 = vmatpush1.xpose.msra.mxu0 0.0
        %728 = vmatprep.subr.mxu0 0.0
        %729 = vmatpush1.xpose.msra.mxu0 0.0
        %730 = vmatprep.subr.mxu0 0.0
        %731 = vmatpush1.xpose.msra.mxu0 0.0
        %732 = vmatprep.subr.mxu0 0.0
        %733 = vmatpush1.xpose.msra.mxu0 0.0
        %734 = vmatprep.subr.mxu0 0.0
        %735 = vmatpush1.xpose.msra.mxu0 0.0
        %736 = vmatprep.subr.mxu0 0.0
        %737 = vmatpush1.xpose.msra.mxu0 0.0
        %738 = vmatprep.subr.mxu0 0.0
        %739 = vmatpush1.xpose.msra.mxu0 0.0
        %740 = vmatprep.subr.mxu0 0.0
        %741 = vmatpush1.xpose.msra.mxu0 0.0
        %742 = vmatprep.subr.mxu0 0.0
        %743 = vmatpush1.xpose.msra.mxu0 0.0
        %744 = vmatprep.subr.mxu0 0.0
        %745 = vmatpush1.xpose.msra.mxu0 0.0
        %746 = vmatprep.subr.mxu0 0.0
        %747 = vmatpush1.xpose.msra.mxu0 0.0
        %748 = vmatprep.subr.mxu0 0.0
        %749 = vmatpush1.xpose.msra.mxu0 0.0
        %750 = vmatprep.subr.mxu0 0.0
        %751 = vmatpush1.xpose.msra.mxu0 0.0
        %752 = vmatprep.subr.mxu0 0.0
        %753 = vmatpush1.xpose.msra.mxu0 0.0
        %754 = vmatprep.subr.mxu0 0.0
        %755 = vmatpush1.xpose.msra.mxu0 0.0
        %756 = vmatprep.mubr.f32.mxu0 0.0
        %757 = vmatmul.mubr.f32.gmra.mrb[0].mxu0 %v684
        %v758 = vpop.f32.mrb[0].mxu0
        %v759 = vadd.f32 0.0, %v758
        %v760 = vpop.f32.mrb[0].mxu0
        %761 = vdwg.mxu0
        %v762 = vld [vmem:[%s547] sm:$0xff]
        %v764 = vsel %vm682, %v762, 0
        %766 = vmatprep.subr.mxu0 0.0
        %767 = vmatpush1.xpose.msra.mxu0 %v764
        %768 = vmatprep.subr.mxu0 0.0
        %769 = vmatpush1.xpose.msra.mxu0 0.0
        %770 = vmatprep.subr.mxu0 0.0
        %771 = vmatpush1.xpose.msra.mxu0 0.0
        %772 = vmatprep.subr.mxu0 0.0
        %773 = vmatpush1.xpose.msra.mxu0 0.0
        %774 = vmatprep.subr.mxu0 0.0
        %775 = vmatpush1.xpose.msra.mxu0 0.0
        %776 = vmatprep.subr.mxu0 0.0
        %777 = vmatpush1.xpose.msra.mxu0 0.0
        %778 = vmatprep.subr.mxu0 0.0
        %779 = vmatpush1.xpose.msra.mxu0 0.0
        %780 = vmatprep.subr.mxu0 0.0
        %781 = vmatpush1.xpose.msra.mxu0 0.0
        %782 = vmatprep.subr.mxu0 0.0
        %783 = vmatpush1.xpose.msra.mxu0 0.0
        %784 = vmatprep.subr.mxu0 0.0
        %785 = vmatpush1.xpose.msra.mxu0 0.0
        %786 = vmatprep.subr.mxu0 0.0
        %787 = vmatpush1.xpose.msra.mxu0 0.0
        %788 = vmatprep.subr.mxu0 0.0
        %789 = vmatpush1.xpose.msra.mxu0 0.0
        %790 = vmatprep.subr.mxu0 0.0
        %791 = vmatpush1.xpose.msra.mxu0 0.0
        %792 = vmatprep.subr.mxu0 0.0
        %793 = vmatpush1.xpose.msra.mxu0 0.0
        %794 = vmatprep.subr.mxu0 0.0
        %795 = vmatpush1.xpose.msra.mxu0 0.0
        %796 = vmatprep.subr.mxu0 0.0
        %797 = vmatpush1.xpose.msra.mxu0 0.0
        %798 = vmatprep.subr.mxu0 0.0
        %799 = vmatpush1.xpose.msra.mxu0 0.0
        %800 = vmatprep.subr.mxu0 0.0
        %801 = vmatpush1.xpose.msra.mxu0 0.0
        %802 = vmatprep.subr.mxu0 0.0
        %803 = vmatpush1.xpose.msra.mxu0 0.0
        %804 = vmatprep.subr.mxu0 0.0
        %805 = vmatpush1.xpose.msra.mxu0 0.0
        %806 = vmatprep.subr.mxu0 0.0
        %807 = vmatpush1.xpose.msra.mxu0 0.0
        %808 = vmatprep.subr.mxu0 0.0
        %809 = vmatpush1.xpose.msra.mxu0 0.0
        %810 = vmatprep.subr.mxu0 0.0
        %811 = vmatpush1.xpose.msra.mxu0 0.0
        %812 = vmatprep.subr.mxu0 0.0
        %813 = vmatpush1.xpose.msra.mxu0 0.0
        %814 = vmatprep.subr.mxu0 0.0
        %815 = vmatpush1.xpose.msra.mxu0 0.0
        %816 = vmatprep.subr.mxu0 0.0
        %817 = vmatpush1.xpose.msra.mxu0 0.0
        %818 = vmatprep.subr.mxu0 0.0
        %819 = vmatpush1.xpose.msra.mxu0 0.0
        %820 = vmatprep.subr.mxu0 0.0
        %821 = vmatpush1.xpose.msra.mxu0 0.0
        %822 = vmatprep.subr.mxu0 0.0
        %823 = vmatpush1.xpose.msra.mxu0 0.0
        %824 = vmatprep.subr.mxu0 0.0
        %825 = vmatpush1.xpose.msra.mxu0 0.0
        %826 = vmatprep.subr.mxu0 0.0
        %827 = vmatpush1.xpose.msra.mxu0 0.0
        %828 = vmatprep.subr.mxu0 0.0
        %829 = vmatpush1.xpose.msra.mxu0 0.0
        %830 = vmatprep.mubr.f32.mxu0 0.0
        %831 = vmatmul.mubr.f32.gmra.mrb[0].mxu0 %v684
        %v832 = vpop.f32.mrb[0].mxu0
        %v833 = vadd.f32 0.0, %v832
        %v834 = vpop.f32.mrb[0].mxu0
        %835 = vdwg.mxu0
        %v836 = vsel %vm604, %v759, -inf
        %837 = vmax.xlane.f32.xlu0 %v836
        %v838 = vpop.xlane.xlu0 %837
        %v839 = vsub.f32 %v759, %v838
        %v840 = vmul.f32 %v839, 1.442695
        %v841 = vpow.pop %v840
        %v842 = vsel %vm604, %v841, 0.0
        %843 = vadd.xlane.f32.xlu0 %v842
        %v844 = vpop.xlane.xlu0 %843
        %v845 = vrcp.pop %v844
        %v846 = vmul.f32 %v841, %v845
        %vm847 = vcmask 64512
        %v848 = vsel %vm847, %v833, -inf
        %849 = vmax.xlane.f32.xlu0 %v848
        %v850 = vpop.xlane.xlu0 %849
        %v851 = vsub.f32 %v833, %v850
        %v852 = vmul.f32 %v851, 1.442695
        %v853 = vpow.pop %v852
        %v854 = vsel %vm847, %v853, 0.0
        %855 = vadd.xlane.f32.xlu0 %v854
        %v856 = vpop.xlane.xlu0 %855
        %v857 = vrcp.pop %v856
        %v858 = vmul.f32 %v853, %v857
        %v859 = vld [vmem:[%s543] sm:$0xff]
        %v860 = vld [vmem:[%s543 + $0x8] sm:$0xff]
        %v862 = vsel %vm604, %v846, 0
        %864 = vmatprep.subr.mxu0 0.0
        %865 = vmatpush1.msra.mxu0 %v859
        %866 = vmatprep.subr.mxu0 0.0
        %867 = vmatpush1.msra.mxu0 %v860
        %868 = vmatprep.subr.mxu0 0.0
        %869 = vmatpush1.msra.mxu0 0.0
        %870 = vmatprep.subr.mxu0 0.0
        %871 = vmatpush1.msra.mxu0 0.0
        %872 = vmatprep.subr.mxu0 0.0
        %873 = vmatpush1.msra.mxu0 0.0
        %874 = vmatprep.subr.mxu0 0.0
        %875 = vmatpush1.msra.mxu0 0.0
        %876 = vmatprep.subr.mxu0 0.0
        %877 = vmatpush1.msra.mxu0 0.0
        %878 = vmatprep.subr.mxu0 0.0
        %879 = vmatpush1.msra.mxu0 0.0
        %880 = vmatprep.subr.mxu0 0.0
        %881 = vmatpush1.msra.mxu0 0.0
        %882 = vmatprep.subr.mxu0 0.0
        %883 = vmatpush1.msra.mxu0 0.0
        %884 = vmatprep.subr.mxu0 0.0
        %885 = vmatpush1.msra.mxu0 0.0
        %886 = vmatprep.subr.mxu0 0.0
        %887 = vmatpush1.msra.mxu0 0.0
        %888 = vmatprep.subr.mxu0 0.0
        %889 = vmatpush1.msra.mxu0 0.0
        %890 = vmatprep.subr.mxu0 0.0
        %891 = vmatpush1.msra.mxu0 0.0
        %892 = vmatprep.subr.mxu0 0.0
        %893 = vmatpush1.msra.mxu0 0.0
        %894 = vmatprep.subr.mxu0 0.0
        %895 = vmatpush1.msra.mxu0 0.0
        %896 = vmatprep.subr.mxu0 0.0
        %897 = vmatpush1.msra.mxu0 0.0
        %898 = vmatprep.subr.mxu0 0.0
        %899 = vmatpush1.msra.mxu0 0.0
        %900 = vmatprep.subr.mxu0 0.0
        %901 = vmatpush1.msra.mxu0 0.0
        %902 = vmatprep.subr.mxu0 0.0
        %903 = vmatpush1.msra.mxu0 0.0
        %904 = vmatprep.subr.mxu0 0.0
        %905 = vmatpush1.msra.mxu0 0.0
        %906 = vmatprep.subr.mxu0 0.0
        %907 = vmatpush1.msra.mxu0 0.0
        %908 = vmatprep.subr.mxu0 0.0
        %909 = vmatpush1.msra.mxu0 0.0
        %910 = vmatprep.subr.mxu0 0.0
        %911 = vmatpush1.msra.mxu0 0.0
        %912 = vmatprep.subr.mxu0 0.0
        %913 = vmatpush1.msra.mxu0 0.0
        %914 = vmatprep.subr.mxu0 0.0
        %915 = vmatpush1.msra.mxu0 0.0
        %916 = vmatprep.subr.mxu0 0.0
        %917 = vmatpush1.msra.mxu0 0.0
        %918 = vmatprep.subr.mxu0 0.0
        %919 = vmatpush1.msra.mxu0 0.0
        %920 = vmatprep.subr.mxu0 0.0
        %921 = vmatpush1.msra.mxu0 0.0
        %922 = vmatprep.subr.mxu0 0.0
        %923 = vmatpush1.msra.mxu0 0.0
        %924 = vmatprep.subr.mxu0 0.0
        %925 = vmatpush1.msra.mxu0 0.0
        %926 = vmatprep.subr.mxu0 0.0
        %927 = vmatpush1.msra.mxu0 0.0
        %928 = vmatprep.mubr.f32.mxu0 0.0
        %929 = vmatmul.mubr.f32.gmra.mrb[0].mxu0 %v862
        %v930 = vpop.f32.mrb[0].mxu0
        %v931 = vadd.f32 0.0, %v930
        %v932 = vpop.f32.mrb[0].mxu0
        %933 = vdwg.mxu0
        %v934 = vld [vmem:[%s551] sm:$0xff]
        %v936 = vsel %vm847, %v858, 0
        %938 = vmatprep.subr.mxu0 0.0
        %939 = vmatpush1.msra.mxu0 %v934
        %940 = vmatprep.subr.mxu0 0.0
        %941 = vmatpush1.msra.mxu0 0.0
        %942 = vmatprep.subr.mxu0 0.0
        %943 = vmatpush1.msra.mxu0 0.0
        %944 = vmatprep.subr.mxu0 0.0
        %945 = vmatpush1.msra.mxu0 0.0
        %946 = vmatprep.subr.mxu0 0.0
        %947 = vmatpush1.msra.mxu0 0.0
        %948 = vmatprep.subr.mxu0 0.0
        %949 = vmatpush1.msra.mxu0 0.0
        %950 = vmatprep.subr.mxu0 0.0
        %951 = vmatpush1.msra.mxu0 0.0
        %952 = vmatprep.subr.mxu0 0.0
        %953 = vmatpush1.msra.mxu0 0.0
        %954 = vmatprep.subr.mxu0 0.0
        %955 = vmatpush1.msra.mxu0 0.0
        %956 = vmatprep.subr.mxu0 0.0
        %957 = vmatpush1.msra.mxu0 0.0
        %958 = vmatprep.subr.mxu0 0.0
        %959 = vmatpush1.msra.mxu0 0.0
        %960 = vmatprep.subr.mxu0 0.0
        %961 = vmatpush1.msra.mxu0 0.0
        %962 = vmatprep.subr.mxu0 0.0
        %963 = vmatpush1.msra.mxu0 0.0
        %964 = vmatprep.subr.mxu0 0.0
        %965 = vmatpush1.msra.mxu0 0.0
        %966 = vmatprep.subr.mxu0 0.0
        %967 = vmatpush1.msra.mxu0 0.0
        %968 = vmatprep.subr.mxu0 0.0
        %969 = vmatpush1.msra.mxu0 0.0
        %970 = vmatprep.subr.mxu0 0.0
        %971 = vmatpush1.msra.mxu0 0.0
        %972 = vmatprep.subr.mxu0 0.0
        %973 = vmatpush1.msra.mxu0 0.0
        %974 = vmatprep.subr.mxu0 0.0
        %975 = vmatpush1.msra.mxu0 0.0
        %976 = vmatprep.subr.mxu0 0.0
        %977 = vmatpush1.msra.mxu0 0.0
        %978 = vmatprep.subr.mxu0 0.0
        %979 = vmatpush1.msra.mxu0 0.0
        %980 = vmatprep.subr.mxu0 0.0
        %981 = vmatpush1.msra.mxu0 0.0
        %982 = vmatprep.subr.mxu0 0.0
        %983 = vmatpush1.msra.mxu0 0.0
        %984 = vmatprep.subr.mxu0 0.0
        %985 = vmatpush1.msra.mxu0 0.0
        %986 = vmatprep.subr.mxu0 0.0
        %987 = vmatpush1.msra.mxu0 0.0
        %988 = vmatprep.subr.mxu0 0.0
        %989 = vmatpush1.msra.mxu0 0.0
        %990 = vmatprep.subr.mxu0 0.0
        %991 = vmatpush1.msra.mxu0 0.0
        %992 = vmatprep.subr.mxu0 0.0
        %993 = vmatpush1.msra.mxu0 0.0
        %994 = vmatprep.subr.mxu0 0.0
        %995 = vmatpush1.msra.mxu0 0.0
        %996 = vmatprep.subr.mxu0 0.0
        %997 = vmatpush1.msra.mxu0 0.0
        %998 = vmatprep.subr.mxu0 0.0
        %999 = vmatpush1.msra.mxu0 0.0
        %1000 = vmatprep.subr.mxu0 0.0
        %1001 = vmatpush1.msra.mxu0 0.0
        %1002 = vmatprep.mubr.f32.mxu0 0.0
        %1003 = vmatmul.mubr.f32.gmra.mrb[0].mxu0 %v936
        %v1004 = vpop.f32.mrb[0].mxu0
        %v1005 = vadd.f32 0.0, %v1004
        %v1006 = vpop.f32.mrb[0].mxu0
        %1007 = vdwg.mxu0
        %v1008 = vld [vmem:[%s8] sm:$0xff]
        %v1009 = vld [vmem:[%s8 + $0x8] sm:$0xff]
        %v1010 = vld [vmem:[%s8 + $0x10] sm:$0xff]
        %v1011 = vld [vmem:[%s8 + $0x18] sm:$0xff]
        %v1012 = vld [vmem:[%s9] sm:$0xff]
        %v1013 = vld [vmem:[%s9 + $0x8] sm:$0xff]
        %v1014 = vld [vmem:[%s9 + $0x10] sm:$0xff]
        %v1015 = vld [vmem:[%s9 + $0x18] sm:$0xff]
        %v1017 = vsel %vm682, %v1005, 0
        %1019 = vmatprep.subr.mxu0 0.0
        %1020 = vmatpush1.msra.mxu0 %v1012
        %1021 = vmatprep.subr.mxu0 0.0
        %1022 = vmatpush1.msra.mxu0 %v1013
        %1023 = vmatprep.subr.mxu0 0.0
        %1024 = vmatpush1.msra.mxu0 %v1014
        %1025 = vmatprep.subr.mxu0 0.0
        %1026 = vmatpush1.msra.mxu0 %v1015
        %1027 = vmatprep.subr.mxu0 0.0
        %1028 = vmatpush1.msra.mxu0 0.0
        %1029 = vmatprep.subr.mxu0 0.0
        %1030 = vmatpush1.msra.mxu0 0.0
        %1031 = vmatprep.subr.mxu0 0.0
        %1032 = vmatpush1.msra.mxu0 0.0
        %1033 = vmatprep.subr.mxu0 0.0
        %1034 = vmatpush1.msra.mxu0 0.0
        %1035 = vmatprep.subr.mxu0 0.0
        %1036 = vmatpush1.msra.mxu0 0.0
        %1037 = vmatprep.subr.mxu0 0.0
        %1038 = vmatpush1.msra.mxu0 0.0
        %1039 = vmatprep.subr.mxu0 0.0
        %1040 = vmatpush1.msra.mxu0 0.0
        %1041 = vmatprep.subr.mxu0 0.0
        %1042 = vmatpush1.msra.mxu0 0.0
        %1043 = vmatprep.subr.mxu0 0.0
        %1044 = vmatpush1.msra.mxu0 0.0
        %1045 = vmatprep.subr.mxu0 0.0
        %1046 = vmatpush1.msra.mxu0 0.0
        %1047 = vmatprep.subr.mxu0 0.0
        %1048 = vmatpush1.msra.mxu0 0.0
        %1049 = vmatprep.subr.mxu0 0.0
        %1050 = vmatpush1.msra.mxu0 0.0
        %1051 = vmatprep.subr.mxu0 0.0
        %1052 = vmatpush1.msra.mxu0 0.0
        %1053 = vmatprep.subr.mxu0 0.0
        %1054 = vmatpush1.msra.mxu0 0.0
        %1055 = vmatprep.subr.mxu0 0.0
        %1056 = vmatpush1.msra.mxu0 0.0
        %1057 = vmatprep.subr.mxu0 0.0
        %1058 = vmatpush1.msra.mxu0 0.0
        %1059 = vmatprep.subr.mxu0 0.0
        %1060 = vmatpush1.msra.mxu0 0.0
        %1061 = vmatprep.subr.mxu0 0.0
        %1062 = vmatpush1.msra.mxu0 0.0
        %1063 = vmatprep.subr.mxu0 0.0
        %1064 = vmatpush1.msra.mxu0 0.0
        %1065 = vmatprep.subr.mxu0 0.0
        %1066 = vmatpush1.msra.mxu0 0.0
        %1067 = vmatprep.subr.mxu0 0.0
        %1068 = vmatpush1.msra.mxu0 0.0
        %1069 = vmatprep.subr.mxu0 0.0
        %1070 = vmatpush1.msra.mxu0 0.0
        %1071 = vmatprep.subr.mxu0 0.0
        %1072 = vmatpush1.msra.mxu0 0.0
        %1073 = vmatprep.subr.mxu0 0.0
        %1074 = vmatpush1.msra.mxu0 0.0
        %1075 = vmatprep.subr.mxu0 0.0
        %1076 = vmatpush1.msra.mxu0 0.0
        %1077 = vmatprep.subr.mxu0 0.0
        %1078 = vmatpush1.msra.mxu0 0.0
        %1079 = vmatprep.subr.mxu0 0.0
        %1080 = vmatpush1.msra.mxu0 0.0
        %1081 = vmatprep.subr.mxu0 0.0
        %1082 = vmatpush1.msra.mxu0 0.0
        %1083 = vmatprep.mubr.f32.mxu0 0.0
        %1084 = vmatmul.mubr.f32.gmra.mrb[0].mxu0 %v1017
        %v1085 = vpop.f32.mrb[0].mxu0
        %v1086 = vadd.f32 0.0, %v1085
        %v1087 = vpop.f32.mrb[0].mxu0
        %1088 = vdwg.mxu0
        %v1090 = vsel %vm682, %v931, 0
        %1092 = vmatprep.subr.mxu0 0.0
        %1093 = vmatpush1.msra.mxu0 %v1008
        %1094 = vmatprep.subr.mxu0 0.0
        %1095 = vmatpush1.msra.mxu0 %v1009
        %1096 = vmatprep.subr.mxu0 0.0
        %1097 = vmatpush1.msra.mxu0 %v1010
        %1098 = vmatprep.subr.mxu0 0.0
        %1099 = vmatpush1.msra.mxu0 %v1011
        %1100 = vmatprep.subr.mxu0 0.0
        %1101 = vmatpush1.msra.mxu0 0.0
        %1102 = vmatprep.subr.mxu0 0.0
        %1103 = vmatpush1.msra.mxu0 0.0
        %1104 = vmatprep.subr.mxu0 0.0
        %1105 = vmatpush1.msra.mxu0 0.0
        %1106 = vmatprep.subr.mxu0 0.0
        %1107 = vmatpush1.msra.mxu0 0.0
        %1108 = vmatprep.subr.mxu0 0.0
        %1109 = vmatpush1.msra.mxu0 0.0
        %1110 = vmatprep.subr.mxu0 0.0
        %1111 = vmatpush1.msra.mxu0 0.0
        %1112 = vmatprep.subr.mxu0 0.0
        %1113 = vmatpush1.msra.mxu0 0.0
        %1114 = vmatprep.subr.mxu0 0.0
        %1115 = vmatpush1.msra.mxu0 0.0
        %1116 = vmatprep.subr.mxu0 0.0
        %1117 = vmatpush1.msra.mxu0 0.0
        %1118 = vmatprep.subr.mxu0 0.0
        %1119 = vmatpush1.msra.mxu0 0.0
        %1120 = vmatprep.subr.mxu0 0.0
        %1121 = vmatpush1.msra.mxu0 0.0
        %1122 = vmatprep.subr.mxu0 0.0
        %1123 = vmatpush1.msra.mxu0 0.0
        %1124 = vmatprep.subr.mxu0 0.0
        %1125 = vmatpush1.msra.mxu0 0.0
        %1126 = vmatprep.subr.mxu0 0.0
        %1127 = vmatpush1.msra.mxu0 0.0
        %1128 = vmatprep.subr.mxu0 0.0
        %1129 = vmatpush1.msra.mxu0 0.0
        %1130 = vmatprep.subr.mxu0 0.0
        %1131 = vmatpush1.msra.mxu0 0.0
        %1132 = vmatprep.subr.mxu0 0.0
        %1133 = vmatpush1.msra.mxu0 0.0
        %1134 = vmatprep.subr.mxu0 0.0
        %1135 = vmatpush1.msra.mxu0 0.0
        %1136 = vmatprep.subr.mxu0 0.0
        %1137 = vmatpush1.msra.mxu0 0.0
        %1138 = vmatprep.subr.mxu0 0.0
        %1139 = vmatpush1.msra.mxu0 0.0
        %1140 = vmatprep.subr.mxu0 0.0
        %1141 = vmatpush1.msra.mxu0 0.0
        %1142 = vmatprep.subr.mxu0 0.0
        %1143 = vmatpush1.msra.mxu0 0.0
        %1144 = vmatprep.subr.mxu0 0.0
        %1145 = vmatpush1.msra.mxu0 0.0
        %1146 = vmatprep.subr.mxu0 0.0
        %1147 = vmatpush1.msra.mxu0 0.0
        %1148 = vmatprep.subr.mxu0 0.0
        %1149 = vmatpush1.msra.mxu0 0.0
        %1150 = vmatprep.subr.mxu0 0.0
        %1151 = vmatpush1.msra.mxu0 0.0
        %1152 = vmatprep.subr.mxu0 0.0
        %1153 = vmatpush1.msra.mxu0 0.0
        %1154 = vmatprep.subr.mxu0 0.0
        %1155 = vmatpush1.msra.mxu0 0.0
        %1156 = vmatprep.mubr.f32.mxu0 0.0
        %1157 = vmatmul.mubr.f32.gmra.mrb[0].mxu0 %v1090
        %v1158 = vpop.f32.mrb[0].mxu0
        %v1159 = vadd.f32 %v1086, %v1158
        %v1160 = vpop.f32.mrb[0].mxu0
        %1161 = vdwg.mxu0
        %v1162 = vld [vmem:[%s10] sm:$0x1]
        %v1164 = vlaneseq
        %v1165 = vshrl.u32 %v1164, 7
        %v1166 = vsub.s32 0, %v1165
        %v1167 = vrot.slane %v1162, %v1166
        %v1169 = vadd.f32 %v1159, %v1167
        %1170 = vst.msk [vmem:[%s508] sm:$0xff] %vm847, %v858
        %v1171 = vmul.f32 %v561, 1.4142135
        %v1172 = vmul.f32 %v562, 1.4142135
        %1173 = vxpose.xlu0.b32.start [1/16] %v1169, 128
        %1174 = vxpose.xlu0.b32.cont [2/16] 0.0, 128
        %1175 = vxpose.xlu0.b32.cont [3/16] 0.0, 128
        %1176 = vxpose.xlu0.b32.cont [4/16] 0.0, 128
        %1177 = vxpose.xlu0.b32.cont [5/16] 0.0, 128
        %1178 = vxpose.xlu0.b32.cont [6/16] 0.0, 128
        %1179 = vxpose.xlu0.b32.cont [7/16] 0.0, 128
        %1180 = vxpose.xlu0.b32.cont [8/16] 0.0, 128
        %1181 = vxpose.xlu0.b32.cont [9/16] 0.0, 128
        %1182 = vxpose.xlu0.b32.cont [10/16] 0.0, 128
        %1183 = vxpose.xlu0.b32.cont [11/16] 0.0, 128
        %1184 = vxpose.xlu0.b32.cont [12/16] 0.0, 128
        %1185 = vxpose.xlu0.b32.cont [13/16] 0.0, 128
        %1186 = vxpose.xlu0.b32.cont [14/16] 0.0, 128
        %1187 = vxpose.xlu0.b32.cont [15/16] 0.0, 128
        %1188 = vxpose.xlu0.b32.end [16/16] 0.0, 128
        %v1189 = vpop.trf.xlu0
        %v1190 = vpop.trf.xlu0
        %v1191 = vpop.trf.xlu0
        %v1192 = vpop.trf.xlu0
        %v1193 = vpop.trf.xlu0
        %v1194 = vpop.trf.xlu0
        %v1195 = vpop.trf.xlu0
        %v1196 = vpop.trf.xlu0
        %v1197 = vpop.trf.xlu0
        %v1198 = vpop.trf.xlu0
        %v1199 = vpop.trf.xlu0
        %v1200 = vpop.trf.xlu0
        %v1201 = vpop.trf.xlu0
        %v1202 = vpop.trf.xlu0
        %v1203 = vpop.trf.xlu0
        %v1204 = vpop.trf.xlu0
        %v1205 = vmul.f32 %v1189, 0.70710677
        %v1206 = vmul.f32 %v1190, 0.70710677
        %v1207 = vadd.f32 %v1171, %v1205
        %v1208 = vadd.f32 %v1172, %v1206
        %1209 = vst.msk [vmem:[%s559] sm:$0xff] %vm847, %v1207
        %1210 = vst.msk [vmem:[%s559 + $0x8] sm:$0xff] %vm847, %v1208
        %s1211 = sand.u32 %s314, 1
        %s1212 = scalar_lea.sflag [#allocation3], %s1211
        %s1213 = sand.u32 %s314, 1
        %s1214 = smul.addr %s1213, 8
        %s1215 = scalar_lea.vmem [#allocation2], %s1214
        %p1216 = scmp.lt.s32.totalorder %s31, 1
        %s1217 = scalar_select %p1216, %s31, 1
        %p1218 = scmp.lt.s32.totalorder %s32, 0
        %s1219 = scalar_select %p1218, %s32, 0
        %s1220 = smul.addr %s1217, 2
        %s1221 = sadd.s32 %s1219, %s1220
        %s1222 = smul.addr %s1221, 8
        %s1223 = scalar_lea.vmem %s12, %s1222
        // Predicated region
        $region65: #{tpu_custom_call.1} parent=63 // pred_check
          %p1224 = pneg %p324
        $region66: #{tpu_custom_call.1} parent=63 // pred_check_branch
          %1226 = sbr.rel (%p1224) target = $region68
        $region67: #{tpu_custom_call.1} parent=63 // pred_region
          %s1228 = ssub.s32 128, 128
          %1229 = vsyncadd %s1212, %s1228
          %s1230 = sadd.s32 %s32, %s31
          %s1231 = smul.addr %s1230, 128
          %s1232 = scalar_lea.hbm %s11, %s1231
          %s1234 = sshll.u32 %s1215, 4
          %s1235 = int_to_ptr.vmem [resolvable:$true] %s1234
          %1237 = dma.vmem_to_hbm [thread:$0]  %s1235, 128, %s1232, %s1212
        $region68: #{tpu_custom_call.1} parent=63 // pred_fallthru
          _
        // Predicated region
        $region69: #{tpu_custom_call.1} parent=63 // pred_check
          %p1238 = pneg %p352
        $region70: #{tpu_custom_call.1} parent=63 // pred_check_branch
          %1240 = sbr.rel (%p1238) target = $region72
        $region71: #{tpu_custom_call.1} parent=63 // pred_region
          _
        $region72: #{tpu_custom_call.1} parent=63 // pred_fallthru
          _
      $region64: #{tpu_custom_call.1} parent=5 // pred_fallthru
        _
      %p1241 = scmp.le.s32.totalorder 2, %s22
      // Predicated region
      $region73: #{tpu_custom_call.1} parent=5 // pred_check
        %p1242 = pneg %p1241
      $region74: #{tpu_custom_call.1} parent=5 // pred_check_branch
        %1244 = sbr.rel (%p1242) target = $region76
      $region75: #{tpu_custom_call.1} parent=5 // pred_region
        %s1245 = ssub.s32 %s22, 2
        // Predicated region
        $region77: #{tpu_custom_call.1} parent=75 // pred_check
          %p1246 = pneg %p330
        $region78: #{tpu_custom_call.1} parent=75 // pred_check_branch
          %1248 = sbr.rel (%p1246) target = $region80
        $region79: #{tpu_custom_call.1} parent=75 // pred_region
          %s1249 = sand.u32 %s315, 1
          %s1250 = scalar_lea.sflag [#allocation3], %s1249
          %s1251 = sand.u32 %s315, 1
          %s1252 = smul.addr %s1251, 8
          %s1253 = scalar_lea.vmem [#allocation2], %s1252
          %1254 = dma.done %s1250, 128
        $region80: #{tpu_custom_call.1} parent=75 // pred_fallthru
          _
        // Predicated region
        $region81: #{tpu_custom_call.1} parent=75 // pred_check
          %p1255 = pneg %p358
        $region82: #{tpu_custom_call.1} parent=75 // pred_check_branch
          %1257 = sbr.rel (%p1255) target = $region84
        $region83: #{tpu_custom_call.1} parent=75 // pred_region
          %p1258 = scmp.lt.s32.totalorder %s33, 1
          %s1259 = scalar_select %p1258, %s33, 1
          %p1260 = scmp.lt.s32.totalorder %s34, 0
          %s1261 = scalar_select %p1260, %s34, 0
          %s1262 = smul.addr %s1259, 2
          %s1263 = sadd.s32 %s1261, %s1262
          %s1264 = smul.addr %s1263, 8
          %s1265 = scalar_lea.vmem %s12, %s1264
        $region84: #{tpu_custom_call.1} parent=75 // pred_fallthru
          _
      $region76: #{tpu_custom_call.1} parent=5 // pred_fallthru
        _
    $region6: #{tpu_custom_call.1} parent=1 // loop_footer
      %s26 = sadd.s32 1, %s22
    $region7: #{tpu_custom_call.1} parent=1 // loop_footer_branch
      %21 = sbr.rel target = $region3
    $region8: #{tpu_custom_call.1} parent=1 // loop_exit
      _
    %1266 = vsyncpa [#allocation3], 1
    %s1267 = scalar_lea.sflag [#allocation3], 1
    %1268 = vsyncpa %s1267, 1

// kernel: tpu_custom_call.1
$region0: #{tpu_custom_call.1}
  #allocation0 [shape = 'u32[]', space=smem, size = 0x4, offset = 0x4, fixed_abs, tag = 'smem constant byte address 0x4 - core index']
  #allocation1 [shape = 'u32[144,128]{1,0:T(1,128)}', space=vmem, size = 0x12000, scoped, tag = 'internal scratch']
  %s0 = inlined_call_operand.vmem [shape: f32[2,8,32], index: 0, kind: input, shape index: {}]
  %s1 = inlined_call_operand.vmem [shape: f32[2,16,8], index: 1, kind: input, shape index: {}]
  %s2 = inlined_call_operand.vmem [shape: f32[2,16,32], index: 2, kind: input, shape index: {}]
  %s3 = inlined_call_operand.vmem [shape: f32[2,16,32], index: 3, kind: input, shape index: {}]
  %s4 = inlined_call_operand.vmem [shape: f32[2,8,32], index: 4, kind: input, shape index: {}]
  %s5 = inlined_call_operand.vmem [shape: f32[2,8,32], index: 5, kind: input, shape index: {}]
  %s6 = inlined_call_operand.vmem [shape: f32[16,32], index: 6, kind: input, shape index: {}]
  %s7 = inlined_call_operand.vmem [shape: f32[1,32], index: 7, kind: input, shape index: {}]
  %s8 = inlined_call_operand.vmem [shape: f32[32,16], index: 8, kind: input, shape index: {}]
  %s9 = inlined_call_operand.vmem [shape: f32[32,16], index: 9, kind: input, shape index: {}]
  %s10 = inlined_call_operand.vmem [shape: f32[1,16], index: 10, kind: input, shape index: {}]
  %s11 = inlined_call_operand.hbm [shape: f32[2,8,8], index: 11, kind: output, shape index: {0}]
  %s12 = inlined_call_operand.vmem [shape: f32[2,16,8], index: 12, kind: output, shape index: {1}]
  %13 = xla_tuple %s11, %s12
  %s14 = sld [smem:[#allocation0]]
  $region85: #{tpu_custom_call.1} parent=0
    _
  %s16 = ssub.s32 1, %s14
  %s17 = scalar_select 0, %s16, %s14
  $region1: #{tpu_custom_call.1} parent=0
    #allocation2 [shape = 'u8[8192]{0}', space=vmem, size = 0x2000, scoped, tag = 'output window, operand 0']
    #allocation3 [shape = 's32[2]{0}', space=sflag, size = 0x8, scoped, tag = 'scoped memory for tpu_custom_call.1']
    %18 = vsyncpa [#allocation3], 0
    %s19 = scalar_lea.sflag [#allocation3], 1
    %20 = vsyncpa %s19, 0
    loop: start=0, step=1, limit=4
    $region2: #{tpu_custom_call.1} parent=1 // loop_pre_header
      _
    $region3: #{tpu_custom_call.1} parent=1 // loop_header
      %s22 = sphi 0, %s26
      %p23 = scmp.ge.s32.totalorder %s22, 4
      %s29 = sphi 0, %s41
      %s30 = sphi 0, %s37
      %s31 = sphi 0, %s29
      %s32 = sphi 0, %s30
      %s33 = sphi 0, %s31
      %s34 = sphi 0, %s32
      %s46 = sphi 0, %s48
      %s49 = sphi 0, %s46
      %s50 = sphi 0, %s49
      %s66 = sphi 0, %s50
      %s74 = sphi 0, %s76
      %s77 = sphi 0, %s74
      %s78 = sphi 0, %s77
      %s94 = sphi 0, %s78
      %s100 = sphi 0, %s102
      %s103 = sphi 0, %s100
      %s104 = sphi 0, %s103
      %s120 = sphi 0, %s104
      %s126 = sphi 0, %s128
      %s129 = sphi 0, %s126
      %s130 = sphi 0, %s129
      %s146 = sphi 0, %s130
      %s152 = sphi 0, %s154
      %s155 = sphi 0, %s152
      %s156 = sphi 0, %s155
      %s172 = sphi 0, %s156
      %s178 = sphi 0, %s180
      %s181 = sphi 0, %s178
      %s182 = sphi 0, %s181
      %s198 = sphi 0, %s182
      %s202 = sphi 0, %s202
      %s204 = sphi 0, %s202
      %s205 = sphi 0, %s204
      %s219 = sphi 0, %s205
      %s223 = sphi 0, %s223
      %s225 = sphi 0, %s223
      %s226 = sphi 0, %s225
      %s240 = sphi 0, %s226
      %s244 = sphi 0, %s244
      %s246 = sphi 0, %s244
      %s247 = sphi 0, %s246
      %s261 = sphi 0, %s247
      %s265 = sphi 0, %s265
      %s267 = sphi 0, %s265
      %s268 = sphi 0, %s267
      %s282 = sphi 0, %s268
      %s286 = sphi 0, %s286
      %s288 = sphi 0, %s286
      %s289 = sphi 0, %s288
      %s303 = sphi 0, %s289
      %s311 = sphi 0, %s313
      %s314 = sphi 0, %s311
      %s315 = sphi 0, %s314
      %s331 = sphi 0, %s315
      %s339 = sphi 0, %s341
      %s342 = sphi 0, %s339
      %s343 = sphi 0, %s342
      %s359 = sphi 0, %s343
    $region4: #{tpu_custom_call.1} parent=1 // loop_header_branch
      %25 = sbr.rel (%p23) target = $region8
    $region5: #{tpu_custom_call.1} parent=1 // loop_body
      %s27 = ssub.s32 %s22, 1
      %s28 = ssub.s32 %s22, 2
      %s35 = sadd.s32 1, %s30
      %p36 = scmp.ge.s32.totalorder %s35, 1
      %s37 = scalar_select %p36, 0, %s35
      %s38 = sadd.s32 1, %s29
      %s39 = scalar_select %p36, %s38, %s29
      %p40 = scmp.ge.s32.totalorder %s39, 2
      %s41 = scalar_select %p40, 0, %s39
      %s42 = ssub.s32 %s29, %s41
      %s43 = ssub.s32 %s30, %s37
      %s44 = sor.u32 %s42, %s43
      %p45 = scmp.eq.s32.totalorder %s44, 0
      %s47 = sadd.s32 %s46, 1
      %s48 = scalar_select %p45, %s46, %s47
      %p51 = pneg %p45
      %p52 = scmp.eq.s32.totalorder %s22, 1
      %p53 = por %p51, %p52
      %p54 = scmp.ne.s32.totalorder %s46, %s49
      %p55 = scmp.eq.s32.totalorder %s22, 0
      %p56 = por %p54, %p55
      %p57 = scmp.ne.s32.totalorder %s46, %s49
      %p58 = scmp.eq.s32.totalorder %s27, 1
      %p59 = por %p57, %p58
      %p60 = scmp.ne.s32.totalorder %s49, %s50
      %p61 = scmp.eq.s32.totalorder %s27, 0
      %p62 = por %p60, %p61
      %p63 = scmp.ne.s32.totalorder %s49, %s50
      %p64 = scmp.eq.s32.totalorder %s28, 1
      %p65 = por %p63, %p64
      %p67 = scmp.ne.s32.totalorder %s50, %s66
      %p68 = scmp.eq.s32.totalorder %s28, 0
      %p69 = por %p67, %p68
      %s70 = ssub.s32 %s29, %s41
      %s71 = ssub.s32 %s30, %s37
      %s72 = sor.u32 %s70, %s71
      %p73 = scmp.eq.s32.totalorder %s72, 0
      %s75 = sadd.s32 %s74, 1
      %s76 = scalar_select %p73, %s74, %s75
      %p79 = pneg %p73
      %p80 = scmp.eq.s32.totalorder %s22, 1
      %p81 = por %p79, %p80
      %p82 = scmp.ne.s32.totalorder %s74, %s77
      %p83 = scmp.eq.s32.totalorder %s22, 0
      %p84 = por %p82, %p83
      %p85 = scmp.ne.s32.totalorder %s74, %s77
      %p86 = scmp.eq.s32.totalorder %s27, 1
      %p87 = por %p85, %p86
      %p88 = scmp.ne.s32.totalorder %s77, %s78
      %p89 = scmp.eq.s32.totalorder %s27, 0
      %p90 = por %p88, %p89
      %p91 = scmp.ne.s32.totalorder %s77, %s78
      %p92 = scmp.eq.s32.totalorder %s28, 1
      %p93 = por %p91, %p92
      %p95 = scmp.ne.s32.totalorder %s78, %s94
      %p96 = scmp.eq.s32.totalorder %s28, 0
      %p97 = por %p95, %p96
      %s98 = ssub.s32 %s29, %s41
      %p99 = scmp.eq.s32.totalorder %s98, 0
      %s101 = sadd.s32 %s100, 1
      %s102 = scalar_select %p99, %s100, %s101
      %p105 = pneg %p99
      %p106 = scmp.eq.s32.totalorder %s22, 1
      %p107 = por %p105, %p106
      %p108 = scmp.ne.s32.totalorder %s100, %s103
      %p109 = scmp.eq.s32.totalorder %s22, 0
      %p110 = por %p108, %p109
      %p111 = scmp.ne.s32.totalorder %s100, %s103
      %p112 = scmp.eq.s32.totalorder %s27, 1
      %p113 = por %p111, %p112
      %p114 = scmp.ne.s32.totalorder %s103, %s104
      %p115 = scmp.eq.s32.totalorder %s27, 0
      %p116 = por %p114, %p115
      %p117 = scmp.ne.s32.totalorder %s103, %s104
      %p118 = scmp.eq.s32.totalorder %s28, 1
      %p119 = por %p117, %p118
      %p121 = scmp.ne.s32.totalorder %s104, %s120
      %p122 = scmp.eq.s32.totalorder %s28, 0
      %p123 = por %p121, %p122
      %s124 = ssub.s32 %s29, %s41
      %p125 = scmp.eq.s32.totalorder %s124, 0
      %s127 = sadd.s32 %s126, 1
      %s128 = scalar_select %p125, %s126, %s127
      %p131 = pneg %p125
      %p132 = scmp.eq.s32.totalorder %s22, 1
      %p133 = por %p131, %p132
      %p134 = scmp.ne.s32.totalorder %s126, %s129
      %p135 = scmp.eq.s32.totalorder %s22, 0
      %p136 = por %p134, %p135
      %p137 = scmp.ne.s32.totalorder %s126, %s129
      %p138 = scmp.eq.s32.totalorder %s27, 1
      %p139 = por %p137, %p138
      %p140 = scmp.ne.s32.totalorder %s129, %s130
      %p141 = scmp.eq.s32.totalorder %s27, 0
      %p142 = por %p140, %p141
      %p143 = scmp.ne.s32.totalorder %s129, %s130
      %p144 = scmp.eq.s32.totalorder %s28, 1
      %p145 = por %p143, %p144
      %p147 = scmp.ne.s32.totalorder %s130, %s146
      %p148 = scmp.eq.s32.totalorder %s28, 0
      %p149 = por %p147, %p148
      %s150 = ssub.s32 %s29, %s41
      %p151 = scmp.eq.s32.totalorder %s150, 0
      %s153 = sadd.s32 %s152, 1
      %s154 = scalar_select %p151, %s152, %s153
      %p157 = pneg %p151
      %p158 = scmp.eq.s32.totalorder %s22, 1
      %p159 = por %p157, %p158
      %p160 = scmp.ne.s32.totalorder %s152, %s155
      %p161 = scmp.eq.s32.totalorder %s22, 0
      %p162 = por %p160, %p161
      %p163 = scmp.ne.s32.totalorder %s152, %s155
      %p164 = scmp.eq.s32.totalorder %s27, 1
      %p165 = por %p163, %p164
      %p166 = scmp.ne.s32.totalorder %s155, %s156
      %p167 = scmp.eq.s32.totalorder %s27, 0
      %p168 = por %p166, %p167
      %p169 = scmp.ne.s32.totalorder %s155, %s156
      %p170 = scmp.eq.s32.totalorder %s28, 1
      %p171 = por %p169, %p170
      %p173 = scmp.ne.s32.totalorder %s156, %s172
      %p174 = scmp.eq.s32.totalorder %s28, 0
      %p175 = por %p173, %p174
      %s176 = ssub.s32 %s29, %s41
      %p177 = scmp.eq.s32.totalorder %s176, 0
      %s179 = sadd.s32 %s178, 1
      %s180 = scalar_select %p177, %s178, %s179
      %p183 = pneg %p177
      %p184 = scmp.eq.s32.totalorder %s22, 1
      %p185 = por %p183, %p184
      %p186 = scmp.ne.s32.totalorder %s178, %s181
      %p187 = scmp.eq.s32.totalorder %s22, 0
      %p188 = por %p186, %p187
      %p189 = scmp.ne.s32.totalorder %s178, %s181
      %p190 = scmp.eq.s32.totalorder %s27, 1
      %p191 = por %p189, %p190
      %p192 = scmp.ne.s32.totalorder %s181, %s182
      %p193 = scmp.eq.s32.totalorder %s27, 0
      %p194 = por %p192, %p193
      %p195 = scmp.ne.s32.totalorder %s181, %s182
      %p196 = scmp.eq.s32.totalorder %s28, 1
      %p197 = por %p195, %p196
      %p199 = scmp.ne.s32.totalorder %s182, %s198
      %p200 = scmp.eq.s32.totalorder %s28, 0
      %p201 = por %p199, %p200
      %s203 = sadd.s32 %s202, 1
      %p206 = scmp.eq.s32.totalorder %s22, 1
      %p207 = scmp.ne.s32.totalorder %s202, %s204
      %p208 = scmp.eq.s32.totalorder %s22, 0
      %p209 = por %p207, %p208
      %p210 = scmp.ne.s32.totalorder %s202, %s204
      %p211 = scmp.eq.s32.totalorder %s27, 1
      %p212 = por %p210, %p211
      %p213 = scmp.ne.s32.totalorder %s204, %s205
      %p214 = scmp.eq.s32.totalorder %s27, 0
      %p215 = por %p213, %p214
      %p216 = scmp.ne.s32.totalorder %s204, %s205
      %p217 = scmp.eq.s32.totalorder %s28, 1
      %p218 = por %p216, %p217
      %p220 = scmp.ne.s32.totalorder %s205, %s219
      %p221 = scmp.eq.s32.totalorder %s28, 0
      %p222 = por %p220, %p221
      %s224 = sadd.s32 %s223, 1
      %p227 = scmp.eq.s32.totalorder %s22, 1
      %p228 = scmp.ne.s32.totalorder %s223, %s225
      %p229 = scmp.eq.s32.totalorder %s22, 0
      %p230 = por %p228, %p229
      %p231 = scmp.ne.s32.totalorder %s223, %s225
      %p232 = scmp.eq.s32.totalorder %s27, 1
      %p233 = por %p231, %p232
      %p234 = scmp.ne.s32.totalorder %s225, %s226
      %p235 = scmp.eq.s32.totalorder %s27, 0
      %p236 = por %p234, %p235
      %p237 = scmp.ne.s32.totalorder %s225, %s226
      %p238 = scmp.eq.s32.totalorder %s28, 1
      %p239 = por %p237, %p238
      %p241 = scmp.ne.s32.totalorder %s226, %s240
      %p242 = scmp.eq.s32.totalorder %s28, 0
      %p243 = por %p241, %p242
      %s245 = sadd.s32 %s244, 1
      %p248 = scmp.eq.s32.totalorder %s22, 1
      %p249 = scmp.ne.s32.totalorder %s244, %s246
      %p250 = scmp.eq.s32.totalorder %s22, 0
      %p251 = por %p249, %p250
      %p252 = scmp.ne.s32.totalorder %s244, %s246
      %p253 = scmp.eq.s32.totalorder %s27, 1
      %p254 = por %p252, %p253
      %p255 = scmp.ne.s32.totalorder %s246, %s247
      %p256 = scmp.eq.s32.totalorder %s27, 0
      %p257 = por %p255, %p256
      %p258 = scmp.ne.s32.totalorder %s246, %s247
      %p259 = scmp.eq.s32.totalorder %s28, 1
      %p260 = por %p258, %p259
      %p262 = scmp.ne.s32.totalorder %s247, %s261
      %p263 = scmp.eq.s32.totalorder %s28, 0
      %p264 = por %p262, %p263
      %s266 = sadd.s32 %s265, 1
      %p269 = scmp.eq.s32.totalorder %s22, 1
      %p270 = scmp.ne.s32.totalorder %s265, %s267
      %p271 = scmp.eq.s32.totalorder %s22, 0
      %p272 = por %p270, %p271
      %p273 = scmp.ne.s32.totalorder %s265, %s267
      %p274 = scmp.eq.s32.totalorder %s27, 1
      %p275 = por %p273, %p274
      %p276 = scmp.ne.s32.totalorder %s267, %s268
      %p277 = scmp.eq.s32.totalorder %s27, 0
      %p278 = por %p276, %p277
      %p279 = scmp.ne.s32.totalorder %s267, %s268
      %p280 = scmp.eq.s32.totalorder %s28, 1
      %p281 = por %p279, %p280
      %p283 = scmp.ne.s32.totalorder %s268, %s282
      %p284 = scmp.eq.s32.totalorder %s28, 0
      %p285 = por %p283, %p284
      %s287 = sadd.s32 %s286, 1
      %p290 = scmp.eq.s32.totalorder %s22, 1
      %p291 = scmp.ne.s32.totalorder %s286, %s288
      %p292 = scmp.eq.s32.totalorder %s22, 0
      %p293 = por %p291, %p292
      %p294 = scmp.ne.s32.totalorder %s286, %s288
      %p295 = scmp.eq.s32.totalorder %s27, 1
      %p296 = por %p294, %p295
      %p297 = scmp.ne.s32.totalorder %s288, %s289
      %p298 = scmp.eq.s32.totalorder %s27, 0
      %p299 = por %p297, %p298
      %p300 = scmp.ne.s32.totalorder %s288, %s289
      %p301 = scmp.eq.s32.totalorder %s28, 1
      %p302 = por %p300, %p301
      %p304 = scmp.ne.s32.totalorder %s289, %s303
      %p305 = scmp.eq.s32.totalorder %s28, 0
      %p306 = por %p304, %p305
      %s307 = ssub.s32 %s29, %s41
      %s308 = ssub.s32 %s30, %s37
      %s309 = sor.u32 %s307, %s308
      %p310 = scmp.eq.s32.totalorder %s309, 0
      %s312 = sadd.s32 %s311, 1
      %s313 = scalar_select %p310, %s311, %s312
      %p316 = pneg %p310
      %p317 = scmp.eq.s32.totalorder %s22, 1
      %p318 = por %p316, %p317
      %p319 = scmp.ne.s32.totalorder %s311, %s314
      %p320 = scmp.eq.s32.totalorder %s22, 0
      %p321 = por %p319, %p320
      %p322 = scmp.ne.s32.totalorder %s311, %s314
      %p323 = scmp.eq.s32.totalorder %s27, 1
      %p324 = por %p322, %p323
      %p325 = scmp.ne.s32.totalorder %s314, %s315
      %p326 = scmp.eq.s32.totalorder %s27, 0
      %p327 = por %p325, %p326
      %p328 = scmp.ne.s32.totalorder %s314, %s315
      %p329 = scmp.eq.s32.totalorder %s28, 1
      %p330 = por %p328, %p329
      %p332 = scmp.ne.s32.totalorder %s315, %s331
      %p333 = scmp.eq.s32.totalorder %s28, 0
      %p334 = por %p332, %p333
      %s335 = ssub.s32 %s29, %s41
      %s336 = ssub.s32 %s30, %s37
      %s337 = sor.u32 %s335, %s336
      %p338 = scmp.eq.s32.totalorder %s337, 0
      %s340 = sadd.s32 %s339, 1
      %s341 = scalar_select %p338, %s339, %s340
      %p344 = pneg %p338
      %p345 = scmp.eq.s32.totalorder %s22, 1
      %p346 = por %p344, %p345
      %p347 = scmp.ne.s32.totalorder %s339, %s342
      %p348 = scmp.eq.s32.totalorder %s22, 0
      %p349 = por %p347, %p348
      %p350 = scmp.ne.s32.totalorder %s339, %s342
      %p351 = scmp.eq.s32.totalorder %s27, 1
      %p352 = por %p350, %p351
      %p353 = scmp.ne.s32.totalorder %s342, %s343
      %p354 = scmp.eq.s32.totalorder %s27, 0
      %p355 = por %p353, %p354
      %p356 = scmp.ne.s32.totalorder %s342, %s343
      %p357 = scmp.eq.s32.totalorder %s28, 1
      %p358 = por %p356, %p357
      %p360 = scmp.ne.s32.totalorder %s343, %s359
      %p361 = scmp.eq.s32.totalorder %s28, 0
      %p362 = por %p360, %p361
      %p363 = scmp.le.s32.totalorder 1, %s22
      %p364 = scmp.lt.s32.totalorder %s22, 3
      %p365 = pnand %p363, %p364
      %p366 = pneg %p365
      // Predicated region
      $region9: #{tpu_custom_call.1} parent=5 // pred_check
        _
      $region10: #{tpu_custom_call.1} parent=5 // pred_check_branch
        %368 = sbr.rel (%p365) target = $region12
      $region11: #{tpu_custom_call.1} parent=5 // pred_region
        %s369 = ssub.s32 %s22, 1
        // Predicated region
        $region13: #{tpu_custom_call.1} parent=11 // pred_check
          %p370 = pneg %p215
        $region14: #{tpu_custom_call.1} parent=11 // pred_check_branch
          %372 = sbr.rel (%p370) target = $region16
        $region15: #{tpu_custom_call.1} parent=11 // pred_region
          _
        $region16: #{tpu_custom_call.1} parent=11 // pred_fallthru
          _
        // Predicated region
        $region17: #{tpu_custom_call.1} parent=11 // pred_check
          %p373 = pneg %p236
        $region18: #{tpu_custom_call.1} parent=11 // pred_check_branch
          %375 = sbr.rel (%p373) target = $region20
        $region19: #{tpu_custom_call.1} parent=11 // pred_region
          _
        $region20: #{tpu_custom_call.1} parent=11 // pred_fallthru
          _
        // Predicated region
        $region21: #{tpu_custom_call.1} parent=11 // pred_check
          %p376 = pneg %p257
        $region22: #{tpu_custom_call.1} parent=11 // pred_check_branch
          %378 = sbr.rel (%p376) target = $region24
        $region23: #{tpu_custom_call.1} parent=11 // pred_region
          _
        $region24: #{tpu_custom_call.1} parent=11 // pred_fallthru
          _
        // Predicated region
        $region25: #{tpu_custom_call.1} parent=11 // pred_check
          %p379 = pneg %p278
        $region26: #{tpu_custom_call.1} parent=11 // pred_check_branch
          %381 = sbr.rel (%p379) target = $region28
        $region27: #{tpu_custom_call.1} parent=11 // pred_region
          _
        $region28: #{tpu_custom_call.1} parent=11 // pred_fallthru
          _
        // Predicated region
        $region29: #{tpu_custom_call.1} parent=11 // pred_check
          %p382 = pneg %p299
        $region30: #{tpu_custom_call.1} parent=11 // pred_check_branch
          %384 = sbr.rel (%p382) target = $region32
        $region31: #{tpu_custom_call.1} parent=11 // pred_region
          _
        $region32: #{tpu_custom_call.1} parent=11 // pred_fallthru
          _
      $region12: #{tpu_custom_call.1} parent=5 // pred_fallthru
        _
      %p385 = scmp.lt.s32.totalorder %s22, 2
      // Predicated region
      $region33: #{tpu_custom_call.1} parent=5 // pred_check
        %p386 = pneg %p385
      $region34: #{tpu_custom_call.1} parent=5 // pred_check_branch
        %388 = sbr.rel (%p386) target = $region36
      $region35: #{tpu_custom_call.1} parent=5 // pred_region
        // Predicated region
        $region37: #{tpu_custom_call.1} parent=35 // pred_check
          %p389 = pneg %p56
        $region38: #{tpu_custom_call.1} parent=35 // pred_check_branch
          %391 = sbr.rel (%p389) target = $region40
        $region39: #{tpu_custom_call.1} parent=35 // pred_region
          %p392 = scmp.lt.s32.totalorder %s29, 1
          %s393 = scalar_select %p392, %s29, 1
          %p394 = scmp.lt.s32.totalorder %s30, 0
          %s395 = scalar_select %p394, %s30, 0
          %s396 = sadd.s32 %s395, %s393
          %s397 = smul.addr %s396, 8
          %s398 = scalar_lea.vmem %s0, %s397
        $region40: #{tpu_custom_call.1} parent=35 // pred_fallthru
          _
        // Predicated region
        $region41: #{tpu_custom_call.1} parent=35 // pred_check
          %p399 = pneg %p84
        $region42: #{tpu_custom_call.1} parent=35 // pred_check_branch
          %401 = sbr.rel (%p399) target = $region44
        $region43: #{tpu_custom_call.1} parent=35 // pred_region
          %p402 = scmp.lt.s32.totalorder %s29, 1
          %s403 = scalar_select %p402, %s29, 1
          %p404 = scmp.lt.s32.totalorder %s30, 0
          %s405 = scalar_select %p404, %s30, 0
          %s406 = smul.addr %s403, 2
          %s407 = sadd.s32 %s405, %s406
          %s408 = smul.addr %s407, 8
          %s409 = scalar_lea.vmem %s1, %s408
        $region44: #{tpu_custom_call.1} parent=35 // pred_fallthru
          _
        // Predicated region
        $region45: #{tpu_custom_call.1} parent=35 // pred_check
          %p410 = pneg %p110
        $region46: #{tpu_custom_call.1} parent=35 // pred_check_branch
          %412 = sbr.rel (%p410) target = $region48
        $region47: #{tpu_custom_call.1} parent=35 // pred_region
          %p413 = scmp.lt.s32.totalorder %s29, 1
          %s414 = scalar_select %p413, %s29, 1
          %s415 = smul.addr %s414, 2
          %s416 = smul.addr %s415, 8
          %s417 = scalar_lea.vmem %s2, %s416
        $region48: #{tpu_custom_call.1} parent=35 // pred_fallthru
          _
        // Predicated region
        $region49: #{tpu_custom_call.1} parent=35 // pred_check
          %p418 = pneg %p136
        $region50: #{tpu_custom_call.1} parent=35 // pred_check_branch
          %420 = sbr.rel (%p418) target = $region52
        $region51: #{tpu_custom_call.1} parent=35 // pred_region
          %p421 = scmp.lt.s32.totalorder %s29, 1
          %s422 = scalar_select %p421, %s29, 1
          %s423 = smul.addr %s422, 2
          %s424 = smul.addr %s423, 8
          %s425 = scalar_lea.vmem %s3, %s424
        $region52: #{tpu_custom_call.1} parent=35 // pred_fallthru
          _
        // Predicated region
        $region53: #{tpu_custom_call.1} parent=35 // pred_check
          %p426 = pneg %p162
        $region54: #{tpu_custom_call.1} parent=35 // pred_check_branch
          %428 = sbr.rel (%p426) target = $region56
        $region55: #{tpu_custom_call.1} parent=35 // pred_region
          %p429 = scmp.lt.s32.totalorder %s29, 1
          %s430 = scalar_select %p429, %s29, 1
          %s431 = smul.addr %s430, 8
          %s432 = scalar_lea.vmem %s4, %s431
        $region56: #{tpu_custom_call.1} parent=35 // pred_fallthru
          _
        // Predicated region
        $region57: #{tpu_custom_call.1} parent=35 // pred_check
          %p433 = pneg %p188
        $region58: #{tpu_custom_call.1} parent=35 // pred_check_branch
          %435 = sbr.rel (%p433) target = $region60
        $region59: #{tpu_custom_call.1} parent=35 // pred_region
          %p436 = scmp.lt.s32.totalorder %s29, 1
          %s437 = scalar_select %p436, %s29, 1
          %s438 = smul.addr %s437, 8
          %s439 = scalar_lea.vmem %s5, %s438
        $region60: #{tpu_custom_call.1} parent=35 // pred_fallthru
          _
      $region36: #{tpu_custom_call.1} parent=5 // pred_fallthru
        _
      %p440 = scmp.le.s32.totalorder 1, %s22
      %p441 = scmp.lt.s32.totalorder %s22, 3
      %p442 = pnand %p440, %p441
      %p443 = pneg %p442
      // Predicated region
      $region61: #{tpu_custom_call.1} parent=5 // pred_check
        _
      $region62: #{tpu_custom_call.1} parent=5 // pred_check_branch
        %445 = sbr.rel (%p442) target = $region64
      $region63: #{tpu_custom_call.1} parent=5 // pred_region
        %s446 = ssub.s32 %s22, 1
        %p447 = scmp.lt.s32.totalorder %s31, 1
        %s448 = scalar_select %p447, %s31, 1
        %p449 = scmp.lt.s32.totalorder %s32, 0
        %s450 = scalar_select %p449, %s32, 0
        %s451 = sadd.s32 %s450, %s448
        %s452 = smul.addr %s451, 8
        %s453 = scalar_lea.vmem %s0, %s452
        %p454 = pneg %p62
        %p455 = pneg %p59
        %p456 = scmp.lt.s32.totalorder %s31, 1
        %s457 = scalar_select %p456, %s31, 1
        %p458 = scmp.lt.s32.totalorder %s32, 0
        %s459 = scalar_select %p458, %s32, 0
        %s460 = smul.addr %s457, 2
        %s461 = sadd.s32 %s459, %s460
        %s462 = smul.addr %s461, 8
        %s463 = scalar_lea.vmem %s1, %s462
        %p464 = pneg %p90
        %p465 = pneg %p87
        %p466 = scmp.lt.s32.totalorder %s31, 1
        %s467 = scalar_select %p466, %s31, 1
        %s468 = smul.addr %s467, 2
        %s469 = smul.addr %s468, 8
        %s470 = scalar_lea.vmem %s2, %s469
        %p471 = pneg %p116
        %p472 = pneg %p113
        %p473 = scmp.lt.s32.totalorder %s31, 1
        %s474 = scalar_select %p473, %s31, 1
        %s475 = smul.addr %s474, 2
        %s476 = smul.addr %s475, 8
        %s477 = scalar_lea.vmem %s3, %s476
        %p478 = pneg %p142
        %p479 = pneg %p139
        %p480 = scmp.lt.s32.totalorder %s31, 1
        %s481 = scalar_select %p480, %s31, 1
        %s482 = smul.addr %s481, 8
        %s483 = scalar_lea.vmem %s4, %s482
        %p484 = pneg %p168
        %p485 = pneg %p165
        %p486 = scmp.lt.s32.totalorder %s31, 1
        %s487 = scalar_select %p486, %s31, 1
        %s488 = smul.addr %s487, 8
        %s489 = scalar_lea.vmem %s5, %s488
        %p490 = pneg %p194
        %p491 = pneg %p191
        %p492 = pneg %p215
        %p493 = pneg %p212
        %p494 = pneg %p236
        %p495 = pneg %p233
        %p496 = pneg %p257
        %p497 = pneg %p254
        %p498 = pneg %p278
        %p499 = pneg %p275
        %p500 = pneg %p299
        %p501 = pneg %p296
        %p502 = pneg %p327
        %p503 = pneg %p324
        %s504 = sand.u32 %s314, 1
        %s505 = scalar_lea.sflag [#allocation3], %s504
        %s506 = sand.u32 %s314, 1
        %s507 = smul.addr %s506, 8
        %s508 = scalar_lea.vmem [#allocation2], %s507
        %p509 = pneg %p355
        %p510 = pneg %p352
        %p511 = scmp.lt.s32.totalorder %s31, 1
        %s512 = scalar_select %p511, %s31, 1
        %p513 = scmp.lt.s32.totalorder %s32, 0
        %s514 = scalar_select %p513, %s32, 0
        %s515 = smul.addr %s512, 2
        %s516 = sadd.s32 %s514, %s515
        %s517 = smul.addr %s516, 8
        %s518 = scalar_lea.vmem %s12, %s517
        %p519 = scmp.lt.s32.totalorder %s31, 1
        %s520 = scalar_select %p519, %s31, 1
        %p521 = scmp.lt.s32.totalorder %s32, 0
        %s522 = scalar_select %p521, %s32, 0
        %s523 = sadd.s32 %s522, %s520
        %s524 = smul.addr %s523, 8
        %s525 = scalar_lea.vmem %s0, %s524
        %p526 = scmp.lt.s32.totalorder %s31, 1
        %s527 = scalar_select %p526, %s31, 1
        %p528 = scmp.lt.s32.totalorder %s32, 0
        %s529 = scalar_select %p528, %s32, 0
        %s530 = smul.addr %s527, 2
        %s531 = sadd.s32 %s529, %s530
        %s532 = smul.addr %s531, 8
        %s533 = scalar_lea.vmem %s1, %s532
        %p534 = scmp.lt.s32.totalorder %s31, 1
        %s535 = scalar_select %p534, %s31, 1
        %s536 = smul.addr %s535, 2
        %s537 = smul.addr %s536, 8
        %s538 = scalar_lea.vmem %s2, %s537
        %p539 = scmp.lt.s32.totalorder %s31, 1
        %s540 = scalar_select %p539, %s31, 1
        %s541 = smul.addr %s540, 2
        %s542 = smul.addr %s541, 8
        %s543 = scalar_lea.vmem %s3, %s542
        %p544 = scmp.lt.s32.totalorder %s31, 1
        %s545 = scalar_select %p544, %s31, 1
        %s546 = smul.addr %s545, 8
        %s547 = scalar_lea.vmem %s4, %s546
        %p548 = scmp.lt.s32.totalorder %s31, 1
        %s549 = scalar_select %p548, %s31, 1
        %s550 = smul.addr %s549, 8
        %s551 = scalar_lea.vmem %s5, %s550
        %p552 = scmp.lt.s32.totalorder %s31, 1
        %s553 = scalar_select %p552, %s31, 1
        %p554 = scmp.lt.s32.totalorder %s32, 0
        %s555 = scalar_select %p554, %s32, 0
        %s556 = smul.addr %s553, 2
        %s557 = sadd.s32 %s555, %s556
        %s558 = smul.addr %s557, 8
        %s559 = scalar_lea.vmem %s12, %s558
        %v560 = vld [vmem:[%s525] sm:$0xff]
        %v561 = vld [vmem:[%s533] sm:$0xff]
        %v562 = vld [vmem:[%s533 + $0x8] sm:$0xff]
        %v563 = vld [vmem:[%s6] sm:$0xff]
        %v564 = vld [vmem:[%s6 + $0x8] sm:$0xff]
        %v565 = vld [vmem:[%s7] sm:$0x1]
        %v567 = vlaneseq
        %v568 = vshrl.u32 %v567, 7
        %v569 = vsub.s32 0, %v568
        %v570 = vrot.slane %v565, %v569
        %572 = vxpose.xlu0.b32.start [1/16] %v561, 128
        %573 = vxpose.xlu0.b32.cont [2/16] %v562, 128
        %574 = vxpose.xlu0.b32.cont [3/16] 0.0, 128
        %575 = vxpose.xlu0.b32.cont [4/16] 0.0, 128
        %576 = vxpose.xlu0.b32.cont [5/16] 0.0, 128
        %577 = vxpose.xlu0.b32.cont [6/16] 0.0, 128
        %578 = vxpose.xlu0.b32.cont [7/16] 0.0, 128
        %579 = vxpose.xlu0.b32.cont [8/16] 0.0, 128
        %580 = vxpose.xlu0.b32.cont [9/16] 0.0, 128
        %581 = vxpose.xlu0.b32.cont [10/16] 0.0, 128
        %582 = vxpose.xlu0.b32.cont [11/16] 0.0, 128
        %583 = vxpose.xlu0.b32.cont [12/16] 0.0, 128
        %584 = vxpose.xlu0.b32.cont [13/16] 0.0, 128
        %585 = vxpose.xlu0.b32.cont [14/16] 0.0, 128
        %586 = vxpose.xlu0.b32.cont [15/16] 0.0, 128
        %587 = vxpose.xlu0.b32.end [16/16] 0.0, 128
        %v588 = vpop.trf.xlu0
        %v589 = vpop.trf.xlu0
        %v590 = vpop.trf.xlu0
        %v591 = vpop.trf.xlu0
        %v592 = vpop.trf.xlu0
        %v593 = vpop.trf.xlu0
        %v594 = vpop.trf.xlu0
        %v595 = vpop.trf.xlu0
        %v596 = vpop.trf.xlu0
        %v597 = vpop.trf.xlu0
        %v598 = vpop.trf.xlu0
        %v599 = vpop.trf.xlu0
        %v600 = vpop.trf.xlu0
        %v601 = vpop.trf.xlu0
        %v602 = vpop.trf.xlu0
        %v603 = vpop.trf.xlu0
        %vm604 = vcmask 130048
        %v606 = vsel %vm604, %v588, 0
        %608 = vmatprep.subr.mxu0 0.0
        %609 = vmatpush1.msra.mxu0 %v563
        %610 = vmatprep.subr.mxu0 0.0
        %611 = vmatpush1.msra.mxu0 %v564
        %612 = vmatprep.subr.mxu0 0.0
        %613 = vmatpush1.msra.mxu0 0.0
        %614 = vmatprep.subr.mxu0 0.0
        %615 = vmatpush1.msra.mxu0 0.0
        %616 = vmatprep.subr.mxu0 0.0
        %617 = vmatpush1.msra.mxu0 0.0
        %618 = vmatprep.subr.mxu0 0.0
        %619 = vmatpush1.msra.mxu0 0.0
        %620 = vmatprep.subr.mxu0 0.0
        %621 = vmatpush1.msra.mxu0 0.0
        %622 = vmatprep.subr.mxu0 0.0
        %623 = vmatpush1.msra.mxu0 0.0
        %624 = vmatprep.subr.mxu0 0.0
        %625 = vmatpush1.msra.mxu0 0.0
        %626 = vmatprep.subr.mxu0 0.0
        %627 = vmatpush1.msra.mxu0 0.0
        %628 = vmatprep.subr.mxu0 0.0
        %629 = vmatpush1.msra.mxu0 0.0
        %630 = vmatprep.subr.mxu0 0.0
        %631 = vmatpush1.msra.mxu0 0.0
        %632 = vmatprep.subr.mxu0 0.0
        %633 = vmatpush1.msra.mxu0 0.0
        %634 = vmatprep.subr.mxu0 0.0
        %635 = vmatpush1.msra.mxu0 0.0
        %636 = vmatprep.subr.mxu0 0.0
        %637 = vmatpush1.msra.mxu0 0.0
        %638 = vmatprep.subr.mxu0 0.0
        %639 = vmatpush1.msra.mxu0 0.0
        %640 = vmatprep.subr.mxu0 0.0
        %641 = vmatpush1.msra.mxu0 0.0
        %642 = vmatprep.subr.mxu0 0.0
        %643 = vmatpush1.msra.mxu0 0.0
        %644 = vmatprep.subr.mxu0 0.0
        %645 = vmatpush1.msra.mxu0 0.0
        %646 = vmatprep.subr.mxu0 0.0
        %647 = vmatpush1.msra.mxu0 0.0
        %648 = vmatprep.subr.mxu0 0.0
        %649 = vmatpush1.msra.mxu0 0.0
        %650 = vmatprep.subr.mxu0 0.0
        %651 = vmatpush1.msra.mxu0 0.0
        %652 = vmatprep.subr.mxu0 0.0
        %653 = vmatpush1.msra.mxu0 0.0
        %654 = vmatprep.subr.mxu0 0.0
        %655 = vmatpush1.msra.mxu0 0.0
        %656 = vmatprep.subr.mxu0 0.0
        %657 = vmatpush1.msra.mxu0 0.0
        %658 = vmatprep.subr.mxu0 0.0
        %659 = vmatpush1.msra.mxu0 0.0
        %660 = vmatprep.subr.mxu0 0.0
        %661 = vmatpush1.msra.mxu0 0.0
        %662 = vmatprep.subr.mxu0 0.0
        %663 = vmatpush1.msra.mxu0 0.0
        %664 = vmatprep.subr.mxu0 0.0
        %665 = vmatpush1.msra.mxu0 0.0
        %666 = vmatprep.subr.mxu0 0.0
        %667 = vmatpush1.msra.mxu0 0.0
        %668 = vmatprep.subr.mxu0 0.0
        %669 = vmatpush1.msra.mxu0 0.0
        %670 = vmatprep.subr.mxu0 0.0
        %671 = vmatpush1.msra.mxu0 0.0
        %672 = vmatprep.mubr.f32.mxu0 0.0
        %673 = vmatmul.mubr.f32.gmra.mrb[0].mxu0 %v606
        %v674 = vpop.f32.mrb[0].mxu0
        %v675 = vadd.f32 %v570, %v674
        %v676 = vpop.f32.mrb[0].mxu0
        %677 = vdwg.mxu0
        %v678 = vadd.f32 %v560, %v675
        %v679 = vmul.f32 %v678, 0.70710677
        %v680 = vld [vmem:[%s538] sm:$0xff]
        %v681 = vld [vmem:[%s538 + $0x8] sm:$0xff]
        %vm682 = vcmask 261120
        %v684 = vsel %vm682, %v679, 0
        %v687 = vsel %vm682, %v680, 0
        %v690 = vsel %vm682, %v681, 0
        %692 = vmatprep.subr.mxu0 0.0
        %693 = vmatpush1.xpose.msra.mxu0 %v687
        %694 = vmatprep.subr.mxu0 0.0
        %695 = vmatpush1.xpose.msra.mxu0 %v690
        %696 = vmatprep.subr.mxu0 0.0
        %697 = vmatpush1.xpose.msra.mxu0 0.0
        %698 = vmatprep.subr.mxu0 0.0
        %699 = vmatpush1.xpose.msra.mxu0 0.0
        %700 = vmatprep.subr.mxu0 0.0
        %701 = vmatpush1.xpose.msra.mxu0 0.0
        %702 = vmatprep.subr.mxu0 0.0
        %703 = vmatpush1.xpose.msra.mxu0 0.0
        %704 = vmatprep.subr.mxu0 0.0
        %705 = vmatpush1.xpose.msra.mxu0 0.0
        %706 = vmatprep.subr.mxu0 0.0
        %707 = vmatpush1.xpose.msra.mxu0 0.0
        %708 = vmatprep.subr.mxu0 0.0
        %709 = vmatpush1.xpose.msra.mxu0 0.0
        %710 = vmatprep.subr.mxu0 0.0
        %711 = vmatpush1.xpose.msra.mxu0 0.0
        %712 = vmatprep.subr.mxu0 0.0
        %713 = vmatpush1.xpose.msra.mxu0 0.0
        %714 = vmatprep.subr.mxu0 0.0
        %715 = vmatpush1.xpose.msra.mxu0 0.0
        %716 = vmatprep.subr.mxu0 0.0
        %717 = vmatpush1.xpose.msra.mxu0 0.0
        %718 = vmatprep.subr.mxu0 0.0
        %719 = vmatpush1.xpose.msra.mxu0 0.0
        %720 = vmatprep.subr.mxu0 0.0
        %721 = vmatpush1.xpose.msra.mxu0 0.0
        %722 = vmatprep.subr.mxu0 0.0
        %723 = vmatpush1.xpose.msra.mxu0 0.0
        %724 = vmatprep.subr.mxu0 0.0
        %725 = vmatpush1.xpose.msra.mxu0 0.0
        %726 = vmatprep.subr.mxu0 0.0
        %727 = vmatpush1.xpose.msra.mxu0 0.0
        %728 = vmatprep.subr.mxu0 0.0
        %729 = vmatpush1.xpose.msra.mxu0 0.0
        %730 = vmatprep.subr.mxu0 0.0
        %731 = vmatpush1.xpose.msra.mxu0 0.0
        %732 = vmatprep.subr.mxu0 0.0
        %733 = vmatpush1.xpose.msra.mxu0 0.0
        %734 = vmatprep.subr.mxu0 0.0
        %735 = vmatpush1.xpose.msra.mxu0 0.0
        %736 = vmatprep.subr.mxu0 0.0
        %737 = vmatpush1.xpose.msra.mxu0 0.0
        %738 = vmatprep.subr.mxu0 0.0
        %739 = vmatpush1.xpose.msra.mxu0 0.0
        %740 = vmatprep.subr.mxu0 0.0
        %741 = vmatpush1.xpose.msra.mxu0 0.0
        %742 = vmatprep.subr.mxu0 0.0
        %743 = vmatpush1.xpose.msra.mxu0 0.0
        %744 = vmatprep.subr.mxu0 0.0
        %745 = vmatpush1.xpose.msra.mxu0 0.0
        %746 = vmatprep.subr.mxu0 0.0
        %747 = vmatpush1.xpose.msra.mxu0 0.0
        %748 = vmatprep.subr.mxu0 0.0
        %749 = vmatpush1.xpose.msra.mxu0 0.0
        %750 = vmatprep.subr.mxu0 0.0
        %751 = vmatpush1.xpose.msra.mxu0 0.0
        %752 = vmatprep.subr.mxu0 0.0
        %753 = vmatpush1.xpose.msra.mxu0 0.0
        %754 = vmatprep.subr.mxu0 0.0
        %755 = vmatpush1.xpose.msra.mxu0 0.0
        %756 = vmatprep.mubr.f32.mxu0 0.0
        %757 = vmatmul.mubr.f32.gmra.mrb[0].mxu0 %v684
        %v758 = vpop.f32.mrb[0].mxu0
        %v759 = vadd.f32 0.0, %v758
        %v760 = vpop.f32.mrb[0].mxu0
        %761 = vdwg.mxu0
        %v762 = vld [vmem:[%s547] sm:$0xff]
        %v764 = vsel %vm682, %v762, 0
        %766 = vmatprep.subr.mxu0 0.0
        %767 = vmatpush1.xpose.msra.mxu0 %v764
        %768 = vmatprep.subr.mxu0 0.0
        %769 = vmatpush1.xpose.msra.mxu0 0.0
        %770 = vmatprep.subr.mxu0 0.0
        %771 = vmatpush1.xpose.msra.mxu0 0.0
        %772 = vmatprep.subr.mxu0 0.0
        %773 = vmatpush1.xpose.msra.mxu0 0.0
        %774 = vmatprep.subr.mxu0 0.0
        %775 = vmatpush1.xpose.msra.mxu0 0.0
        %776 = vmatprep.subr.mxu0 0.0
        %777 = vmatpush1.xpose.msra.mxu0 0.0
        %778 = vmatprep.subr.mxu0 0.0
        %779 = vmatpush1.xpose.msra.mxu0 0.0
        %780 = vmatprep.subr.mxu0 0.0
        %781 = vmatpush1.xpose.msra.mxu0 0.0
        %782 = vmatprep.subr.mxu0 0.0
        %783 = vmatpush1.xpose.msra.mxu0 0.0
        %784 = vmatprep.subr.mxu0 0.0
        %785 = vmatpush1.xpose.msra.mxu0 0.0
        %786 = vmatprep.subr.mxu0 0.0
        %787 = vmatpush1.xpose.msra.mxu0 0.0
        %788 = vmatprep.subr.mxu0 0.0
        %789 = vmatpush1.xpose.msra.mxu0 0.0
        %790 = vmatprep.subr.mxu0 0.0
        %791 = vmatpush1.xpose.msra.mxu0 0.0
        %792 = vmatprep.subr.mxu0 0.0
        %793 = vmatpush1.xpose.msra.mxu0 0.0
        %794 = vmatprep.subr.mxu0 0.0
        %795 = vmatpush1.xpose.msra.mxu0 0.0
        %796 = vmatprep.subr.mxu0 0.0
        %797 = vmatpush1.xpose.msra.mxu0 0.0
        %798 = vmatprep.subr.mxu0 0.0
        %799 = vmatpush1.xpose.msra.mxu0 0.0
        %800 = vmatprep.subr.mxu0 0.0
        %801 = vmatpush1.xpose.msra.mxu0 0.0
        %802 = vmatprep.subr.mxu0 0.0
        %803 = vmatpush1.xpose.msra.mxu0 0.0
        %804 = vmatprep.subr.mxu0 0.0
        %805 = vmatpush1.xpose.msra.mxu0 0.0
        %806 = vmatprep.subr.mxu0 0.0
        %807 = vmatpush1.xpose.msra.mxu0 0.0
        %808 = vmatprep.subr.mxu0 0.0
        %809 = vmatpush1.xpose.msra.mxu0 0.0
        %810 = vmatprep.subr.mxu0 0.0
        %811 = vmatpush1.xpose.msra.mxu0 0.0
        %812 = vmatprep.subr.mxu0 0.0
        %813 = vmatpush1.xpose.msra.mxu0 0.0
        %814 = vmatprep.subr.mxu0 0.0
        %815 = vmatpush1.xpose.msra.mxu0 0.0
        %816 = vmatprep.subr.mxu0 0.0
        %817 = vmatpush1.xpose.msra.mxu0 0.0
        %818 = vmatprep.subr.mxu0 0.0
        %819 = vmatpush1.xpose.msra.mxu0 0.0
        %820 = vmatprep.subr.mxu0 0.0
        %821 = vmatpush1.xpose.msra.mxu0 0.0
        %822 = vmatprep.subr.mxu0 0.0
        %823 = vmatpush1.xpose.msra.mxu0 0.0
        %824 = vmatprep.subr.mxu0 0.0
        %825 = vmatpush1.xpose.msra.mxu0 0.0
        %826 = vmatprep.subr.mxu0 0.0
        %827 = vmatpush1.xpose.msra.mxu0 0.0
        %828 = vmatprep.subr.mxu0 0.0
        %829 = vmatpush1.xpose.msra.mxu0 0.0
        %830 = vmatprep.mubr.f32.mxu0 0.0
        %831 = vmatmul.mubr.f32.gmra.mrb[0].mxu0 %v684
        %v832 = vpop.f32.mrb[0].mxu0
        %v833 = vadd.f32 0.0, %v832
        %v834 = vpop.f32.mrb[0].mxu0
        %835 = vdwg.mxu0
        %v836 = vsel %vm604, %v759, -inf
        %837 = vmax.xlane.f32.xlu0 %v836
        %v838 = vpop.xlane.xlu0 %837
        %v839 = vsub.f32 %v759, %v838
        %v840 = vmul.f32 %v839, 1.442695
        %v841 = vpow.pop %v840
        %v842 = vsel %vm604, %v841, 0.0
        %843 = vadd.xlane.f32.xlu0 %v842
        %v844 = vpop.xlane.xlu0 %843
        %v845 = vrcp.pop %v844
        %v846 = vmul.f32 %v841, %v845
        %vm847 = vcmask 64512
        %v848 = vsel %vm847, %v833, -inf
        %849 = vmax.xlane.f32.xlu0 %v848
        %v850 = vpop.xlane.xlu0 %849
        %v851 = vsub.f32 %v833, %v850
        %v852 = vmul.f32 %v851, 1.442695
        %v853 = vpow.pop %v852
        %v854 = vsel %vm847, %v853, 0.0
        %855 = vadd.xlane.f32.xlu0 %v854
        %v856 = vpop.xlane.xlu0 %855
        %v857 = vrcp.pop %v856
        %v858 = vmul.f32 %v853, %v857
        %v859 = vld [vmem:[%s543] sm:$0xff]
        %v860 = vld [vmem:[%s543 + $0x8] sm:$0xff]
        %v862 = vsel %vm604, %v846, 0
        %864 = vmatprep.subr.mxu0 0.0
        %865 = vmatpush1.msra.mxu0 %v859
        %866 = vmatprep.subr.mxu0 0.0
        %867 = vmatpush1.msra.mxu0 %v860
        %868 = vmatprep.subr.mxu0 0.0
        %869 = vmatpush1.msra.mxu0 0.0
        %870 = vmatprep.subr.mxu0 0.0
        %871 = vmatpush1.msra.mxu0 0.0
        %872 = vmatprep.subr.mxu0 0.0
        %873 = vmatpush1.msra.mxu0 0.0
        %874 = vmatprep.subr.mxu0 0.0
        %875 = vmatpush1.msra.mxu0 0.0
        %876 = vmatprep.subr.mxu0 0.0
        %877 = vmatpush1.msra.mxu0 0.0
        %878 = vmatprep.subr.mxu0 0.0
        %879 = vmatpush1.msra.mxu0 0.0
        %880 = vmatprep.subr.mxu0 0.0
        %881 = vmatpush1.msra.mxu0 0.0
        %882 = vmatprep.subr.mxu0 0.0
        %883 = vmatpush1.msra.mxu0 0.0
        %884 = vmatprep.subr.mxu0 0.0
        %885 = vmatpush1.msra.mxu0 0.0
        %886 = vmatprep.subr.mxu0 0.0
        %887 = vmatpush1.msra.mxu0 0.0
        %888 = vmatprep.subr.mxu0 0.0
        %889 = vmatpush1.msra.mxu0 0.0
        %890 = vmatprep.subr.mxu0 0.0
        %891 = vmatpush1.msra.mxu0 0.0
        %892 = vmatprep.subr.mxu0 0.0
        %893 = vmatpush1.msra.mxu0 0.0
        %894 = vmatprep.subr.mxu0 0.0
        %895 = vmatpush1.msra.mxu0 0.0
        %896 = vmatprep.subr.mxu0 0.0
        %897 = vmatpush1.msra.mxu0 0.0
        %898 = vmatprep.subr.mxu0 0.0
        %899 = vmatpush1.msra.mxu0 0.0
        %900 = vmatprep.subr.mxu0 0.0
        %901 = vmatpush1.msra.mxu0 0.0
        %902 = vmatprep.subr.mxu0 0.0
        %903 = vmatpush1.msra.mxu0 0.0
        %904 = vmatprep.subr.mxu0 0.0
        %905 = vmatpush1.msra.mxu0 0.0
        %906 = vmatprep.subr.mxu0 0.0
        %907 = vmatpush1.msra.mxu0 0.0
        %908 = vmatprep.subr.mxu0 0.0
        %909 = vmatpush1.msra.mxu0 0.0
        %910 = vmatprep.subr.mxu0 0.0
        %911 = vmatpush1.msra.mxu0 0.0
        %912 = vmatprep.subr.mxu0 0.0
        %913 = vmatpush1.msra.mxu0 0.0
        %914 = vmatprep.subr.mxu0 0.0
        %915 = vmatpush1.msra.mxu0 0.0
        %916 = vmatprep.subr.mxu0 0.0
        %917 = vmatpush1.msra.mxu0 0.0
        %918 = vmatprep.subr.mxu0 0.0
        %919 = vmatpush1.msra.mxu0 0.0
        %920 = vmatprep.subr.mxu0 0.0
        %921 = vmatpush1.msra.mxu0 0.0
        %922 = vmatprep.subr.mxu0 0.0
        %923 = vmatpush1.msra.mxu0 0.0
        %924 = vmatprep.subr.mxu0 0.0
        %925 = vmatpush1.msra.mxu0 0.0
        %926 = vmatprep.subr.mxu0 0.0
        %927 = vmatpush1.msra.mxu0 0.0
        %928 = vmatprep.mubr.f32.mxu0 0.0
        %929 = vmatmul.mubr.f32.gmra.mrb[0].mxu0 %v862
        %v930 = vpop.f32.mrb[0].mxu0
        %v931 = vadd.f32 0.0, %v930
        %v932 = vpop.f32.mrb[0].mxu0
        %933 = vdwg.mxu0
        %v934 = vld [vmem:[%s551] sm:$0xff]
        %v936 = vsel %vm847, %v858, 0
        %938 = vmatprep.subr.mxu0 0.0
        %939 = vmatpush1.msra.mxu0 %v934
        %940 = vmatprep.subr.mxu0 0.0
        %941 = vmatpush1.msra.mxu0 0.0
        %942 = vmatprep.subr.mxu0 0.0
        %943 = vmatpush1.msra.mxu0 0.0
        %944 = vmatprep.subr.mxu0 0.0
        %945 = vmatpush1.msra.mxu0 0.0
        %946 = vmatprep.subr.mxu0 0.0
        %947 = vmatpush1.msra.mxu0 0.0
        %948 = vmatprep.subr.mxu0 0.0
        %949 = vmatpush1.msra.mxu0 0.0
        %950 = vmatprep.subr.mxu0 0.0
        %951 = vmatpush1.msra.mxu0 0.0
        %952 = vmatprep.subr.mxu0 0.0
        %953 = vmatpush1.msra.mxu0 0.0
        %954 = vmatprep.subr.mxu0 0.0
        %955 = vmatpush1.msra.mxu0 0.0
        %956 = vmatprep.subr.mxu0 0.0
        %957 = vmatpush1.msra.mxu0 0.0
        %958 = vmatprep.subr.mxu0 0.0
        %959 = vmatpush1.msra.mxu0 0.0
        %960 = vmatprep.subr.mxu0 0.0
        %961 = vmatpush1.msra.mxu0 0.0
        %962 = vmatprep.subr.mxu0 0.0
        %963 = vmatpush1.msra.mxu0 0.0
        %964 = vmatprep.subr.mxu0 0.0
        %965 = vmatpush1.msra.mxu0 0.0
        %966 = vmatprep.subr.mxu0 0.0
        %967 = vmatpush1.msra.mxu0 0.0
        %968 = vmatprep.subr.mxu0 0.0
        %969 = vmatpush1.msra.mxu0 0.0
        %970 = vmatprep.subr.mxu0 0.0
        %971 = vmatpush1.msra.mxu0 0.0
        %972 = vmatprep.subr.mxu0 0.0
        %973 = vmatpush1.msra.mxu0 0.0
        %974 = vmatprep.subr.mxu0 0.0
        %975 = vmatpush1.msra.mxu0 0.0
        %976 = vmatprep.subr.mxu0 0.0
        %977 = vmatpush1.msra.mxu0 0.0
        %978 = vmatprep.subr.mxu0 0.0
        %979 = vmatpush1.msra.mxu0 0.0
        %980 = vmatprep.subr.mxu0 0.0
        %981 = vmatpush1.msra.mxu0 0.0
        %982 = vmatprep.subr.mxu0 0.0
        %983 = vmatpush1.msra.mxu0 0.0
        %984 = vmatprep.subr.mxu0 0.0
        %985 = vmatpush1.msra.mxu0 0.0
        %986 = vmatprep.subr.mxu0 0.0
        %987 = vmatpush1.msra.mxu0 0.0
        %988 = vmatprep.subr.mxu0 0.0
        %989 = vmatpush1.msra.mxu0 0.0
        %990 = vmatprep.subr.mxu0 0.0
        %991 = vmatpush1.msra.mxu0 0.0
        %992 = vmatprep.subr.mxu0 0.0
        %993 = vmatpush1.msra.mxu0 0.0
        %994 = vmatprep.subr.mxu0 0.0
        %995 = vmatpush1.msra.mxu0 0.0
        %996 = vmatprep.subr.mxu0 0.0
        %997 = vmatpush1.msra.mxu0 0.0
        %998 = vmatprep.subr.mxu0 0.0
        %999 = vmatpush1.msra.mxu0 0.0
        %1000 = vmatprep.subr.mxu0 0.0
        %1001 = vmatpush1.msra.mxu0 0.0
        %1002 = vmatprep.mubr.f32.mxu0 0.0
        %1003 = vmatmul.mubr.f32.gmra.mrb[0].mxu0 %v936
        %v1004 = vpop.f32.mrb[0].mxu0
        %v1005 = vadd.f32 0.0, %v1004
        %v1006 = vpop.f32.mrb[0].mxu0
        %1007 = vdwg.mxu0
        %v1008 = vld [vmem:[%s8] sm:$0xff]
        %v1009 = vld [vmem:[%s8 + $0x8] sm:$0xff]
        %v1010 = vld [vmem:[%s8 + $0x10] sm:$0xff]
        %v1011 = vld [vmem:[%s8 + $0x18] sm:$0xff]
        %v1012 = vld [vmem:[%s9] sm:$0xff]
        %v1013 = vld [vmem:[%s9 + $0x8] sm:$0xff]
        %v1014 = vld [vmem:[%s9 + $0x10] sm:$0xff]
        %v1015 = vld [vmem:[%s9 + $0x18] sm:$0xff]
        %v1017 = vsel %vm682, %v1005, 0
        %1019 = vmatprep.subr.mxu0 0.0
        %1020 = vmatpush1.msra.mxu0 %v1012
        %1021 = vmatprep.subr.mxu0 0.0
        %1022 = vmatpush1.msra.mxu0 %v1013
        %1023 = vmatprep.subr.mxu0 0.0
        %1024 = vmatpush1.msra.mxu0 %v1014
        %1025 = vmatprep.subr.mxu0 0.0
        %1026 = vmatpush1.msra.mxu0 %v1015
        %1027 = vmatprep.subr.mxu0 0.0
        %1028 = vmatpush1.msra.mxu0 0.0
        %1029 = vmatprep.subr.mxu0 0.0
        %1030 = vmatpush1.msra.mxu0 0.0
        %1031 = vmatprep.subr.mxu0 0.0
        %1032 = vmatpush1.msra.mxu0 0.0
        %1033 = vmatprep.subr.mxu0 0.0
        %1034 = vmatpush1.msra.mxu0 0.0
        %1035 = vmatprep.subr.mxu0 0.0
        %1036 = vmatpush1.msra.mxu0 0.0
        %1037 = vmatprep.subr.mxu0 0.0
        %1038 = vmatpush1.msra.mxu0 0.0
        %1039 = vmatprep.subr.mxu0 0.0
        %1040 = vmatpush1.msra.mxu0 0.0
        %1041 = vmatprep.subr.mxu0 0.0
        %1042 = vmatpush1.msra.mxu0 0.0
        %1043 = vmatprep.subr.mxu0 0.0
        %1044 = vmatpush1.msra.mxu0 0.0
        %1045 = vmatprep.subr.mxu0 0.0
        %1046 = vmatpush1.msra.mxu0 0.0
        %1047 = vmatprep.subr.mxu0 0.0
        %1048 = vmatpush1.msra.mxu0 0.0
        %1049 = vmatprep.subr.mxu0 0.0
        %1050 = vmatpush1.msra.mxu0 0.0
        %1051 = vmatprep.subr.mxu0 0.0
        %1052 = vmatpush1.msra.mxu0 0.0
        %1053 = vmatprep.subr.mxu0 0.0
        %1054 = vmatpush1.msra.mxu0 0.0
        %1055 = vmatprep.subr.mxu0 0.0
        %1056 = vmatpush1.msra.mxu0 0.0
        %1057 = vmatprep.subr.mxu0 0.0
        %1058 = vmatpush1.msra.mxu0 0.0
        %1059 = vmatprep.subr.mxu0 0.0
        %1060 = vmatpush1.msra.mxu0 0.0
        %1061 = vmatprep.subr.mxu0 0.0
        %1062 = vmatpush1.msra.mxu0 0.0
        %1063 = vmatprep.subr.mxu0 0.0
        %1064 = vmatpush1.msra.mxu0 0.0
        %1065 = vmatprep.subr.mxu0 0.0
        %1066 = vmatpush1.msra.mxu0 0.0
        %1067 = vmatprep.subr.mxu0 0.0
        %1068 = vmatpush1.msra.mxu0 0.0
        %1069 = vmatprep.subr.mxu0 0.0
        %1070 = vmatpush1.msra.mxu0 0.0
        %1071 = vmatprep.subr.mxu0 0.0
        %1072 = vmatpush1.msra.mxu0 0.0
        %1073 = vmatprep.subr.mxu0 0.0
        %1074 = vmatpush1.msra.mxu0 0.0
        %1075 = vmatprep.subr.mxu0 0.0
        %1076 = vmatpush1.msra.mxu0 0.0
        %1077 = vmatprep.subr.mxu0 0.0
        %1078 = vmatpush1.msra.mxu0 0.0
        %1079 = vmatprep.subr.mxu0 0.0
        %1080 = vmatpush1.msra.mxu0 0.0
        %1081 = vmatprep.subr.mxu0 0.0
        %1082 = vmatpush1.msra.mxu0 0.0
        %1083 = vmatprep.mubr.f32.mxu0 0.0
        %1084 = vmatmul.mubr.f32.gmra.mrb[0].mxu0 %v1017
        %v1085 = vpop.f32.mrb[0].mxu0
        %v1086 = vadd.f32 0.0, %v1085
        %v1087 = vpop.f32.mrb[0].mxu0
        %1088 = vdwg.mxu0
        %v1090 = vsel %vm682, %v931, 0
        %1092 = vmatprep.subr.mxu0 0.0
        %1093 = vmatpush1.msra.mxu0 %v1008
        %1094 = vmatprep.subr.mxu0 0.0
        %1095 = vmatpush1.msra.mxu0 %v1009
        %1096 = vmatprep.subr.mxu0 0.0
        %1097 = vmatpush1.msra.mxu0 %v1010
        %1098 = vmatprep.subr.mxu0 0.0
        %1099 = vmatpush1.msra.mxu0 %v1011
        %1100 = vmatprep.subr.mxu0 0.0
        %1101 = vmatpush1.msra.mxu0 0.0
        %1102 = vmatprep.subr.mxu0 0.0
        %1103 = vmatpush1.msra.mxu0 0.0
        %1104 = vmatprep.subr.mxu0 0.0
        %1105 = vmatpush1.msra.mxu0 0.0
        %1106 = vmatprep.subr.mxu0 0.0
        %1107 = vmatpush1.msra.mxu0 0.0
        %1108 = vmatprep.subr.mxu0 0.0
        %1109 = vmatpush1.msra.mxu0 0.0
        %1110 = vmatprep.subr.mxu0 0.0
        %1111 = vmatpush1.msra.mxu0 0.0
        %1112 = vmatprep.subr.mxu0 0.0
        %1113 = vmatpush1.msra.mxu0 0.0
        %1114 = vmatprep.subr.mxu0 0.0
        %1115 = vmatpush1.msra.mxu0 0.0
        %1116 = vmatprep.subr.mxu0 0.0
        %1117 = vmatpush1.msra.mxu0 0.0
        %1118 = vmatprep.subr.mxu0 0.0
        %1119 = vmatpush1.msra.mxu0 0.0
        %1120 = vmatprep.subr.mxu0 0.0
        %1121 = vmatpush1.msra.mxu0 0.0
        %1122 = vmatprep.subr.mxu0 0.0
        %1123 = vmatpush1.msra.mxu0 0.0
        %1124 = vmatprep.subr.mxu0 0.0
        %1125 = vmatpush1.msra.mxu0 0.0
        %1126 = vmatprep.subr.mxu0 0.0
        %1127 = vmatpush1.msra.mxu0 0.0
        %1128 = vmatprep.subr.mxu0 0.0
        %1129 = vmatpush1.msra.mxu0 0.0
        %1130 = vmatprep.subr.mxu0 0.0
        %1131 = vmatpush1.msra.mxu0 0.0
        %1132 = vmatprep.subr.mxu0 0.0
        %1133 = vmatpush1.msra.mxu0 0.0
        %1134 = vmatprep.subr.mxu0 0.0
        %1135 = vmatpush1.msra.mxu0 0.0
        %1136 = vmatprep.subr.mxu0 0.0
        %1137 = vmatpush1.msra.mxu0 0.0
        %1138 = vmatprep.subr.mxu0 0.0
        %1139 = vmatpush1.msra.mxu0 0.0
        %1140 = vmatprep.subr.mxu0 0.0
        %1141 = vmatpush1.msra.mxu0 0.0
        %1142 = vmatprep.subr.mxu0 0.0
        %1143 = vmatpush1.msra.mxu0 0.0
        %1144 = vmatprep.subr.mxu0 0.0
        %1145 = vmatpush1.msra.mxu0 0.0
        %1146 = vmatprep.subr.mxu0 0.0
        %1147 = vmatpush1.msra.mxu0 0.0
        %1148 = vmatprep.subr.mxu0 0.0
        %1149 = vmatpush1.msra.mxu0 0.0
        %1150 = vmatprep.subr.mxu0 0.0
        %1151 = vmatpush1.msra.mxu0 0.0
        %1152 = vmatprep.subr.mxu0 0.0
        %1153 = vmatpush1.msra.mxu0 0.0
        %1154 = vmatprep.subr.mxu0 0.0
        %1155 = vmatpush1.msra.mxu0 0.0
        %1156 = vmatprep.mubr.f32.mxu0 0.0
        %1157 = vmatmul.mubr.f32.gmra.mrb[0].mxu0 %v1090
        %v1158 = vpop.f32.mrb[0].mxu0
        %v1159 = vadd.f32 %v1086, %v1158
        %v1160 = vpop.f32.mrb[0].mxu0
        %1161 = vdwg.mxu0
        %v1162 = vld [vmem:[%s10] sm:$0x1]
        %v1164 = vlaneseq
        %v1165 = vshrl.u32 %v1164, 7
        %v1166 = vsub.s32 0, %v1165
        %v1167 = vrot.slane %v1162, %v1166
        %v1169 = vadd.f32 %v1159, %v1167
        %1170 = vst.msk [vmem:[%s508] sm:$0xff] %vm847, %v858
        %v1171 = vmul.f32 %v561, 1.4142135
        %v1172 = vmul.f32 %v562, 1.4142135
        %1173 = vxpose.xlu0.b32.start [1/16] %v1169, 128
        %1174 = vxpose.xlu0.b32.cont [2/16] 0.0, 128
        %1175 = vxpose.xlu0.b32.cont [3/16] 0.0, 128
        %1176 = vxpose.xlu0.b32.cont [4/16] 0.0, 128
        %1177 = vxpose.xlu0.b32.cont [5/16] 0.0, 128
        %1178 = vxpose.xlu0.b32.cont [6/16] 0.0, 128
        %1179 = vxpose.xlu0.b32.cont [7/16] 0.0, 128
        %1180 = vxpose.xlu0.b32.cont [8/16] 0.0, 128
        %1181 = vxpose.xlu0.b32.cont [9/16] 0.0, 128
        %1182 = vxpose.xlu0.b32.cont [10/16] 0.0, 128
        %1183 = vxpose.xlu0.b32.cont [11/16] 0.0, 128
        %1184 = vxpose.xlu0.b32.cont [12/16] 0.0, 128
        %1185 = vxpose.xlu0.b32.cont [13/16] 0.0, 128
        %1186 = vxpose.xlu0.b32.cont [14/16] 0.0, 128
        %1187 = vxpose.xlu0.b32.cont [15/16] 0.0, 128
        %1188 = vxpose.xlu0.b32.end [16/16] 0.0, 128
        %v1189 = vpop.trf.xlu0
        %v1190 = vpop.trf.xlu0
        %v1191 = vpop.trf.xlu0
        %v1192 = vpop.trf.xlu0
        %v1193 = vpop.trf.xlu0
        %v1194 = vpop.trf.xlu0
        %v1195 = vpop.trf.xlu0
        %v1196 = vpop.trf.xlu0
        %v1197 = vpop.trf.xlu0
        %v1198 = vpop.trf.xlu0
        %v1199 = vpop.trf.xlu0
        %v1200 = vpop.trf.xlu0
        %v1201 = vpop.trf.xlu0
        %v1202 = vpop.trf.xlu0
        %v1203 = vpop.trf.xlu0
        %v1204 = vpop.trf.xlu0
        %v1205 = vmul.f32 %v1189, 0.70710677
        %v1206 = vmul.f32 %v1190, 0.70710677
        %v1207 = vadd.f32 %v1171, %v1205
        %v1208 = vadd.f32 %v1172, %v1206
        %1209 = vst.msk [vmem:[%s559] sm:$0xff] %vm847, %v1207
        %1210 = vst.msk [vmem:[%s559 + $0x8] sm:$0xff] %vm847, %v1208
        %s1211 = sand.u32 %s314, 1
        %s1212 = scalar_lea.sflag [#allocation3], %s1211
        %s1213 = sand.u32 %s314, 1
        %s1214 = smul.addr %s1213, 8
        %s1215 = scalar_lea.vmem [#allocation2], %s1214
        %p1216 = scmp.lt.s32.totalorder %s31, 1
        %s1217 = scalar_select %p1216, %s31, 1
        %p1218 = scmp.lt.s32.totalorder %s32, 0
        %s1219 = scalar_select %p1218, %s32, 0
        %s1220 = smul.addr %s1217, 2
        %s1221 = sadd.s32 %s1219, %s1220
        %s1222 = smul.addr %s1221, 8
        %s1223 = scalar_lea.vmem %s12, %s1222
        // Predicated region
        $region65: #{tpu_custom_call.1} parent=63 // pred_check
          %p1224 = pneg %p324
        $region66: #{tpu_custom_call.1} parent=63 // pred_check_branch
          %1226 = sbr.rel (%p1224) target = $region68
        $region67: #{tpu_custom_call.1} parent=63 // pred_region
          %s1228 = ssub.s32 128, 128
          %1229 = vsyncadd %s1212, %s1228
          %s1230 = sadd.s32 %s32, %s31
          %s1231 = smul.addr %s1230, 128
          %s1232 = scalar_lea.hbm %s11, %s1231
          %s1234 = sshll.u32 %s1215, 4
          %s1235 = int_to_ptr.vmem [resolvable:$true] %s1234
          %1237 = dma.vmem_to_hbm [thread:$0]  %s1235, 128, %s1232, %s1212
        $region68: #{tpu_custom_call.1} parent=63 // pred_fallthru
          _
        // Predicated region
        $region69: #{tpu_custom_call.1} parent=63 // pred_check
          %p1238 = pneg %p352
        $region70: #{tpu_custom_call.1} parent=63 // pred_check_branch
          %1240 = sbr.rel (%p1238) target = $region72
        $region71: #{tpu_custom_call.1} parent=63 // pred_region
          _
        $region72: #{tpu_custom_call.1} parent=63 // pred_fallthru
          _
      $region64: #{tpu_custom_call.1} parent=5 // pred_fallthru
        _
      %p1241 = scmp.le.s32.totalorder 2, %s22
      // Predicated region
      $region73: #{tpu_custom_call.1} parent=5 // pred_check
        %p1242 = pneg %p1241
      $region74: #{tpu_custom_call.1} parent=5 // pred_check_branch
        %1244 = sbr.rel (%p1242) target = $region76
      $region75: #{tpu_custom_call.1} parent=5 // pred_region
        %s1245 = ssub.s32 %s22, 2
        // Predicated region
        $region77: #{tpu_custom_call.1} parent=75 // pred_check
          %p1246 = pneg %p330
        $region78: #{tpu_custom_call.1} parent=75 // pred_check_branch
          %1248 = sbr.rel (%p1246) target = $region80
        $region79: #{tpu_custom_call.1} parent=75 // pred_region
          %s1249 = sand.u32 %s315, 1
          %s1250 = scalar_lea.sflag [#allocation3], %s1249
          %s1251 = sand.u32 %s315, 1
          %s1252 = smul.addr %s1251, 8
          %s1253 = scalar_lea.vmem [#allocation2], %s1252
          %1254 = dma.done %s1250, 128
        $region80: #{tpu_custom_call.1} parent=75 // pred_fallthru
          _
        // Predicated region
        $region81: #{tpu_custom_call.1} parent=75 // pred_check
          %p1255 = pneg %p358
        $region82: #{tpu_custom_call.1} parent=75 // pred_check_branch
          %1257 = sbr.rel (%p1255) target = $region84
        $region83: #{tpu_custom_call.1} parent=75 // pred_region
          %p1258 = scmp.lt.s32.totalorder %s33, 1
          %s1259 = scalar_select %p1258, %s33, 1
          %p1260 = scmp.lt.s32.totalorder %s34, 0
          %s1261 = scalar_select %p1260, %s34, 0
          %s1262 = smul.addr %s1259, 2
          %s1263 = sadd.s32 %s1261, %s1262
          %s1264 = smul.addr %s1263, 8
          %s1265 = scalar_lea.vmem %s12, %s1264
        $region84: #{tpu_custom_call.1} parent=75 // pred_fallthru
          _
      $region76: #{tpu_custom_call.1} parent=5 // pred_fallthru
        _
    $region6: #{tpu_custom_call.1} parent=1 // loop_footer
      %s26 = sadd.s32 1, %s22
    $region7: #{tpu_custom_call.1} parent=1 // loop_footer_branch
      %21 = sbr.rel target = $region3
    $region8: #{tpu_custom_call.1} parent=1 // loop_exit
      _
    %1266 = vsyncpa [#allocation3], 1
    %s1267 = scalar_lea.sflag [#allocation3], 1
    %1268 = vsyncpa %s1267, 1

</llo_original>
